<compile_context>
chip_gen: v7x
topology: tpu7x:2x2x1
jax: 0.10.0
libtpu: 0.0.40
codegen_flags: <defaults>
</compile_context>

<pallas_src>
import functools

import jax
import jax.numpy as jnp
from jax import lax
from jax.experimental import pallas as pl
from jax.experimental.pallas import tpu as pltpu


def _round_up(x, m):
    return (x + m - 1) // m * m


def _tpu_kind():
    try:
        return jax.devices()[0].device_kind.lower()
    except Exception:  # pragma: no cover - defensive
        return ""


_IS_V7X = "v7" in _tpu_kind()
_TM_CAP = 256 if _IS_V7X else 512          # v7x: 64 MiB VMEM -> smaller M tiles
_TK_CAP = 2048                             # tile of the packed 2K contraction axis
_VMEM_CAP = (56 if _IS_V7X else 110) * 1024 * 1024


def _choose_m_tiles(m):
    """Largest M tile under the per-chip cap, but always >=2 tiles (megacore)."""
    tm = min(_TM_CAP, _round_up(m, 16))
    if m > 16:
        while _round_up(m, tm) // tm < 2 and tm > 16:
            tm = _round_up((tm + 1) // 2, 16)
    mp = _round_up(m, tm)
    return tm, mp, mp // tm


def _choose_k_tiles(k2):
    if k2 <= _TK_CAP:
        return k2, k2, 1
    k2p = _round_up(k2, _TK_CAP)
    return _TK_CAP, k2p, k2p // _TK_CAP


def _mosaic_params(vmem_need_bytes):
    kwargs = dict(dimension_semantics=("parallel", "arbitrary"))
    if vmem_need_bytes > (24 << 20):       # raise scoped VMEM only when needed
        kwargs["vmem_limit_bytes"] = int(min(vmem_need_bytes * 3 // 2, _VMEM_CAP))
    return pltpu.CompilerParams(**kwargs)


# ----------------------------------------------------------------------------
# Pallas kernel: K-tiled block-complex matmul with fused bias / tanh / BN stats
# ----------------------------------------------------------------------------
def _cconv_matmul_kernel(apply_tanh, emit_stats, mask_rows, tm, m_true,
                         a_ref, w_ref, bias_ref, *refs):
    """acc += A'[i,k] @ B'[k]; finalize (bias, tanh, stats, store) at k==last.

    A' = [Ar | Ai] (TM, TK),  B' = [[Wr, Wi], [-Wi, Wr]] tile (TK, N2); a single
    MXU dot per step produces the packed real/imag output columns.
    """
    if emit_stats:
        out_ref, stats_ref, acc_ref = refs
    else:
        out_ref, acc_ref = refs
        stats_ref = None

    k = pl.program_id(1)

    @pl.when(k == 0)
    def _():
        acc_ref[...] = jnp.zeros_like(acc_ref)

    acc_ref[...] += jnp.dot(a_ref[...], w_ref[...],
                            preferred_element_type=jnp.float32)

    @pl.when(k == pl.num_programs(1) - 1)
    def _():
        out = acc_ref[...] + bias_ref[...]
        if apply_tanh:                        # CTanhR (EUP slot, ~free)
            out = jnp.tanh(out)
        out_ref[...] = out.astype(out_ref.dtype)

        if emit_stats:                        # fused pre-BN partial stats (f32)
            def _write_stats(vals):
                stats_ref[0] = jnp.concatenate(
                    [jnp.sum(vals, axis=0, keepdims=True),
                     jnp.sum(vals * vals, axis=0, keepdims=True)], axis=0)

            if mask_rows:
                i = pl.program_id(0)
                not_last = i < pl.num_programs(0) - 1

                @pl.when(not_last)            # no masking work on full tiles
                def _():
                    _write_stats(out)

                @pl.when(jnp.logical_not(not_last))
                def _():                      # only the last M tile has pad rows
                    row = tm * i + lax.broadcasted_iota(jnp.int32, out.shape, 0)
                    _write_stats(jnp.where(row < m_true, out, 0.0))
            else:
                _write_stats(out)


# ----------------------------------------------------------------------------
# pallas_call wrapper
# ----------------------------------------------------------------------------
def complex_matmul_packed(a_packed, w_block, bias_packed, *, apply_tanh,
                          emit_stats, out_dtype):
    """a_packed: (M, 2K) bf16 ; w_block: (2K, N2) ; bias: (N2,) f32."""
    if apply_tanh and emit_stats:
        raise ValueError("BN stats must be pre-activation; emit_stats cannot be "
                         "combined with apply_tanh.")
    m, k2 = a_packed.shape
    n2 = w_block.shape[1]
    tm, mp, n_m = _choose_m_tiles(m)
    tk, k2p, n_k = _choose_k_tiles(k2)
    mask_rows = mp != m
    if mp != m:
        a_packed = jnp.pad(a_packed, ((0, mp - m), (0, 0)))
    if k2p != k2:
        a_packed = jnp.pad(a_packed, ((0, 0), (0, k2p - k2)))
        w_block = jnp.pad(w_block, ((0, k2p - k2), (0, 0)))
    a_bf = a_packed.astype(jnp.bfloat16)      # no-op: A built in bf16 upstream
    w_bf = w_block.astype(jnp.bfloat16)
    bias2d = bias_packed.reshape(1, n2).astype(jnp.float32)

    kern = functools.partial(_cconv_matmul_kernel, apply_tanh, emit_stats,
                             mask_rows, tm, m)
    in_specs = [
        pl.BlockSpec((tm, tk), lambda i, k: (i, k)),
        # TODO(synk): pipeline_mode=pl.Buffered(1) on the constant W/bias blocks
        # (and Buffered(3) on A for v5e) once single-buffering is verified on
        # the target jax version.
        pl.BlockSpec((tk, n2), lambda i, k: (k, 0)),
        pl.BlockSpec((1, n2), lambda i, k: (0, 0)),
    ]
    out_specs = [pl.BlockSpec((tm, n2), lambda i, k: (i, 0))]
    out_shape = [jax.ShapeDtypeStruct((mp, n2), out_dtype)]
    if emit_stats:
        out_specs.append(pl.BlockSpec((1, 2, n2), lambda i, k: (i, 0, 0)))
        out_shape.append(jax.ShapeDtypeStruct((n_m, 2, n2), jnp.float32))

    vmem_need = (2 * tm * tk * 2 + 2 * tk * n2 * 2          # A, W double buffers
                 + 2 * tm * n2 * jnp.dtype(out_dtype).itemsize
                 + tm * n2 * 4 + (1 << 20))                  # f32 acc + slack

    results = pl.pallas_call(
        kern,
        grid=(n_m, n_k),
        in_specs=in_specs,
        out_specs=out_specs,
        out_shape=out_shape,
        scratch_shapes=[pltpu.VMEM((tm, n2), jnp.float32)],
        compiler_params=_mosaic_params(vmem_need),
    )(a_bf, w_bf, bias2d)
    if emit_stats:
        return results[0], results[1]
    return results[0], None


# ----------------------------------------------------------------------------
# Layer helpers (NHWC bf16 activations, PyTorch-layout (Cin,Cout,K,K) weights)
# ----------------------------------------------------------------------------
def complex_conv_transpose_s1(xr, xi, wr, wi, br, bi, k, padding,
                              apply_tanh=False, emit_stats=True,
                              out_dtype=jnp.bfloat16):
    """ConvTranspose2d(complex), stride=1: pad(k-1-p) + im2col + one matmul."""
    b, h, w, cin = xr.shape
    cout = wr.shape[1]
    p = padding
    pp = k - 1 - p
    oh = h - 1 - 2 * p + k
    ow = w - 1 - 2 * p + k
    cp = _round_up(cout, 128 if cout > 64 else 64)   # 2*cp lane-dense (>=128)
    m = b * oh * ow

    xr = xr.astype(jnp.bfloat16)                     # cast BEFORE pad/stack
    xi = xi.astype(jnp.bfloat16)

    def im2col(x):
        xp = jnp.pad(x, ((0, 0), (pp, pp), (pp, pp), (0, 0)))
        cols = jnp.stack([xp[:, ky:ky + oh, kx:kx + ow, :]
                          for ky in range(k) for kx in range(k)], axis=3)
        return cols.reshape(m, k * k * cin)

    def wmat(wt):
        wf = wt[:, :, ::-1, ::-1]                    # spatial flip
        wf = jnp.transpose(wf, (2, 3, 0, 1)).reshape(k * k * cin, cout)
        return jnp.pad(wf, ((0, 0), (0, cp - cout)))

    a_packed = jnp.concatenate([im2col(xr), im2col(xi)], axis=1)   # (M, 2K)
    wrm, wim = wmat(wr), wmat(wi)
    w_block = jnp.concatenate(
        [jnp.concatenate([wrm, wim], axis=1),
         jnp.concatenate([-wim, wrm], axis=1)], axis=0)            # (2K, 2cp)
    bias = jnp.concatenate([jnp.pad(br, (0, cp - cout)),
                            jnp.pad(bi, (0, cp - cout))])

    out, stats = complex_matmul_packed(a_packed, w_block, bias,
                                       apply_tanh=apply_tanh,
                                       emit_stats=emit_stats,
                                       out_dtype=out_dtype)
    outr = out[:m, :cout].reshape(b, oh, ow, cout)
    outi = out[:m, cp:cp + cout].reshape(b, oh, ow, cout)
    bn_meta = (1, cp, cout, m)                       # (n_phase, cp, cout, count)
    return outr, outi, stats, bn_meta


def complex_conv_transpose_s2k4p1(xr, xi, wr, wi, br, bi,
                                  apply_tanh=False, emit_stats=True,
                                  out_dtype=jnp.bfloat16):
    """ConvTranspose2d(complex), k=4, stride=2, pad=1 via sub-pixel phases.

    Output pixel (2q+py, 2r+px) only touches a 2x2 sub-kernel and two adjacent
    input rows/cols.  A is the 3x3 tap window of the 1-padded input (shared by
    all four phases); the four phase weights are concatenated along N so one
    MXU matmul emits all phases.  No zero-inserted upsample is materialized.
    """
    b, h, w, cin = xr.shape
    cout = wr.shape[1]
    cp = _round_up(cout, 32 if cout > 64 else 16)    # 8*cp lane-dense (>=128)
    m = b * h * w
    oh, ow = 2 * h, 2 * w

    xr = xr.astype(jnp.bfloat16)                     # cast BEFORE pad/stack
    xi = xi.astype(jnp.bfloat16)

    def gather(x):                                   # (M, 9*Cin) 3x3 tap window
        xp = jnp.pad(x, ((0, 0), (1, 1), (1, 1), (0, 0)))
        cols = jnp.stack([xp[:, dy:dy + h, dx:dx + w, :]
                          for dy in range(3) for dx in range(3)], axis=3)
        return cols.reshape(m, 9 * cin)

    # phase p uses kernel tap kmap[p][d] at 3x3-window offset d (others zero):
    #   out[2q+0] = W[1]*x[q]   + W[3]*x[q-1]
    #   out[2q+1] = W[0]*x[q+1] + W[2]*x[q]
    kmap = ({0: 3, 1: 1}, {1: 2, 2: 0})

    def wmat(wt):                                    # (9*Cin, 4*cp)
        cols = []
        for py in (0, 1):
            for px in (0, 1):
                wp = jnp.zeros((3, 3, cin, cout), wt.dtype)
                for dy, ky in kmap[py].items():
                    for dx, kx in kmap[px].items():
                        wp = wp.at[dy, dx].set(wt[:, :, ky, kx])
                cols.append(jnp.pad(wp.reshape(9 * cin, cout),
                                    ((0, 0), (0, cp - cout))))
        return jnp.concatenate(cols, axis=1)

    a_packed = jnp.concatenate([gather(xr), gather(xi)], axis=1)   # (M, 18*Cin)
    wrm, wim = wmat(wr), wmat(wi)
    w_block = jnp.concatenate(
        [jnp.concatenate([wrm, wim], axis=1),
         jnp.concatenate([-wim, wrm], axis=1)], axis=0)            # (18Cin, 8cp)
    bias_tile = lambda v: jnp.tile(jnp.pad(v, (0, cp - cout)), 4)
    bias = jnp.concatenate([bias_tile(br), bias_tile(bi)])         # (8*cp,)

    out, stats = complex_matmul_packed(a_packed, w_block, bias,
                                       apply_tanh=apply_tanh,
                                       emit_stats=emit_stats,
                                       out_dtype=out_dtype)

    def assemble(cols):                              # (M, 4*cp) -> (B, 2H, 2W, C)
        y = cols.reshape(b, h, w, 2, 2, cp)[..., :cout]
        y = jnp.transpose(y, (0, 1, 3, 2, 4, 5))     # (B, H, py, W, px, C)
        return y.reshape(b, oh, ow, cout)

    outr = assemble(out[:m, :4 * cp])
    outi = assemble(out[:m, 4 * cp:])
    bn_meta = (4, cp, cout, b * oh * ow)
    return outr, outi, stats, bn_meta


def apply_complex_bn_relu(xr, xi, stats, bn_meta, bn_params, eps=1e-5):
    """Finalize fused per-tile stats; apply folded BN + CReLUR in plain jnp.

    The elementwise apply is deliberately NOT a Pallas kernel: XLA fuses it
    into the next layer's patch gather, avoiding an extra HBM round trip.
    """
    n_phase, cp, cout, count = bn_meta
    col_sum = jnp.sum(stats[:, 0, :], axis=0)                    # (n2,)
    col_sq = jnp.sum(stats[:, 1, :], axis=0)
    s = col_sum.reshape(2, n_phase, cp)[:, :, :cout].sum(axis=1)  # (2, cout)
    sq = col_sq.reshape(2, n_phase, cp)[:, :, :cout].sum(axis=1)
    mean = s / count
    # TODO(synk): one-pass E[x^2]-E[x]^2 can cancel for large means; switch to
    #   centered accumulation if tight agreement with complex64 is required.
    var = jnp.maximum(sq / count - mean * mean, 0.0)
    inv = lax.rsqrt(var + eps)
    gamma = jnp.stack([bn_params["gr"], bn_params["gi"]])         # (2, cout)
    beta = jnp.stack([bn_params["br"], bn_params["bi"]])
    scale = gamma * inv
    shift = beta - mean * scale
    yr = jnp.maximum(xr * scale[0] + shift[0], 0.0).astype(jnp.bfloat16)
    yi = jnp.maximum(xi * scale[1] + shift[1], 0.0).astype(jnp.bfloat16)
    return yr, yi


# ----------------------------------------------------------------------------
# Generator: parameter init + forward
# ----------------------------------------------------------------------------
def init_generator_params(key, latent_dim, num_classes, ngf, nc):
    ks = jax.random.split(key, 16)
    kit = iter(ks)

    def cweight(cin, cout, k):
        sc = 0.1
        return (sc * jax.random.normal(next(kit), (cin, cout, k, k), jnp.float32),
                sc * jax.random.normal(next(kit), (cin, cout, k, k), jnp.float32))

    def cbias(cout):
        return (jnp.zeros((cout,), jnp.float32), jnp.zeros((cout,), jnp.float32))

    def bn(c):
        return dict(gr=jnp.ones((c,), jnp.float32), gi=jnp.ones((c,), jnp.float32),
                    br=jnp.zeros((c,), jnp.float32), bi=jnp.zeros((c,), jnp.float32))

    return {
        "emb": jax.random.normal(next(kit), (num_classes, num_classes), jnp.float32),
        "conv1_w": cweight(latent_dim + num_classes, ngf * 4, 4),
        "conv1_b": cbias(ngf * 4),
        "bn1": bn(ngf * 4),
        "conv2_w": cweight(ngf * 4, ngf * 2, 4),
        "conv2_b": cbias(ngf * 2),
        "bn2": bn(ngf * 2),
        "conv3_w": cweight(ngf * 2, ngf, 4),
        "conv3_b": cbias(ngf),
        "bn3": bn(ngf),
        "conv4_w": cweight(ngf, nc, 4),
        "conv4_b": cbias(nc),
    }


def generator_forward(params, noise_r, noise_i, labels):
    # label embedding (real), broadcast to noise spatial dims, concat on channels.
    emb = params["emb"][labels]                              # (B, num_classes)
    b, _, h, w = noise_r.shape
    nclass = emb.shape[1]

    # NCHW -> NHWC once at the input; activations stay channel-last bf16.
    xr = jnp.transpose(noise_r, (0, 2, 3, 1))
    xi = jnp.transpose(noise_i, (0, 2, 3, 1))
    lab = jnp.broadcast_to(emb[:, None, None, :], (b, h, w, nclass))
    xr = jnp.concatenate([xr, lab], axis=-1).astype(jnp.bfloat16)
    xi = jnp.concatenate([xi, jnp.zeros_like(lab)], axis=-1).astype(jnp.bfloat16)

    # block 1: ConvT(4,1,0) -> BN -> CReLUR
    orr, oii, stats, meta = complex_conv_transpose_s1(
        xr, xi, *params["conv1_w"], *params["conv1_b"], k=4, padding=0)
    xr, xi = apply_complex_bn_relu(orr, oii, stats, meta, params["bn1"])
    # block 2: ConvT(4,2,1) -> BN -> CReLUR   (sub-pixel phase decomposition)
    orr, oii, stats, meta = complex_conv_transpose_s2k4p1(
        xr, xi, *params["conv2_w"], *params["conv2_b"])
    xr, xi = apply_complex_bn_relu(orr, oii, stats, meta, params["bn2"])
    # block 3: ConvT(4,2,1) -> BN -> CReLUR
    orr, oii, stats, meta = complex_conv_transpose_s2k4p1(
        xr, xi, *params["conv3_w"], *params["conv3_b"])
    xr, xi = apply_complex_bn_relu(orr, oii, stats, meta, params["bn3"])
    # block 4: ConvT(4,2,1) -> CTanhR (tanh fused into the matmul kernel, f32 out)
    yr, yi, _, _ = complex_conv_transpose_s2k4p1(
        xr, xi, *params["conv4_w"], *params["conv4_b"],
        apply_tanh=True, emit_stats=False, out_dtype=jnp.float32)

    # NHWC -> NCHW once at the output.
    return jnp.transpose(yr, (0, 3, 1, 2)), jnp.transpose(yi, (0, 3, 1, 2))


# ----------------------------------------------------------------------------
if __name__ == "__main__":
    latent_dim, num_classes, ngf, nc, batch = 16, 4, 8, 1, 2

    key = jax.random.PRNGKey(0)
    kp, kn_r, kn_i, kl = jax.random.split(key, 4)

    params = init_generator_params(kp, latent_dim, num_classes, ngf, nc)

    # noise: (B, latent_dim, 1, 1) complex64, carried as real/imag float32.
    noise_r = jax.random.normal(kn_r, (batch, latent_dim, 1, 1), jnp.float32)
    noise_i = jax.random.normal(kn_i, (batch, latent_dim, 1, 1), jnp.float32)
    labels = jax.random.randint(kl, (batch,), 0, num_classes)

    fwd = jax.jit(generator_forward)
    out_r, out_i = fwd(params, noise_r, noise_i, labels)
    out_r = jax.block_until_ready(out_r)
    out_i = jax.block_until_ready(out_i)

    expected = (batch, nc, 32, 32)   # 1 -> 4 -> 8 -> 16 -> 32
    assert out_r.shape == expected and out_i.shape == expected, (out_r.shape, expected)
    assert jnp.all(jnp.isfinite(out_r)) and jnp.all(jnp.isfinite(out_i))
    assert jnp.all(jnp.abs(out_r) <= 1.0) and jnp.all(jnp.abs(out_i) <= 1.0)  # tanh range
    print("KERNEL_OK")
</pallas_src>

<mosaic_0001>
module attributes {stable_mosaic.version = 11 : i64} {
  func.func @_cconv_matmul_kernel(%arg0: i32, %arg1: i32, %arg2: memref<16x640xbf16, #tpu.memory_space<vmem>>, %arg3: memref<640x128xbf16, #tpu.memory_space<vmem>>, %arg4: memref<1x128xf32, #tpu.memory_space<vmem>>, %arg5: memref<16x128xbf16, #tpu.memory_space<vmem>>, %arg6: memref<1x2x128xf32, #tpu.memory_space<vmem>>, %arg7: memref<16x128xf32, #tpu.memory_space<vmem>>) attributes {dimension_semantics = [#tpu.dimension_semantics<parallel>, #tpu.dimension_semantics<arbitrary>], iteration_bounds = array<i64: 2, 1>, scalar_prefetch = 0 : i64, scratch_operands = 1 : i64, tpu.core_type = #tpu.core_type<tc>, window_params = [{transform_indices = @transform_0, window_bounds = array<i64: 16, 640>}, {transform_indices = @transform_1, window_bounds = array<i64: 640, 128>}, {pipeline_mode = #tpu.pipeline_mode<synchronous>, transform_indices = @transform_2, window_bounds = array<i64: 1, 128>}, {transform_indices = @transform_3, window_bounds = array<i64: 16, 128>}, {transform_indices = @transform_4, window_bounds = array<i64: 1, 2, 128>}]} {
    %c0_i32 = arith.constant 0 : i32
    %0 = arith.cmpi eq, %arg1, %c0_i32 : i32
    %1 = arith.extui %0 : i1 to i32
    %c0_i32_0 = arith.constant 0 : i32
    %2 = arith.cmpi ne, %1, %c0_i32_0 : i32
    scf.if %2 {
      %cst_10 = arith.constant 0.000000e+00 : f32
      %12 = vector.broadcast %cst_10 : f32 to vector<16x128xf32>
      %c0_11 = arith.constant 0 : index
      %c0_12 = arith.constant 0 : index
      %13 = vector.load %arg7[%c0_11, %c0_12] : memref<16x128xf32, #tpu.memory_space<vmem>>, vector<16x128xf32>
      tpu.vector_store %arg7[%c0_11, %c0_12], %12 {strides = array<i32>} : memref<16x128xf32, #tpu.memory_space<vmem>>, vector<16x128xf32>,
    } else {
    }
    %c0 = arith.constant 0 : index
    %c0_1 = arith.constant 0 : index
    %3 = vector.load %arg7[%c0, %c0_1] : memref<16x128xf32, #tpu.memory_space<vmem>>, vector<16x128xf32>
    %c0_2 = arith.constant 0 : index
    %c0_3 = arith.constant 0 : index
    %4 = vector.load %arg2[%c0_2, %c0_3] : memref<16x640xbf16, #tpu.memory_space<vmem>>, vector<16x640xbf16>
    %c0_4 = arith.constant 0 : index
    %c0_5 = arith.constant 0 : index
    %5 = vector.load %arg3[%c0_4, %c0_5] : memref<640x128xbf16, #tpu.memory_space<vmem>>, vector<640x128xbf16>
    %cst = arith.constant dense<0.000000e+00> : vector<16x128xf32>
    %6 = tpu.matmul %4, %5, %cst {dimension_numbers = #tpu.dot_dimension_numbers<[1], [0], [0], [1], [0, 0, 1, 1], [], []>} : vector<16x640xbf16>, vector<640x128xbf16>, vector<16x128xf32> -> vector<16x128xf32>
    %7 = arith.addf %3, %6 : vector<16x128xf32>
    %c0_6 = arith.constant 0 : index
    %c0_7 = arith.constant 0 : index
    %8 = vector.load %arg7[%c0_6, %c0_7] : memref<16x128xf32, #tpu.memory_space<vmem>>, vector<16x128xf32>
    tpu.vector_store %arg7[%c0_6, %c0_7], %7 {strides = array<i32>} : memref<16x128xf32, #tpu.memory_space<vmem>>, vector<16x128xf32>,
    %c0_i32_8 = arith.constant 0 : i32
    %9 = arith.cmpi eq, %arg1, %c0_i32_8 : i32
    %10 = arith.extui %9 : i1 to i32
    %c0_i32_9 = arith.constant 0 : i32
    %11 = arith.cmpi ne, %10, %c0_i32_9 : i32
    scf.if %11 {
      %c0_10 = arith.constant 0 : index
      %c0_11 = arith.constant 0 : index
      %12 = vector.load %arg7[%c0_10, %c0_11] : memref<16x128xf32, #tpu.memory_space<vmem>>, vector<16x128xf32>
      %c0_12 = arith.constant 0 : index
      %c0_13 = arith.constant 0 : index
      %13 = vector.load %arg4[%c0_12, %c0_13] : memref<1x128xf32, #tpu.memory_space<vmem>>, vector<1x128xf32>
      %14 = vector.broadcast %13 : vector<1x128xf32> to vector<16x128xf32>
      %15 = arith.addf %12, %14 : vector<16x128xf32>
      %16 = arith.truncf %15 : vector<16x128xf32> to vector<16x128xbf16>
      %c0_14 = arith.constant 0 : index
      %c0_15 = arith.constant 0 : index
      %17 = vector.load %arg5[%c0_14, %c0_15] : memref<16x128xbf16, #tpu.memory_space<vmem>>, vector<16x128xbf16>
      tpu.vector_store %arg5[%c0_14, %c0_15], %16 {strides = array<i32>} : memref<16x128xbf16, #tpu.memory_space<vmem>>, vector<16x128xbf16>,
      %cst_16 = arith.constant dense<0.000000e+00> : vector<128xf32>
      %18 = vector.multi_reduction <add>, %15, %cst_16 [0] : vector<16x128xf32> to vector<128xf32>
      %19 = vector.shape_cast %18 : vector<128xf32> to vector<1x128xf32>
      %20 = arith.mulf %15, %15 : vector<16x128xf32>
      %cst_17 = arith.constant dense<0.000000e+00> : vector<128xf32>
      %21 = vector.multi_reduction <add>, %20, %cst_17 [0] : vector<16x128xf32> to vector<128xf32>
      %22 = vector.shape_cast %21 : vector<128xf32> to vector<1x128xf32>
      %23 = tpu.concatenate %19, %22 in 0 : vector<1x128xf32>, vector<1x128xf32> -> vector<2x128xf32>
      %c0_18 = arith.constant 0 : index
      %c0_19 = arith.constant 0 : index
      %c0_20 = arith.constant 0 : index
      %24 = vector.load %arg6[%c0_18, %c0_19, %c0_20] : memref<1x2x128xf32, #tpu.memory_space<vmem>>, vector<1x2x128xf32>
      %25 = vector.shape_cast %24 : vector<1x2x128xf32> to vector<2x128xf32>
      %26 = vector.shape_cast %23 : vector<2x128xf32> to vector<1x2x128xf32>
      tpu.vector_store %arg6[%c0_18, %c0_19, %c0_20], %26 {strides = array<i32>} : memref<1x2x128xf32, #tpu.memory_space<vmem>>, vector<1x2x128xf32>,
    } else {
    }
    return
  }
  func.func @transform_0(%arg0: i32, %arg1: i32) -> (i32, i32) {
    %c0_i32 = arith.constant 0 : i32
    return %arg0, %arg1 : i32, i32
  }
  func.func @transform_1(%arg0: i32, %arg1: i32) -> (i32, i32) {
    %c0_i32 = arith.constant 0 : i32
    %c0_i32_0 = arith.constant 0 : i32
    return %arg1, %c0_i32 : i32, i32
  }
  func.func @transform_2(%arg0: i32, %arg1: i32) -> (i32, i32) {
    %c0_i32 = arith.constant 0 : i32
    %c0_i32_0 = arith.constant 0 : i32
    %c0_i32_1 = arith.constant 0 : i32
    return %c0_i32, %c0_i32_0 : i32, i32
  }
  func.func @transform_3(%arg0: i32, %arg1: i32) -> (i32, i32) {
    %c0_i32 = arith.constant 0 : i32
    %c0_i32_0 = arith.constant 0 : i32
    return %arg0, %c0_i32 : i32, i32
  }
  func.func @transform_4(%arg0: i32, %arg1: i32) -> (i32, i32, i32) {
    %c0_i32 = arith.constant 0 : i32
    %c0_i32_0 = arith.constant 0 : i32
    %c0_i32_1 = arith.constant 0 : i32
    return %arg0, %c0_i32, %c0_i32_0 : i32, i32, i32
  }
}

module attributes {stable_mosaic.version = 11 : i64} {
  func.func @_cconv_matmul_kernel(%arg0: i32, %arg1: i32, %arg2: memref<16x576xbf16, #tpu.memory_space<vmem>>, %arg3: memref<576x128xbf16, #tpu.memory_space<vmem>>, %arg4: memref<1x128xf32, #tpu.memory_space<vmem>>, %arg5: memref<16x128xbf16, #tpu.memory_space<vmem>>, %arg6: memref<1x2x128xf32, #tpu.memory_space<vmem>>, %arg7: memref<16x128xf32, #tpu.memory_space<vmem>>) attributes {dimension_semantics = [#tpu.dimension_semantics<parallel>, #tpu.dimension_semantics<arbitrary>], iteration_bounds = array<i64: 2, 1>, scalar_prefetch = 0 : i64, scratch_operands = 1 : i64, tpu.core_type = #tpu.core_type<tc>, window_params = [{transform_indices = @transform_0, window_bounds = array<i64: 16, 576>}, {transform_indices = @transform_1, window_bounds = array<i64: 576, 128>}, {pipeline_mode = #tpu.pipeline_mode<synchronous>, transform_indices = @transform_2, window_bounds = array<i64: 1, 128>}, {transform_indices = @transform_3, window_bounds = array<i64: 16, 128>}, {transform_indices = @transform_4, window_bounds = array<i64: 1, 2, 128>}]} {
    %c0_i32 = arith.constant 0 : i32
    %0 = arith.cmpi eq, %arg1, %c0_i32 : i32
    %1 = arith.extui %0 : i1 to i32
    %c0_i32_0 = arith.constant 0 : i32
    %2 = arith.cmpi ne, %1, %c0_i32_0 : i32
    scf.if %2 {
      %cst_10 = arith.constant 0.000000e+00 : f32
      %12 = vector.broadcast %cst_10 : f32 to vector<16x128xf32>
      %c0_11 = arith.constant 0 : index
      %c0_12 = arith.constant 0 : index
      %13 = vector.load %arg7[%c0_11, %c0_12] : memref<16x128xf32, #tpu.memory_space<vmem>>, vector<16x128xf32>
      tpu.vector_store %arg7[%c0_11, %c0_12], %12 {strides = array<i32>} : memref<16x128xf32, #tpu.memory_space<vmem>>, vector<16x128xf32>,
    } else {
    }
    %c0 = arith.constant 0 : index
    %c0_1 = arith.constant 0 : index
    %3 = vector.load %arg7[%c0, %c0_1] : memref<16x128xf32, #tpu.memory_space<vmem>>, vector<16x128xf32>
    %c0_2 = arith.constant 0 : index
    %c0_3 = arith.constant 0 : index
    %4 = vector.load %arg2[%c0_2, %c0_3] : memref<16x576xbf16, #tpu.memory_space<vmem>>, vector<16x576xbf16>
    %c0_4 = arith.constant 0 : index
    %c0_5 = arith.constant 0 : index
    %5 = vector.load %arg3[%c0_4, %c0_5] : memref<576x128xbf16, #tpu.memory_space<vmem>>, vector<576x128xbf16>
    %cst = arith.constant dense<0.000000e+00> : vector<16x128xf32>
    %6 = tpu.matmul %4, %5, %cst {dimension_numbers = #tpu.dot_dimension_numbers<[1], [0], [0], [1], [0, 0, 1, 1], [], []>} : vector<16x576xbf16>, vector<576x128xbf16>, vector<16x128xf32> -> vector<16x128xf32>
    %7 = arith.addf %3, %6 : vector<16x128xf32>
    %c0_6 = arith.constant 0 : index
    %c0_7 = arith.constant 0 : index
    %8 = vector.load %arg7[%c0_6, %c0_7] : memref<16x128xf32, #tpu.memory_space<vmem>>, vector<16x128xf32>
    tpu.vector_store %arg7[%c0_6, %c0_7], %7 {strides = array<i32>} : memref<16x128xf32, #tpu.memory_space<vmem>>, vector<16x128xf32>,
    %c0_i32_8 = arith.constant 0 : i32
    %9 = arith.cmpi eq, %arg1, %c0_i32_8 : i32
    %10 = arith.extui %9 : i1 to i32
    %c0_i32_9 = arith.constant 0 : i32
    %11 = arith.cmpi ne, %10, %c0_i32_9 : i32
    scf.if %11 {
      %c0_10 = arith.constant 0 : index
      %c0_11 = arith.constant 0 : index
      %12 = vector.load %arg7[%c0_10, %c0_11] : memref<16x128xf32, #tpu.memory_space<vmem>>, vector<16x128xf32>
      %c0_12 = arith.constant 0 : index
      %c0_13 = arith.constant 0 : index
      %13 = vector.load %arg4[%c0_12, %c0_13] : memref<1x128xf32, #tpu.memory_space<vmem>>, vector<1x128xf32>
      %14 = vector.broadcast %13 : vector<1x128xf32> to vector<16x128xf32>
      %15 = arith.addf %12, %14 : vector<16x128xf32>
      %16 = arith.truncf %15 : vector<16x128xf32> to vector<16x128xbf16>
      %c0_14 = arith.constant 0 : index
      %c0_15 = arith.constant 0 : index
      %17 = vector.load %arg5[%c0_14, %c0_15] : memref<16x128xbf16, #tpu.memory_space<vmem>>, vector<16x128xbf16>
      tpu.vector_store %arg5[%c0_14, %c0_15], %16 {strides = array<i32>} : memref<16x128xbf16, #tpu.memory_space<vmem>>, vector<16x128xbf16>,
      %cst_16 = arith.constant dense<0.000000e+00> : vector<128xf32>
      %18 = vector.multi_reduction <add>, %15, %cst_16 [0] : vector<16x128xf32> to vector<128xf32>
      %19 = vector.shape_cast %18 : vector<128xf32> to vector<1x128xf32>
      %20 = arith.mulf %15, %15 : vector<16x128xf32>
      %cst_17 = arith.constant dense<0.000000e+00> : vector<128xf32>
      %21 = vector.multi_reduction <add>, %20, %cst_17 [0] : vector<16x128xf32> to vector<128xf32>
      %22 = vector.shape_cast %21 : vector<128xf32> to vector<1x128xf32>
      %23 = tpu.concatenate %19, %22 in 0 : vector<1x128xf32>, vector<1x128xf32> -> vector<2x128xf32>
      %c0_18 = arith.constant 0 : index
      %c0_19 = arith.constant 0 : index
      %c0_20 = arith.constant 0 : index
      %24 = vector.load %arg6[%c0_18, %c0_19, %c0_20] : memref<1x2x128xf32, #tpu.memory_space<vmem>>, vector<1x2x128xf32>
      %25 = vector.shape_cast %24 : vector<1x2x128xf32> to vector<2x128xf32>
      %26 = vector.shape_cast %23 : vector<2x128xf32> to vector<1x2x128xf32>
      tpu.vector_store %arg6[%c0_18, %c0_19, %c0_20], %26 {strides = array<i32>} : memref<1x2x128xf32, #tpu.memory_space<vmem>>, vector<1x2x128xf32>,
    } else {
    }
    return
  }
  func.func @transform_0(%arg0: i32, %arg1: i32) -> (i32, i32) {
    %c0_i32 = arith.constant 0 : i32
    return %arg0, %arg1 : i32, i32
  }
  func.func @transform_1(%arg0: i32, %arg1: i32) -> (i32, i32) {
    %c0_i32 = arith.constant 0 : i32
    %c0_i32_0 = arith.constant 0 : i32
    return %arg1, %c0_i32 : i32, i32
  }
  func.func @transform_2(%arg0: i32, %arg1: i32) -> (i32, i32) {
    %c0_i32 = arith.constant 0 : i32
    %c0_i32_0 = arith.constant 0 : i32
    %c0_i32_1 = arith.constant 0 : i32
    return %c0_i32, %c0_i32_0 : i32, i32
  }
  func.func @transform_3(%arg0: i32, %arg1: i32) -> (i32, i32) {
    %c0_i32 = arith.constant 0 : i32
    %c0_i32_0 = arith.constant 0 : i32
    return %arg0, %c0_i32 : i32, i32
  }
  func.func @transform_4(%arg0: i32, %arg1: i32) -> (i32, i32, i32) {
    %c0_i32 = arith.constant 0 : i32
    %c0_i32_0 = arith.constant 0 : i32
    %c0_i32_1 = arith.constant 0 : i32
    return %arg0, %c0_i32, %c0_i32_0 : i32, i32, i32
  }
}

module attributes {stable_mosaic.version = 11 : i64} {
  func.func @_cconv_matmul_kernel(%arg0: i32, %arg1: i32, %arg2: memref<64x288xbf16, #tpu.memory_space<vmem>>, %arg3: memref<288x128xbf16, #tpu.memory_space<vmem>>, %arg4: memref<1x128xf32, #tpu.memory_space<vmem>>, %arg5: memref<64x128xbf16, #tpu.memory_space<vmem>>, %arg6: memref<1x2x128xf32, #tpu.memory_space<vmem>>, %arg7: memref<64x128xf32, #tpu.memory_space<vmem>>) attributes {dimension_semantics = [#tpu.dimension_semantics<parallel>, #tpu.dimension_semantics<arbitrary>], iteration_bounds = array<i64: 2, 1>, scalar_prefetch = 0 : i64, scratch_operands = 1 : i64, tpu.core_type = #tpu.core_type<tc>, window_params = [{transform_indices = @transform_0, window_bounds = array<i64: 64, 288>}, {transform_indices = @transform_1, window_bounds = array<i64: 288, 128>}, {pipeline_mode = #tpu.pipeline_mode<synchronous>, transform_indices = @transform_2, window_bounds = array<i64: 1, 128>}, {transform_indices = @transform_3, window_bounds = array<i64: 64, 128>}, {transform_indices = @transform_4, window_bounds = array<i64: 1, 2, 128>}]} {
    %c0_i32 = arith.constant 0 : i32
    %0 = arith.cmpi eq, %arg1, %c0_i32 : i32
    %1 = arith.extui %0 : i1 to i32
    %c0_i32_0 = arith.constant 0 : i32
    %2 = arith.cmpi ne, %1, %c0_i32_0 : i32
    scf.if %2 {
      %cst_10 = arith.constant 0.000000e+00 : f32
      %12 = vector.broadcast %cst_10 : f32 to vector<64x128xf32>
      %c0_11 = arith.constant 0 : index
      %c0_12 = arith.constant 0 : index
      %13 = vector.load %arg7[%c0_11, %c0_12] : memref<64x128xf32, #tpu.memory_space<vmem>>, vector<64x128xf32>
      tpu.vector_store %arg7[%c0_11, %c0_12], %12 {strides = array<i32>} : memref<64x128xf32, #tpu.memory_space<vmem>>, vector<64x128xf32>,
    } else {
    }
    %c0 = arith.constant 0 : index
    %c0_1 = arith.constant 0 : index
    %3 = vector.load %arg7[%c0, %c0_1] : memref<64x128xf32, #tpu.memory_space<vmem>>, vector<64x128xf32>
    %c0_2 = arith.constant 0 : index
    %c0_3 = arith.constant 0 : index
    %4 = vector.load %arg2[%c0_2, %c0_3] : memref<64x288xbf16, #tpu.memory_space<vmem>>, vector<64x288xbf16>
    %c0_4 = arith.constant 0 : index
    %c0_5 = arith.constant 0 : index
    %5 = vector.load %arg3[%c0_4, %c0_5] : memref<288x128xbf16, #tpu.memory_space<vmem>>, vector<288x128xbf16>
    %cst = arith.constant dense<0.000000e+00> : vector<64x128xf32>
    %6 = tpu.matmul %4, %5, %cst {dimension_numbers = #tpu.dot_dimension_numbers<[1], [0], [0], [1], [0, 0, 1, 1], [], []>} : vector<64x288xbf16>, vector<288x128xbf16>, vector<64x128xf32> -> vector<64x128xf32>
    %7 = arith.addf %3, %6 : vector<64x128xf32>
    %c0_6 = arith.constant 0 : index
    %c0_7 = arith.constant 0 : index
    %8 = vector.load %arg7[%c0_6, %c0_7] : memref<64x128xf32, #tpu.memory_space<vmem>>, vector<64x128xf32>
    tpu.vector_store %arg7[%c0_6, %c0_7], %7 {strides = array<i32>} : memref<64x128xf32, #tpu.memory_space<vmem>>, vector<64x128xf32>,
    %c0_i32_8 = arith.constant 0 : i32
    %9 = arith.cmpi eq, %arg1, %c0_i32_8 : i32
    %10 = arith.extui %9 : i1 to i32
    %c0_i32_9 = arith.constant 0 : i32
    %11 = arith.cmpi ne, %10, %c0_i32_9 : i32
    scf.if %11 {
      %c0_10 = arith.constant 0 : index
      %c0_11 = arith.constant 0 : index
      %12 = vector.load %arg7[%c0_10, %c0_11] : memref<64x128xf32, #tpu.memory_space<vmem>>, vector<64x128xf32>
      %c0_12 = arith.constant 0 : index
      %c0_13 = arith.constant 0 : index
      %13 = vector.load %arg4[%c0_12, %c0_13] : memref<1x128xf32, #tpu.memory_space<vmem>>, vector<1x128xf32>
      %14 = vector.broadcast %13 : vector<1x128xf32> to vector<64x128xf32>
      %15 = arith.addf %12, %14 : vector<64x128xf32>
      %16 = arith.truncf %15 : vector<64x128xf32> to vector<64x128xbf16>
      %c0_14 = arith.constant 0 : index
      %c0_15 = arith.constant 0 : index
      %17 = vector.load %arg5[%c0_14, %c0_15] : memref<64x128xbf16, #tpu.memory_space<vmem>>, vector<64x128xbf16>
      tpu.vector_store %arg5[%c0_14, %c0_15], %16 {strides = array<i32>} : memref<64x128xbf16, #tpu.memory_space<vmem>>, vector<64x128xbf16>,
      %cst_16 = arith.constant dense<0.000000e+00> : vector<128xf32>
      %18 = vector.multi_reduction <add>, %15, %cst_16 [0] : vector<64x128xf32> to vector<128xf32>
      %19 = vector.shape_cast %18 : vector<128xf32> to vector<1x128xf32>
      %20 = arith.mulf %15, %15 : vector<64x128xf32>
      %cst_17 = arith.constant dense<0.000000e+00> : vector<128xf32>
      %21 = vector.multi_reduction <add>, %20, %cst_17 [0] : vector<64x128xf32> to vector<128xf32>
      %22 = vector.shape_cast %21 : vector<128xf32> to vector<1x128xf32>
      %23 = tpu.concatenate %19, %22 in 0 : vector<1x128xf32>, vector<1x128xf32> -> vector<2x128xf32>
      %c0_18 = arith.constant 0 : index
      %c0_19 = arith.constant 0 : index
      %c0_20 = arith.constant 0 : index
      %24 = vector.load %arg6[%c0_18, %c0_19, %c0_20] : memref<1x2x128xf32, #tpu.memory_space<vmem>>, vector<1x2x128xf32>
      %25 = vector.shape_cast %24 : vector<1x2x128xf32> to vector<2x128xf32>
      %26 = vector.shape_cast %23 : vector<2x128xf32> to vector<1x2x128xf32>
      tpu.vector_store %arg6[%c0_18, %c0_19, %c0_20], %26 {strides = array<i32>} : memref<1x2x128xf32, #tpu.memory_space<vmem>>, vector<1x2x128xf32>,
    } else {
    }
    return
  }
  func.func @transform_0(%arg0: i32, %arg1: i32) -> (i32, i32) {
    %c0_i32 = arith.constant 0 : i32
    return %arg0, %arg1 : i32, i32
  }
  func.func @transform_1(%arg0: i32, %arg1: i32) -> (i32, i32) {
    %c0_i32 = arith.constant 0 : i32
    %c0_i32_0 = arith.constant 0 : i32
    return %arg1, %c0_i32 : i32, i32
  }
  func.func @transform_2(%arg0: i32, %arg1: i32) -> (i32, i32) {
    %c0_i32 = arith.constant 0 : i32
    %c0_i32_0 = arith.constant 0 : i32
    %c0_i32_1 = arith.constant 0 : i32
    return %c0_i32, %c0_i32_0 : i32, i32
  }
  func.func @transform_3(%arg0: i32, %arg1: i32) -> (i32, i32) {
    %c0_i32 = arith.constant 0 : i32
    %c0_i32_0 = arith.constant 0 : i32
    return %arg0, %c0_i32 : i32, i32
  }
  func.func @transform_4(%arg0: i32, %arg1: i32) -> (i32, i32, i32) {
    %c0_i32 = arith.constant 0 : i32
    %c0_i32_0 = arith.constant 0 : i32
    %c0_i32_1 = arith.constant 0 : i32
    return %arg0, %c0_i32, %c0_i32_0 : i32, i32, i32
  }
}

module attributes {stable_mosaic.version = 11 : i64} {
  func.func @_cconv_matmul_kernel(%arg0: i32, %arg1: i32, %arg2: memref<256x144xbf16, #tpu.memory_space<vmem>>, %arg3: memref<144x128xbf16, #tpu.memory_space<vmem>>, %arg4: memref<1x128xf32, #tpu.memory_space<vmem>>, %arg5: memref<256x128xf32, #tpu.memory_space<vmem>>, %arg6: memref<256x128xf32, #tpu.memory_space<vmem>>) attributes {dimension_semantics = [#tpu.dimension_semantics<parallel>, #tpu.dimension_semantics<arbitrary>], iteration_bounds = array<i64: 2, 1>, scalar_prefetch = 0 : i64, scratch_operands = 1 : i64, tpu.core_type = #tpu.core_type<tc>, window_params = [{transform_indices = @transform_0, window_bounds = array<i64: 256, 144>}, {transform_indices = @transform_1, window_bounds = array<i64: 144, 128>}, {pipeline_mode = #tpu.pipeline_mode<synchronous>, transform_indices = @transform_2, window_bounds = array<i64: 1, 128>}, {transform_indices = @transform_3, window_bounds = array<i64: 256, 128>}]} {
    %c0_i32 = arith.constant 0 : i32
    %0 = arith.cmpi eq, %arg1, %c0_i32 : i32
    %1 = arith.extui %0 : i1 to i32
    %c0_i32_0 = arith.constant 0 : i32
    %2 = arith.cmpi ne, %1, %c0_i32_0 : i32
    scf.if %2 {
      %cst_10 = arith.constant 0.000000e+00 : f32
      %12 = vector.broadcast %cst_10 : f32 to vector<256x128xf32>
      %c0_11 = arith.constant 0 : index
      %c0_12 = arith.constant 0 : index
      %13 = vector.load %arg6[%c0_11, %c0_12] : memref<256x128xf32, #tpu.memory_space<vmem>>, vector<256x128xf32>
      tpu.vector_store %arg6[%c0_11, %c0_12], %12 {strides = array<i32>} : memref<256x128xf32, #tpu.memory_space<vmem>>, vector<256x128xf32>,
    } else {
    }
    %c0 = arith.constant 0 : index
    %c0_1 = arith.constant 0 : index
    %3 = vector.load %arg6[%c0, %c0_1] : memref<256x128xf32, #tpu.memory_space<vmem>>, vector<256x128xf32>
    %c0_2 = arith.constant 0 : index
    %c0_3 = arith.constant 0 : index
    %4 = vector.load %arg2[%c0_2, %c0_3] : memref<256x144xbf16, #tpu.memory_space<vmem>>, vector<256x144xbf16>
    %c0_4 = arith.constant 0 : index
    %c0_5 = arith.constant 0 : index
    %5 = vector.load %arg3[%c0_4, %c0_5] : memref<144x128xbf16, #tpu.memory_space<vmem>>, vector<144x128xbf16>
    %cst = arith.constant dense<0.000000e+00> : vector<256x128xf32>
    %6 = tpu.matmul %4, %5, %cst {dimension_numbers = #tpu.dot_dimension_numbers<[1], [0], [0], [1], [0, 0, 1, 1], [], []>} : vector<256x144xbf16>, vector<144x128xbf16>, vector<256x128xf32> -> vector<256x128xf32>
    %7 = arith.addf %3, %6 : vector<256x128xf32>
    %c0_6 = arith.constant 0 : index
    %c0_7 = arith.constant 0 : index
    %8 = vector.load %arg6[%c0_6, %c0_7] : memref<256x128xf32, #tpu.memory_space<vmem>>, vector<256x128xf32>
    tpu.vector_store %arg6[%c0_6, %c0_7], %7 {strides = array<i32>} : memref<256x128xf32, #tpu.memory_space<vmem>>, vector<256x128xf32>,
    %c0_i32_8 = arith.constant 0 : i32
    %9 = arith.cmpi eq, %arg1, %c0_i32_8 : i32
    %10 = arith.extui %9 : i1 to i32
    %c0_i32_9 = arith.constant 0 : i32
    %11 = arith.cmpi ne, %10, %c0_i32_9 : i32
    scf.if %11 {
      %c0_10 = arith.constant 0 : index
      %c0_11 = arith.constant 0 : index
      %12 = vector.load %arg6[%c0_10, %c0_11] : memref<256x128xf32, #tpu.memory_space<vmem>>, vector<256x128xf32>
      %c0_12 = arith.constant 0 : index
      %c0_13 = arith.constant 0 : index
      %13 = vector.load %arg4[%c0_12, %c0_13] : memref<1x128xf32, #tpu.memory_space<vmem>>, vector<1x128xf32>
      %14 = vector.broadcast %13 : vector<1x128xf32> to vector<256x128xf32>
      %15 = arith.addf %12, %14 : vector<256x128xf32>
      %16 = math.tanh %15 : vector<256x128xf32>
      %c0_14 = arith.constant 0 : index
      %c0_15 = arith.constant 0 : index
      %17 = vector.load %arg5[%c0_14, %c0_15] : memref<256x128xf32, #tpu.memory_space<vmem>>, vector<256x128xf32>
      tpu.vector_store %arg5[%c0_14, %c0_15], %16 {strides = array<i32>} : memref<256x128xf32, #tpu.memory_space<vmem>>, vector<256x128xf32>,
    } else {
    }
    return
  }
  func.func @transform_0(%arg0: i32, %arg1: i32) -> (i32, i32) {
    %c0_i32 = arith.constant 0 : i32
    return %arg0, %arg1 : i32, i32
  }
  func.func @transform_1(%arg0: i32, %arg1: i32) -> (i32, i32) {
    %c0_i32 = arith.constant 0 : i32
    %c0_i32_0 = arith.constant 0 : i32
    return %arg1, %c0_i32 : i32, i32
  }
  func.func @transform_2(%arg0: i32, %arg1: i32) -> (i32, i32) {
    %c0_i32 = arith.constant 0 : i32
    %c0_i32_0 = arith.constant 0 : i32
    %c0_i32_1 = arith.constant 0 : i32
    return %c0_i32, %c0_i32_0 : i32, i32
  }
  func.func @transform_3(%arg0: i32, %arg1: i32) -> (i32, i32) {
    %c0_i32 = arith.constant 0 : i32
    %c0_i32_0 = arith.constant 0 : i32
    return %arg0, %c0_i32 : i32, i32
  }
}

</mosaic_0001>

<llo_original>
// kernel: tile.33
$region0: #{tile.33}
  #allocation0 [shape = 's32[1]{0}', space=sflag, size = 0x4, scoped, tag = 'scoped memory for tile.33']
  %s0 = inlined_call_operand.vmem [shape: f32[16], index: 0, kind: input, shape index: {}]
  %s1 = inlined_call_operand.vmem [shape: f32[4,16], index: 1, kind: output, shape index: {}]
  // Predicated region
  $region2: #{tile.33} parent=0 // pred_check
    _
  $region3: #{tile.33} parent=0 // pred_check_branch
    %3 = sbr.rel (0) target = $region5
  $region4: #{tile.33} parent=0 // pred_region
    _
  $region5: #{tile.33} parent=0 // pred_fallthru
    _
  %v4 = vld [vmem:[%s0] ss:$0 sm:$0xff]
  %5 = vst [vmem:[%s1] sm:$0xf] %v4

// kernel: tile.34
$region0: #{tile.34}
  %s0 = inlined_call_operand.vmem [shape: f32[4,16], index: 0, kind: input, shape index: {}]
  %s1 = inlined_call_operand.vmem [shape: f32[64], index: 1, kind: output, shape index: {}]
  $region1: #{tile.34} parent=0
    #allocation0 [shape = 'u8[4096]{0}', space=vmem, size = 0x1000, scoped, tag = 'scoped mem for output reshape']
    #allocation1 [shape = 'u8[4096]{0}', space=vmem, size = 0x1000, scoped, tag = 'scoped mem for input reshape']
    %s3 = sshllo.u32 0, 4
    %v4 = vld [vmem:[%s0] sm:%s3]
    %5 = vst [vmem:[#allocation1] sm:%s3] %v4
    %v6 = vld [vmem:[#allocation1] sm:$0x1]
    %vm7 = vcmask 130048
    %8 = vst.msk [vmem:[#allocation0] sm:$0x1] %vm7, %v6
    %s9 = scalar_lea.vmem [#allocation1], 3
    %v10 = vld [vmem:[%s9] sm:$0x1]
    %11 = vrot.lane.b32.xlu0 %v10, 48
    %v12 = vpop.permute.xlu0 %11
    %vm13 = vcmask 523648
    %14 = vst.msk [vmem:[#allocation0] sm:$0x1] %vm13, %v12
    %s15 = scalar_lea.vmem [#allocation1], 2
    %v16 = vld [vmem:[%s15] sm:$0x1]
    %17 = vrot.lane.b32.xlu0 %v16, 32
    %v18 = vpop.permute.xlu0 %17
    %vm19 = vcmask 392448
    %20 = vst.msk [vmem:[#allocation0] sm:$0x1] %vm19, %v18
    %s21 = scalar_lea.vmem [#allocation1], 1
    %v22 = vld [vmem:[%s21] sm:$0x1]
    %23 = vrot.lane.b32.xlu0 %v22, 16
    %v24 = vpop.permute.xlu0 %23
    %vm25 = vcmask 261248
    %26 = vst.msk [vmem:[#allocation0] sm:$0x1] %vm25, %v24
    %s28 = sshllo.u32 0, 1
    %v30 = vld [vmem:[#allocation0] sm:%s28]
    %s31 = sshllo.u32 0, 1
    %32 = vst [vmem:[%s1] sm:%s31] %v30

// kernel: generator_forward.4
$region0: #{generator_forward.4}
  #allocation0 [shape = 'u32[]', space=smem, size = 0x4, offset = 0x4, fixed_abs, tag = 'smem constant byte address 0x4 - core index']
  #allocation1 [shape = 'u32[144,128]{1,0:T(1,128)}', space=vmem, size = 0x12000, scoped, tag = 'internal scratch']
  #allocation2 [shape = 'f32[16,128]{1,0:T(8,128)}', space=vmem, size = 0x2000, scoped, tag = 'scratch operand']
  %s0 = inlined_call_operand.vmem [shape: bf16[32,640], index: 0, kind: input, shape index: {}]
  %s1 = inlined_call_operand.vmem [shape: bf16[640,128], index: 1, kind: input, shape index: {}]
  %s2 = inlined_call_operand.vmem [shape: f32[1,128], index: 2, kind: input, shape index: {}]
  %s3 = inlined_call_operand.vmem [shape: bf16[32,128], index: 3, kind: output, shape index: {0}]
  %s4 = inlined_call_operand.vmem [shape: f32[2,2,128], index: 4, kind: output, shape index: {1}]
  %5 = xla_tuple %s3, %s4
  %s6 = sld [smem:[#allocation0]]
  $region61: #{generator_forward.4} parent=0
    _
  %s8 = ssub.s32 1, %s6
  %s9 = scalar_select 0, %s8, %s6
  loop: start=0, step=1, limit=4
  $region2: #{generator_forward.4} parent=0 // loop_pre_header
    _
  $region3: #{generator_forward.4} parent=0 // loop_header
    %s11 = sphi 0, %s15
    %p12 = scmp.ge.s32.totalorder %s11, 4
    %s18 = sphi 0, %s30
    %s19 = sphi 0, %s26
    %s20 = sphi 0, %s18
    %s21 = sphi 0, %s19
    %s22 = sphi 0, %s20
    %s23 = sphi 0, %s21
    %s35 = sphi 0, %s37
    %s38 = sphi 0, %s35
    %s39 = sphi 0, %s38
    %s55 = sphi 0, %s39
    %s61 = sphi 0, %s63
    %s64 = sphi 0, %s61
    %s65 = sphi 0, %s64
    %s81 = sphi 0, %s65
    %s85 = sphi 0, %s85
    %s87 = sphi 0, %s85
    %s88 = sphi 0, %s87
    %s102 = sphi 0, %s88
    %s108 = sphi 0, %s110
    %s111 = sphi 0, %s108
    %s112 = sphi 0, %s111
    %s128 = sphi 0, %s112
    %s134 = sphi 0, %s136
    %s137 = sphi 0, %s134
    %s138 = sphi 0, %s137
    %s154 = sphi 0, %s138
  $region4: #{generator_forward.4} parent=0 // loop_header_branch
    %14 = sbr.rel (%p12) target = $region8
  $region5: #{generator_forward.4} parent=0 // loop_body
    %s16 = ssub.s32 %s11, 1
    %s17 = ssub.s32 %s11, 2
    %s24 = sadd.s32 1, %s19
    %p25 = scmp.ge.s32.totalorder %s24, 1
    %s26 = scalar_select %p25, 0, %s24
    %s27 = sadd.s32 1, %s18
    %s28 = scalar_select %p25, %s27, %s18
    %p29 = scmp.ge.s32.totalorder %s28, 2
    %s30 = scalar_select %p29, 0, %s28
    %s31 = ssub.s32 %s18, %s30
    %s32 = ssub.s32 %s19, %s26
    %s33 = sor.u32 %s31, %s32
    %p34 = scmp.eq.s32.totalorder %s33, 0
    %s36 = sadd.s32 %s35, 1
    %s37 = scalar_select %p34, %s35, %s36
    %p40 = pneg %p34
    %p41 = scmp.eq.s32.totalorder %s11, 1
    %p42 = por %p40, %p41
    %p43 = scmp.ne.s32.totalorder %s35, %s38
    %p44 = scmp.eq.s32.totalorder %s11, 0
    %p45 = por %p43, %p44
    %p46 = scmp.ne.s32.totalorder %s35, %s38
    %p47 = scmp.eq.s32.totalorder %s16, 1
    %p48 = por %p46, %p47
    %p49 = scmp.ne.s32.totalorder %s38, %s39
    %p50 = scmp.eq.s32.totalorder %s16, 0
    %p51 = por %p49, %p50
    %p52 = scmp.ne.s32.totalorder %s38, %s39
    %p53 = scmp.eq.s32.totalorder %s17, 1
    %p54 = por %p52, %p53
    %p56 = scmp.ne.s32.totalorder %s39, %s55
    %p57 = scmp.eq.s32.totalorder %s17, 0
    %p58 = por %p56, %p57
    %s59 = ssub.s32 %s19, %s26
    %p60 = scmp.eq.s32.totalorder %s59, 0
    %s62 = sadd.s32 %s61, 1
    %s63 = scalar_select %p60, %s61, %s62
    %p66 = pneg %p60
    %p67 = scmp.eq.s32.totalorder %s11, 1
    %p68 = por %p66, %p67
    %p69 = scmp.ne.s32.totalorder %s61, %s64
    %p70 = scmp.eq.s32.totalorder %s11, 0
    %p71 = por %p69, %p70
    %p72 = scmp.ne.s32.totalorder %s61, %s64
    %p73 = scmp.eq.s32.totalorder %s16, 1
    %p74 = por %p72, %p73
    %p75 = scmp.ne.s32.totalorder %s64, %s65
    %p76 = scmp.eq.s32.totalorder %s16, 0
    %p77 = por %p75, %p76
    %p78 = scmp.ne.s32.totalorder %s64, %s65
    %p79 = scmp.eq.s32.totalorder %s17, 1
    %p80 = por %p78, %p79
    %p82 = scmp.ne.s32.totalorder %s65, %s81
    %p83 = scmp.eq.s32.totalorder %s17, 0
    %p84 = por %p82, %p83
    %s86 = sadd.s32 %s85, 1
    %p89 = scmp.eq.s32.totalorder %s11, 1
    %p90 = scmp.ne.s32.totalorder %s85, %s87
    %p91 = scmp.eq.s32.totalorder %s11, 0
    %p92 = por %p90, %p91
    %p93 = scmp.ne.s32.totalorder %s85, %s87
    %p94 = scmp.eq.s32.totalorder %s16, 1
    %p95 = por %p93, %p94
    %p96 = scmp.ne.s32.totalorder %s87, %s88
    %p97 = scmp.eq.s32.totalorder %s16, 0
    %p98 = por %p96, %p97
    %p99 = scmp.ne.s32.totalorder %s87, %s88
    %p100 = scmp.eq.s32.totalorder %s17, 1
    %p101 = por %p99, %p100
    %p103 = scmp.ne.s32.totalorder %s88, %s102
    %p104 = scmp.eq.s32.totalorder %s17, 0
    %p105 = por %p103, %p104
    %s106 = ssub.s32 %s18, %s30
    %p107 = scmp.eq.s32.totalorder %s106, 0
    %s109 = sadd.s32 %s108, 1
    %s110 = scalar_select %p107, %s108, %s109
    %p113 = pneg %p107
    %p114 = scmp.eq.s32.totalorder %s11, 1
    %p115 = por %p113, %p114
    %p116 = scmp.ne.s32.totalorder %s108, %s111
    %p117 = scmp.eq.s32.totalorder %s11, 0
    %p118 = por %p116, %p117
    %p119 = scmp.ne.s32.totalorder %s108, %s111
    %p120 = scmp.eq.s32.totalorder %s16, 1
    %p121 = por %p119, %p120
    %p122 = scmp.ne.s32.totalorder %s111, %s112
    %p123 = scmp.eq.s32.totalorder %s16, 0
    %p124 = por %p122, %p123
    %p125 = scmp.ne.s32.totalorder %s111, %s112
    %p126 = scmp.eq.s32.totalorder %s17, 1
    %p127 = por %p125, %p126
    %p129 = scmp.ne.s32.totalorder %s112, %s128
    %p130 = scmp.eq.s32.totalorder %s17, 0
    %p131 = por %p129, %p130
    %s132 = ssub.s32 %s18, %s30
    %p133 = scmp.eq.s32.totalorder %s132, 0
    %s135 = sadd.s32 %s134, 1
    %s136 = scalar_select %p133, %s134, %s135
    %p139 = pneg %p133
    %p140 = scmp.eq.s32.totalorder %s11, 1
    %p141 = por %p139, %p140
    %p142 = scmp.ne.s32.totalorder %s134, %s137
    %p143 = scmp.eq.s32.totalorder %s11, 0
    %p144 = por %p142, %p143
    %p145 = scmp.ne.s32.totalorder %s134, %s137
    %p146 = scmp.eq.s32.totalorder %s16, 1
    %p147 = por %p145, %p146
    %p148 = scmp.ne.s32.totalorder %s137, %s138
    %p149 = scmp.eq.s32.totalorder %s16, 0
    %p150 = por %p148, %p149
    %p151 = scmp.ne.s32.totalorder %s137, %s138
    %p152 = scmp.eq.s32.totalorder %s17, 1
    %p153 = por %p151, %p152
    %p155 = scmp.ne.s32.totalorder %s138, %s154
    %p156 = scmp.eq.s32.totalorder %s17, 0
    %p157 = por %p155, %p156
    %p158 = scmp.le.s32.totalorder 1, %s11
    %p159 = scmp.lt.s32.totalorder %s11, 3
    %p160 = pnand %p158, %p159
    %p161 = pneg %p160
    // Predicated region
    $region9: #{generator_forward.4} parent=5 // pred_check
      _
    $region10: #{generator_forward.4} parent=5 // pred_check_branch
      %163 = sbr.rel (%p160) target = $region12
    $region11: #{generator_forward.4} parent=5 // pred_region
      %s164 = ssub.s32 %s11, 1
      // Predicated region
      $region13: #{generator_forward.4} parent=11 // pred_check
        %p165 = pneg %p77
      $region14: #{generator_forward.4} parent=11 // pred_check_branch
        %167 = sbr.rel (%p165) target = $region16
      $region15: #{generator_forward.4} parent=11 // pred_region
        %s168 = smul.u32 80, %s21
        %p169 = scmp.lt.s32.totalorder %s168, 79
        %s170 = scalar_select %p169, %s168, 79
        %s171 = smul.addr %s170, 4
        %s172 = scalar_lea.vmem %s1, %s171
        %s173 = smul.u32 80, %s21
      $region16: #{generator_forward.4} parent=11 // pred_fallthru
        _
      // Predicated region
      $region17: #{generator_forward.4} parent=11 // pred_check
        %p174 = pneg %p98
      $region18: #{generator_forward.4} parent=11 // pred_check_branch
        %176 = sbr.rel (%p174) target = $region20
      $region19: #{generator_forward.4} parent=11 // pred_region
        _
      $region20: #{generator_forward.4} parent=11 // pred_fallthru
        _
    $region12: #{generator_forward.4} parent=5 // pred_fallthru
      _
    %p177 = scmp.lt.s32.totalorder %s11, 2
    // Predicated region
    $region21: #{generator_forward.4} parent=5 // pred_check
      %p178 = pneg %p177
    $region22: #{generator_forward.4} parent=5 // pred_check_branch
      %180 = sbr.rel (%p178) target = $region24
    $region23: #{generator_forward.4} parent=5 // pred_region
      // Predicated region
      $region25: #{generator_forward.4} parent=23 // pred_check
        %p181 = pneg %p45
      $region26: #{generator_forward.4} parent=23 // pred_check_branch
        %183 = sbr.rel (%p181) target = $region28
      $region27: #{generator_forward.4} parent=23 // pred_region
        %s184 = smul.u32 2, %s18
        %s185 = smul.u32 5, %s19
        %p186 = scmp.lt.s32.totalorder %s184, 3
        %s187 = scalar_select %p186, %s184, 3
        %p188 = scmp.lt.s32.totalorder %s185, 4
        %s189 = scalar_select %p188, %s185, 4
        %s190 = smul.addr %s187, 5
        %s191 = sadd.s32 %s189, %s190
        %s192 = smul.addr %s191, 4
        %s193 = scalar_lea.vmem %s0, %s192
        %s194 = smul.u32 2, %s18
        %s195 = smul.u32 5, %s19
      $region28: #{generator_forward.4} parent=23 // pred_fallthru
        _
    $region24: #{generator_forward.4} parent=5 // pred_fallthru
      _
    %p196 = scmp.le.s32.totalorder 1, %s11
    %p197 = scmp.lt.s32.totalorder %s11, 3
    %p198 = pnand %p196, %p197
    %p199 = pneg %p198
    // Predicated region
    $region29: #{generator_forward.4} parent=5 // pred_check
      _
    $region30: #{generator_forward.4} parent=5 // pred_check_branch
      %201 = sbr.rel (%p198) target = $region32
    $region31: #{generator_forward.4} parent=5 // pred_region
      %s202 = ssub.s32 %s11, 1
      %s203 = smul.u32 2, %s20
      %s204 = smul.u32 5, %s21
      %p205 = scmp.lt.s32.totalorder %s203, 3
      %s206 = scalar_select %p205, %s203, 3
      %p207 = scmp.lt.s32.totalorder %s204, 4
      %s208 = scalar_select %p207, %s204, 4
      %s209 = smul.addr %s206, 5
      %s210 = sadd.s32 %s208, %s209
      %s211 = smul.addr %s210, 4
      %s212 = scalar_lea.vmem %s0, %s211
      %p213 = pneg %p51
      %p214 = pneg %p48
      %s215 = smul.u32 80, %s21
      %p216 = scmp.lt.s32.totalorder %s215, 79
      %s217 = scalar_select %p216, %s215, 79
      %s218 = smul.addr %s217, 4
      %s219 = scalar_lea.vmem %s1, %s218
      %p220 = pneg %p77
      %p221 = pneg %p74
      %p222 = pneg %p98
      %p223 = pneg %p95
      %p224 = pneg %p124
      %p225 = pneg %p121
      %s226 = smul.u32 2, %s20
      %p227 = scmp.lt.s32.totalorder %s226, 3
      %s228 = scalar_select %p227, %s226, 3
      %s229 = smul.addr %s228, 4
      %s230 = scalar_lea.vmem %s3, %s229
      %p231 = pneg %p150
      %p232 = pneg %p147
      %p233 = scmp.lt.s32.totalorder %s20, 1
      %s234 = scalar_select %p233, %s20, 1
      %s235 = smul.addr %s234, 2
      %s236 = scalar_lea.vmem %s4, %s235
      %s237 = smul.u32 2, %s20
      %s238 = smul.u32 5, %s21
      %p239 = scmp.lt.s32.totalorder %s237, 3
      %s240 = scalar_select %p239, %s237, 3
      %p241 = scmp.lt.s32.totalorder %s238, 4
      %s242 = scalar_select %p241, %s238, 4
      %s243 = smul.addr %s240, 5
      %s244 = sadd.s32 %s242, %s243
      %s245 = smul.addr %s244, 4
      %s246 = scalar_lea.vmem %s0, %s245
      %s247 = smul.u32 2, %s20
      %s248 = smul.u32 5, %s21
      %s249 = smul.u32 80, %s21
      %p250 = scmp.lt.s32.totalorder %s249, 79
      %s251 = scalar_select %p250, %s249, 79
      %s252 = smul.addr %s251, 4
      %s253 = scalar_lea.vmem %s1, %s252
      %s254 = smul.u32 80, %s21
      %s255 = smul.u32 2, %s20
      %p256 = scmp.lt.s32.totalorder %s255, 3
      %s257 = scalar_select %p256, %s255, 3
      %s258 = smul.addr %s257, 4
      %s259 = scalar_lea.vmem %s3, %s258
      %s260 = smul.u32 2, %s20
      %p261 = scmp.lt.s32.totalorder %s20, 1
      %s262 = scalar_select %p261, %s20, 1
      %s263 = smul.addr %s262, 2
      %s264 = scalar_lea.vmem %s4, %s263
      %p266 = scmp.eq.s32.totalorder %s21, 0
      // Predicated region
      $region33: #{generator_forward.4} parent=31 // pred_check
        %p267 = pneg %p266
      $region34: #{generator_forward.4} parent=31 // pred_check_branch
        %269 = sbr.rel (%p267) target = $region36
      $region35: #{generator_forward.4} parent=31 // pred_region
        %270 = vst [vmem:[#allocation2] sm:$0xff] 0.0
        %271 = vst [vmem:[#allocation2 + $0x8] sm:$0xff] 0.0
      $region36: #{generator_forward.4} parent=31 // pred_fallthru
        _
      %v272 = vld [vmem:[#allocation2] sm:$0xff]
      %v273 = vld [vmem:[#allocation2 + $0x8] sm:$0xff]
      %v274 = vld [vmem:[%s246] sm:$0xff]
      %v275 = vld [vmem:[%s246 + $0x8] sm:$0xff]
      %v276 = vld [vmem:[%s246 + $0x10] sm:$0xf]
      %v277 = vld [vmem:[%s246 + $0x14] sm:$0xff]
      %v278 = vld [vmem:[%s246 + $0x1c] sm:$0xff]
      %v279 = vld [vmem:[%s246 + $0x24] sm:$0xf]
      %v280 = vld [vmem:[%s253] sm:$0xf]
      %v281 = vld [vmem:[%s253 + $0x4] sm:$0xf]
      %v282 = vld [vmem:[%s253 + $0x8] sm:$0xf]
      %v283 = vld [vmem:[%s253 + $0xc] sm:$0xf]
      %v284 = vld [vmem:[%s253 + $0x10] sm:$0xf]
      %v285 = vld [vmem:[%s253 + $0x14] sm:$0xf]
      %v286 = vld [vmem:[%s253 + $0x18] sm:$0xf]
      %v287 = vld [vmem:[%s253 + $0x1c] sm:$0xf]
      %v288 = vld [vmem:[%s253 + $0x20] sm:$0xf]
      %v289 = vld [vmem:[%s253 + $0x24] sm:$0xf]
      %v290 = vld [vmem:[%s253 + $0x28] sm:$0xf]
      %v291 = vld [vmem:[%s253 + $0x2c] sm:$0xf]
      %v292 = vld [vmem:[%s253 + $0x30] sm:$0xf]
      %v293 = vld [vmem:[%s253 + $0x34] sm:$0xf]
      %v294 = vld [vmem:[%s253 + $0x38] sm:$0xf]
      %v295 = vld [vmem:[%s253 + $0x3c] sm:$0xf]
      %v296 = vld [vmem:[%s253 + $0x40] sm:$0xf]
      %v297 = vld [vmem:[%s253 + $0x44] sm:$0xf]
      %v298 = vld [vmem:[%s253 + $0x48] sm:$0xf]
      %v299 = vld [vmem:[%s253 + $0x4c] sm:$0xf]
      %v300 = vld [vmem:[%s253 + $0x50] sm:$0xf]
      %v301 = vld [vmem:[%s253 + $0x54] sm:$0xf]
      %v302 = vld [vmem:[%s253 + $0x58] sm:$0xf]
      %v303 = vld [vmem:[%s253 + $0x5c] sm:$0xf]
      %v304 = vld [vmem:[%s253 + $0x60] sm:$0xf]
      %v305 = vld [vmem:[%s253 + $0x64] sm:$0xf]
      %v306 = vld [vmem:[%s253 + $0x68] sm:$0xf]
      %v307 = vld [vmem:[%s253 + $0x6c] sm:$0xf]
      %v308 = vld [vmem:[%s253 + $0x70] sm:$0xf]
      %v309 = vld [vmem:[%s253 + $0x74] sm:$0xf]
      %v310 = vld [vmem:[%s253 + $0x78] sm:$0xf]
      %v311 = vld [vmem:[%s253 + $0x7c] sm:$0xf]
      %v312 = vld [vmem:[%s253 + $0x80] sm:$0xf]
      %v313 = vld [vmem:[%s253 + $0x84] sm:$0xf]
      %v314 = vld [vmem:[%s253 + $0x88] sm:$0xf]
      %v315 = vld [vmem:[%s253 + $0x8c] sm:$0xf]
      %v316 = vld [vmem:[%s253 + $0x90] sm:$0xf]
      %v317 = vld [vmem:[%s253 + $0x94] sm:$0xf]
      %v318 = vld [vmem:[%s253 + $0x98] sm:$0xf]
      %v319 = vld [vmem:[%s253 + $0x9c] sm:$0xf]
      %v320 = vld [vmem:[%s253 + $0xa0] sm:$0xf]
      %v321 = vld [vmem:[%s253 + $0xa4] sm:$0xf]
      %v322 = vld [vmem:[%s253 + $0xa8] sm:$0xf]
      %v323 = vld [vmem:[%s253 + $0xac] sm:$0xf]
      %v324 = vld [vmem:[%s253 + $0xb0] sm:$0xf]
      %v325 = vld [vmem:[%s253 + $0xb4] sm:$0xf]
      %v326 = vld [vmem:[%s253 + $0xb8] sm:$0xf]
      %v327 = vld [vmem:[%s253 + $0xbc] sm:$0xf]
      %v328 = vld [vmem:[%s253 + $0xc0] sm:$0xf]
      %v329 = vld [vmem:[%s253 + $0xc4] sm:$0xf]
      %v330 = vld [vmem:[%s253 + $0xc8] sm:$0xf]
      %v331 = vld [vmem:[%s253 + $0xcc] sm:$0xf]
      %v332 = vld [vmem:[%s253 + $0xd0] sm:$0xf]
      %v333 = vld [vmem:[%s253 + $0xd4] sm:$0xf]
      %v334 = vld [vmem:[%s253 + $0xd8] sm:$0xf]
      %v335 = vld [vmem:[%s253 + $0xdc] sm:$0xf]
      %v336 = vld [vmem:[%s253 + $0xe0] sm:$0xf]
      %v337 = vld [vmem:[%s253 + $0xe4] sm:$0xf]
      %v338 = vld [vmem:[%s253 + $0xe8] sm:$0xf]
      %v339 = vld [vmem:[%s253 + $0xec] sm:$0xf]
      %v340 = vld [vmem:[%s253 + $0xf0] sm:$0xf]
      %v341 = vld [vmem:[%s253 + $0xf4] sm:$0xf]
      %v342 = vld [vmem:[%s253 + $0xf8] sm:$0xf]
      %v343 = vld [vmem:[%s253 + $0xfc] sm:$0xf]
      %v344 = vld [vmem:[%s253 + $0x100] sm:$0xf]
      %v345 = vld [vmem:[%s253 + $0x104] sm:$0xf]
      %v346 = vld [vmem:[%s253 + $0x108] sm:$0xf]
      %v347 = vld [vmem:[%s253 + $0x10c] sm:$0xf]
      %v348 = vld [vmem:[%s253 + $0x110] sm:$0xf]
      %v349 = vld [vmem:[%s253 + $0x114] sm:$0xf]
      %v350 = vld [vmem:[%s253 + $0x118] sm:$0xf]
      %v351 = vld [vmem:[%s253 + $0x11c] sm:$0xf]
      %v352 = vld [vmem:[%s253 + $0x120] sm:$0xf]
      %v353 = vld [vmem:[%s253 + $0x124] sm:$0xf]
      %v354 = vld [vmem:[%s253 + $0x128] sm:$0xf]
      %v355 = vld [vmem:[%s253 + $0x12c] sm:$0xf]
      %v356 = vld [vmem:[%s253 + $0x130] sm:$0xf]
      %v357 = vld [vmem:[%s253 + $0x134] sm:$0xf]
      %v358 = vld [vmem:[%s253 + $0x138] sm:$0xf]
      %v359 = vld [vmem:[%s253 + $0x13c] sm:$0xf]
      %v366 = vunpack.c.l.b16 %v274
      %v367 = vunpack.c.h.b16 %v274
      %v368 = vunpack.c.l.b16 %v275
      %v369 = vunpack.c.h.b16 %v275
      %v370 = vunpack.c.l.b16 %v276
      %v371 = vunpack.c.l.b16 %v277
      %v372 = vunpack.c.h.b16 %v277
      %v373 = vunpack.c.l.b16 %v278
      %v374 = vunpack.c.h.b16 %v278
      %v375 = vunpack.c.l.b16 %v279
      %v376 = vpack.c.b16 %v371, %v366
      %v377 = vpack.c.b16 %v372, %v367
      %v378 = vpack.c.b16 %v373, %v368
      %v379 = vpack.c.b16 %v374, %v369
      %v380 = vpack.c.b16 %v375, %v370
      %v466 = vunpack.c.l.b16 %v280
      %v467 = vunpack.c.l.b16 %v281
      %v468 = vunpack.c.l.b16 %v282
      %v469 = vunpack.c.l.b16 %v283
      %v470 = vunpack.c.l.b16 %v284
      %v471 = vunpack.c.l.b16 %v285
      %v472 = vunpack.c.l.b16 %v286
      %v473 = vunpack.c.l.b16 %v287
      %v474 = vunpack.c.l.b16 %v288
      %v475 = vunpack.c.l.b16 %v289
      %v476 = vunpack.c.l.b16 %v290
      %v477 = vunpack.c.l.b16 %v291
      %v478 = vunpack.c.l.b16 %v292
      %v479 = vunpack.c.l.b16 %v293
      %v480 = vunpack.c.l.b16 %v294
      %v481 = vunpack.c.l.b16 %v295
      %v482 = vunpack.c.l.b16 %v296
      %v483 = vunpack.c.l.b16 %v297
      %v484 = vunpack.c.l.b16 %v298
      %v485 = vunpack.c.l.b16 %v299
      %v486 = vunpack.c.l.b16 %v300
      %v487 = vunpack.c.l.b16 %v301
      %v488 = vunpack.c.l.b16 %v302
      %v489 = vunpack.c.l.b16 %v303
      %v490 = vunpack.c.l.b16 %v304
      %v491 = vunpack.c.l.b16 %v305
      %v492 = vunpack.c.l.b16 %v306
      %v493 = vunpack.c.l.b16 %v307
      %v494 = vunpack.c.l.b16 %v308
      %v495 = vunpack.c.l.b16 %v309
      %v496 = vunpack.c.l.b16 %v310
      %v497 = vunpack.c.l.b16 %v311
      %v498 = vunpack.c.l.b16 %v312
      %v499 = vunpack.c.l.b16 %v313
      %v500 = vunpack.c.l.b16 %v314
      %v501 = vunpack.c.l.b16 %v315
      %v502 = vunpack.c.l.b16 %v316
      %v503 = vunpack.c.l.b16 %v317
      %v504 = vunpack.c.l.b16 %v318
      %v505 = vunpack.c.l.b16 %v319
      %v506 = vunpack.c.l.b16 %v320
      %v507 = vunpack.c.l.b16 %v321
      %v508 = vunpack.c.l.b16 %v322
      %v509 = vunpack.c.l.b16 %v323
      %v510 = vunpack.c.l.b16 %v324
      %v511 = vunpack.c.l.b16 %v325
      %v512 = vunpack.c.l.b16 %v326
      %v513 = vunpack.c.l.b16 %v327
      %v514 = vunpack.c.l.b16 %v328
      %v515 = vunpack.c.l.b16 %v329
      %v516 = vunpack.c.l.b16 %v330
      %v517 = vunpack.c.l.b16 %v331
      %v518 = vunpack.c.l.b16 %v332
      %v519 = vunpack.c.l.b16 %v333
      %v520 = vunpack.c.l.b16 %v334
      %v521 = vunpack.c.l.b16 %v335
      %v522 = vunpack.c.l.b16 %v336
      %v523 = vunpack.c.l.b16 %v337
      %v524 = vunpack.c.l.b16 %v338
      %v525 = vunpack.c.l.b16 %v339
      %v526 = vunpack.c.l.b16 %v340
      %v527 = vunpack.c.l.b16 %v341
      %v528 = vunpack.c.l.b16 %v342
      %v529 = vunpack.c.l.b16 %v343
      %v530 = vunpack.c.l.b16 %v344
      %v531 = vunpack.c.l.b16 %v345
      %v532 = vunpack.c.l.b16 %v346
      %v533 = vunpack.c.l.b16 %v347
      %v534 = vunpack.c.l.b16 %v348
      %v535 = vunpack.c.l.b16 %v349
      %v536 = vunpack.c.l.b16 %v350
      %v537 = vunpack.c.l.b16 %v351
      %v538 = vunpack.c.l.b16 %v352
      %v539 = vunpack.c.l.b16 %v353
      %v540 = vunpack.c.l.b16 %v354
      %v541 = vunpack.c.l.b16 %v355
      %v542 = vunpack.c.l.b16 %v356
      %v543 = vunpack.c.l.b16 %v357
      %v544 = vunpack.c.l.b16 %v358
      %v545 = vunpack.c.l.b16 %v359
      %v546 = vpack.c.b16 %v467, %v466
      %v547 = vpack.c.b16 %v469, %v468
      %v548 = vpack.c.b16 %v471, %v470
      %v549 = vpack.c.b16 %v473, %v472
      %v550 = vpack.c.b16 %v475, %v474
      %v551 = vpack.c.b16 %v477, %v476
      %v552 = vpack.c.b16 %v479, %v478
      %v553 = vpack.c.b16 %v481, %v480
      %v554 = vpack.c.b16 %v483, %v482
      %v555 = vpack.c.b16 %v485, %v484
      %v556 = vpack.c.b16 %v487, %v486
      %v557 = vpack.c.b16 %v489, %v488
      %v558 = vpack.c.b16 %v491, %v490
      %v559 = vpack.c.b16 %v493, %v492
      %v560 = vpack.c.b16 %v495, %v494
      %v561 = vpack.c.b16 %v497, %v496
      %v562 = vpack.c.b16 %v499, %v498
      %v563 = vpack.c.b16 %v501, %v500
      %v564 = vpack.c.b16 %v503, %v502
      %v565 = vpack.c.b16 %v505, %v504
      %v566 = vpack.c.b16 %v507, %v506
      %v567 = vpack.c.b16 %v509, %v508
      %v568 = vpack.c.b16 %v511, %v510
      %v569 = vpack.c.b16 %v513, %v512
      %v570 = vpack.c.b16 %v515, %v514
      %v571 = vpack.c.b16 %v517, %v516
      %v572 = vpack.c.b16 %v519, %v518
      %v573 = vpack.c.b16 %v521, %v520
      %v574 = vpack.c.b16 %v523, %v522
      %v575 = vpack.c.b16 %v525, %v524
      %v576 = vpack.c.b16 %v527, %v526
      %v577 = vpack.c.b16 %v529, %v528
      %v578 = vpack.c.b16 %v531, %v530
      %v579 = vpack.c.b16 %v533, %v532
      %v580 = vpack.c.b16 %v535, %v534
      %v581 = vpack.c.b16 %v537, %v536
      %v582 = vpack.c.b16 %v539, %v538
      %v583 = vpack.c.b16 %v541, %v540
      %v584 = vpack.c.b16 %v543, %v542
      %v585 = vpack.c.b16 %v545, %v544
      %626 = vmatprep.subr.bf16.mxu0 0
      %627 = vmatpush1.bf16.msra.mxu0 %v546
      %628 = vmatprep.subr.bf16.mxu0 0
      %629 = vmatpush1.bf16.msra.mxu0 %v547
      %630 = vmatprep.subr.bf16.mxu0 0
      %631 = vmatpush1.bf16.msra.mxu0 %v548
      %632 = vmatprep.subr.bf16.mxu0 0
      %633 = vmatpush1.bf16.msra.mxu0 %v549
      %634 = vmatprep.subr.bf16.mxu0 0
      %635 = vmatpush1.bf16.msra.mxu0 %v550
      %636 = vmatprep.subr.bf16.mxu0 0
      %637 = vmatpush1.bf16.msra.mxu0 %v551
      %638 = vmatprep.subr.bf16.mxu0 0
      %639 = vmatpush1.bf16.msra.mxu0 %v552
      %640 = vmatprep.subr.bf16.mxu0 0
      %641 = vmatpush1.bf16.msra.mxu0 %v553
      %642 = vmatprep.subr.bf16.mxu0 0
      %643 = vmatpush1.bf16.msra.mxu0 %v554
      %644 = vmatprep.subr.bf16.mxu0 0
      %645 = vmatpush1.bf16.msra.mxu0 %v555
      %646 = vmatprep.subr.bf16.mxu0 0
      %647 = vmatpush1.bf16.msra.mxu0 %v556
      %648 = vmatprep.subr.bf16.mxu0 0
      %649 = vmatpush1.bf16.msra.mxu0 %v557
      %650 = vmatprep.subr.bf16.mxu0 0
      %651 = vmatpush1.bf16.msra.mxu0 %v558
      %652 = vmatprep.subr.bf16.mxu0 0
      %653 = vmatpush1.bf16.msra.mxu0 %v559
      %654 = vmatprep.subr.bf16.mxu0 0
      %655 = vmatpush1.bf16.msra.mxu0 %v560
      %656 = vmatprep.subr.bf16.mxu0 0
      %657 = vmatpush1.bf16.msra.mxu0 %v561
      %658 = vmatprep.mubr.bf16.mxu0 %v377
      %659 = vmatmul.mubr.bf16.gmra.mrb[0].mxu0 %v376
      %v660 = vpop.f32.mrb[0].mxu0
      %v661 = vadd.f32 0.0, %v660
      %v662 = vpop.f32.mrb[0].mxu0
      %v663 = vpop.f32.mrb[0].mxu0
      %v664 = vadd.f32 0.0, %v663
      %v665 = vpop.f32.mrb[0].mxu0
      %666 = vdwg.mxu0
      %667 = vmatprep.subr.bf16.mxu0 0
      %668 = vmatpush1.bf16.msra.mxu0 %v562
      %669 = vmatprep.subr.bf16.mxu0 0
      %670 = vmatpush1.bf16.msra.mxu0 %v563
      %671 = vmatprep.subr.bf16.mxu0 0
      %672 = vmatpush1.bf16.msra.mxu0 %v564
      %673 = vmatprep.subr.bf16.mxu0 0
      %674 = vmatpush1.bf16.msra.mxu0 %v565
      %675 = vmatprep.subr.bf16.mxu0 0
      %676 = vmatpush1.bf16.msra.mxu0 %v566
      %677 = vmatprep.subr.bf16.mxu0 0
      %678 = vmatpush1.bf16.msra.mxu0 %v567
      %679 = vmatprep.subr.bf16.mxu0 0
      %680 = vmatpush1.bf16.msra.mxu0 %v568
      %681 = vmatprep.subr.bf16.mxu0 0
      %682 = vmatpush1.bf16.msra.mxu0 %v569
      %683 = vmatprep.subr.bf16.mxu0 0
      %684 = vmatpush1.bf16.msra.mxu0 %v570
      %685 = vmatprep.subr.bf16.mxu0 0
      %686 = vmatpush1.bf16.msra.mxu0 %v571
      %687 = vmatprep.subr.bf16.mxu0 0
      %688 = vmatpush1.bf16.msra.mxu0 %v572
      %689 = vmatprep.subr.bf16.mxu0 0
      %690 = vmatpush1.bf16.msra.mxu0 %v573
      %691 = vmatprep.subr.bf16.mxu0 0
      %692 = vmatpush1.bf16.msra.mxu0 %v574
      %693 = vmatprep.subr.bf16.mxu0 0
      %694 = vmatpush1.bf16.msra.mxu0 %v575
      %695 = vmatprep.subr.bf16.mxu0 0
      %696 = vmatpush1.bf16.msra.mxu0 %v576
      %697 = vmatprep.subr.bf16.mxu0 0
      %698 = vmatpush1.bf16.msra.mxu0 %v577
      %699 = vmatprep.mubr.bf16.mxu0 %v379
      %700 = vmatmul.mubr.bf16.gmra.mrb[0].mxu0 %v378
      %v701 = vpop.f32.mrb[0].mxu0
      %v702 = vadd.f32 %v661, %v701
      %v703 = vpop.f32.mrb[0].mxu0
      %v704 = vpop.f32.mrb[0].mxu0
      %v705 = vadd.f32 %v664, %v704
      %v706 = vpop.f32.mrb[0].mxu0
      %707 = vdwg.mxu0
      %708 = vmatprep.subr.bf16.mxu0 0
      %709 = vmatpush1.bf16.msra.mxu0 %v578
      %710 = vmatprep.subr.bf16.mxu0 0
      %711 = vmatpush1.bf16.msra.mxu0 %v579
      %712 = vmatprep.subr.bf16.mxu0 0
      %713 = vmatpush1.bf16.msra.mxu0 %v580
      %714 = vmatprep.subr.bf16.mxu0 0
      %715 = vmatpush1.bf16.msra.mxu0 %v581
      %716 = vmatprep.subr.bf16.mxu0 0
      %717 = vmatpush1.bf16.msra.mxu0 %v582
      %718 = vmatprep.subr.bf16.mxu0 0
      %719 = vmatpush1.bf16.msra.mxu0 %v583
      %720 = vmatprep.subr.bf16.mxu0 0
      %721 = vmatpush1.bf16.msra.mxu0 %v584
      %722 = vmatprep.subr.bf16.mxu0 0
      %723 = vmatpush1.bf16.msra.mxu0 %v585
      %724 = vmatprep.subr.bf16.mxu0 0
      %725 = vmatpush1.bf16.msra.mxu0 0
      %726 = vmatprep.subr.bf16.mxu0 0
      %727 = vmatpush1.bf16.msra.mxu0 0
      %728 = vmatprep.subr.bf16.mxu0 0
      %729 = vmatpush1.bf16.msra.mxu0 0
      %730 = vmatprep.subr.bf16.mxu0 0
      %731 = vmatpush1.bf16.msra.mxu0 0
      %732 = vmatprep.subr.bf16.mxu0 0
      %733 = vmatpush1.bf16.msra.mxu0 0
      %734 = vmatprep.subr.bf16.mxu0 0
      %735 = vmatpush1.bf16.msra.mxu0 0
      %736 = vmatprep.subr.bf16.mxu0 0
      %737 = vmatpush1.bf16.msra.mxu0 0
      %738 = vmatprep.subr.bf16.mxu0 0
      %739 = vmatpush1.bf16.msra.mxu0 0
      %740 = vmatprep.mubr.bf16.mxu0 0
      %741 = vmatmul.mubr.bf16.gmra.mrb[0].mxu0 %v380
      %v742 = vpop.f32.mrb[0].mxu0
      %v743 = vadd.f32 %v702, %v742
      %v744 = vpop.f32.mrb[0].mxu0
      %v745 = vpop.f32.mrb[0].mxu0
      %v746 = vadd.f32 %v705, %v745
      %v747 = vpop.f32.mrb[0].mxu0
      %748 = vdwg.mxu0
      %v749 = vadd.f32 %v272, %v743
      %v750 = vadd.f32 %v273, %v746
      %751 = vst [vmem:[#allocation2] sm:$0xff] %v749
      %752 = vst [vmem:[#allocation2 + $0x8] sm:$0xff] %v750
      // Predicated region
      $region37: #{generator_forward.4} parent=31 // pred_check
        %p753 = pneg %p266
      $region38: #{generator_forward.4} parent=31 // pred_check_branch
        %755 = sbr.rel (%p753) target = $region40
      $region39: #{generator_forward.4} parent=31 // pred_region
        %v756 = vld [vmem:[#allocation2] sm:$0xff]
        %v757 = vld [vmem:[#allocation2 + $0x8] sm:$0xff]
        %v758 = vld [vmem:[%s2] sm:$0x1]
        %v760 = vlaneseq
        %v761 = vshrl.u32 %v760, 7
        %v762 = vsub.s32 0, %v761
        %v763 = vrot.slane %v758, %v762
        %v765 = vadd.f32 %v756, %v763
        %v766 = vadd.f32 %v757, %v763
        %v767 = vpack.c.bf16 %v766, %v765
        %v769 = vunpack.c.l.b16 %v767
        %v770 = vunpack.c.h.b16 %v767
        %v771 = vpack.c.b16 %v769, %v769
        %v772 = vpack.c.b16 %v770, %v770
        %775 = vst [vmem:[%s259] sm:$0xf] %v771
        %776 = vst [vmem:[%s259 + $0x4] sm:$0xf] %v772
        %v777 = vadd.f32 %v765, %v766
        %v778 = vrot.slane %v777, 4
        %v779 = vadd.f32 %v777, %v778
        %v780 = vrot.slane %v779, 2
        %v781 = vadd.f32 %v779, %v780
        %v782 = vrot.slane %v781, 1
        %v783 = vadd.f32 %v781, %v782
        %v784 = vmul.f32 %v765, %v765
        %v785 = vmul.f32 %v766, %v766
        %v786 = vadd.f32 %v784, %v785
        %v787 = vrot.slane %v786, 4
        %v788 = vadd.f32 %v786, %v787
        %v789 = vrot.slane %v788, 2
        %v790 = vadd.f32 %v788, %v789
        %v791 = vrot.slane %v790, 1
        %v792 = vadd.f32 %v790, %v791
        %vm793 = vcmask 1040384
        %v794 = vsel %vm793, %v783, %v792
        %795 = vst [vmem:[%s264] sm:$0x3] %v794
      $region40: #{generator_forward.4} parent=31 // pred_fallthru
        _
      %s796 = smul.u32 2, %s20
      %p797 = scmp.lt.s32.totalorder %s796, 3
      %s798 = scalar_select %p797, %s796, 3
      %s799 = smul.addr %s798, 4
      %s800 = scalar_lea.vmem %s3, %s799
      %p801 = scmp.lt.s32.totalorder %s20, 1
      %s802 = scalar_select %p801, %s20, 1
      %s803 = smul.addr %s802, 2
      %s804 = scalar_lea.vmem %s4, %s803
      // Predicated region
      $region41: #{generator_forward.4} parent=31 // pred_check
        %p805 = pneg %p121
      $region42: #{generator_forward.4} parent=31 // pred_check_branch
        %807 = sbr.rel (%p805) target = $region44
      $region43: #{generator_forward.4} parent=31 // pred_region
        %s808 = smul.u32 2, %s20
      $region44: #{generator_forward.4} parent=31 // pred_fallthru
        _
      // Predicated region
      $region45: #{generator_forward.4} parent=31 // pred_check
        %p809 = pneg %p147
      $region46: #{generator_forward.4} parent=31 // pred_check_branch
        %811 = sbr.rel (%p809) target = $region48
      $region47: #{generator_forward.4} parent=31 // pred_region
        _
      $region48: #{generator_forward.4} parent=31 // pred_fallthru
        _
    $region32: #{generator_forward.4} parent=5 // pred_fallthru
      _
    %p812 = scmp.le.s32.totalorder 2, %s11
    // Predicated region
    $region49: #{generator_forward.4} parent=5 // pred_check
      %p813 = pneg %p812
    $region50: #{generator_forward.4} parent=5 // pred_check_branch
      %815 = sbr.rel (%p813) target = $region52
    $region51: #{generator_forward.4} parent=5 // pred_region
      %s816 = ssub.s32 %s11, 2
      // Predicated region
      $region53: #{generator_forward.4} parent=51 // pred_check
        %p817 = pneg %p127
      $region54: #{generator_forward.4} parent=51 // pred_check_branch
        %819 = sbr.rel (%p817) target = $region56
      $region55: #{generator_forward.4} parent=51 // pred_region
        %s820 = smul.u32 2, %s22
        %p821 = scmp.lt.s32.totalorder %s820, 3
        %s822 = scalar_select %p821, %s820, 3
        %s823 = smul.addr %s822, 4
        %s824 = scalar_lea.vmem %s3, %s823
      $region56: #{generator_forward.4} parent=51 // pred_fallthru
        _
      // Predicated region
      $region57: #{generator_forward.4} parent=51 // pred_check
        %p825 = pneg %p153
      $region58: #{generator_forward.4} parent=51 // pred_check_branch
        %827 = sbr.rel (%p825) target = $region60
      $region59: #{generator_forward.4} parent=51 // pred_region
        %p828 = scmp.lt.s32.totalorder %s22, 1
        %s829 = scalar_select %p828, %s22, 1
        %s830 = smul.addr %s829, 2
        %s831 = scalar_lea.vmem %s4, %s830
      $region60: #{generator_forward.4} parent=51 // pred_fallthru
        _
    $region52: #{generator_forward.4} parent=5 // pred_fallthru
      _
  $region6: #{generator_forward.4} parent=0 // loop_footer
    %s15 = sadd.s32 1, %s11
  $region7: #{generator_forward.4} parent=0 // loop_footer_branch
    %10 = sbr.rel target = $region3
  $region8: #{generator_forward.4} parent=0 // loop_exit
    _

// kernel: generator_forward.5
$region0: #{generator_forward.5}
  #allocation0 [shape = 'u32[]', space=smem, size = 0x4, offset = 0x4, fixed_abs, tag = 'smem constant byte address 0x4 - core index']
  #allocation1 [shape = 'u32[144,128]{1,0:T(1,128)}', space=vmem, size = 0x12000, scoped, tag = 'internal scratch']
  #allocation2 [shape = 'f32[16,128]{1,0:T(8,128)}', space=vmem, size = 0x2000, scoped, tag = 'scratch operand']
  %s0 = inlined_call_operand.vmem [shape: bf16[32,576], index: 0, kind: input, shape index: {}]
  %s1 = inlined_call_operand.vmem [shape: bf16[576,128], index: 1, kind: input, shape index: {}]
  %s2 = inlined_call_operand.vmem [shape: f32[1,128], index: 2, kind: input, shape index: {}]
  %s3 = inlined_call_operand.vmem [shape: bf16[32,128], index: 3, kind: output, shape index: {0}]
  %s4 = inlined_call_operand.vmem [shape: f32[2,2,128], index: 4, kind: output, shape index: {1}]
  %5 = xla_tuple %s3, %s4
  %s6 = sld [smem:[#allocation0]]
  $region61: #{generator_forward.5} parent=0
    _
  %s8 = ssub.s32 1, %s6
  %s9 = scalar_select 0, %s8, %s6
  loop: start=0, step=1, limit=4
  $region2: #{generator_forward.5} parent=0 // loop_pre_header
    _
  $region3: #{generator_forward.5} parent=0 // loop_header
    %s11 = sphi 0, %s15
    %p12 = scmp.ge.s32.totalorder %s11, 4
    %s18 = sphi 0, %s30
    %s19 = sphi 0, %s26
    %s20 = sphi 0, %s18
    %s21 = sphi 0, %s19
    %s22 = sphi 0, %s20
    %s23 = sphi 0, %s21
    %s35 = sphi 0, %s37
    %s38 = sphi 0, %s35
    %s39 = sphi 0, %s38
    %s55 = sphi 0, %s39
    %s61 = sphi 0, %s63
    %s64 = sphi 0, %s61
    %s65 = sphi 0, %s64
    %s81 = sphi 0, %s65
    %s85 = sphi 0, %s85
    %s87 = sphi 0, %s85
    %s88 = sphi 0, %s87
    %s102 = sphi 0, %s88
    %s108 = sphi 0, %s110
    %s111 = sphi 0, %s108
    %s112 = sphi 0, %s111
    %s128 = sphi 0, %s112
    %s134 = sphi 0, %s136
    %s137 = sphi 0, %s134
    %s138 = sphi 0, %s137
    %s154 = sphi 0, %s138
  $region4: #{generator_forward.5} parent=0 // loop_header_branch
    %14 = sbr.rel (%p12) target = $region8
  $region5: #{generator_forward.5} parent=0 // loop_body
    %s16 = ssub.s32 %s11, 1
    %s17 = ssub.s32 %s11, 2
    %s24 = sadd.s32 1, %s19
    %p25 = scmp.ge.s32.totalorder %s24, 1
    %s26 = scalar_select %p25, 0, %s24
    %s27 = sadd.s32 1, %s18
    %s28 = scalar_select %p25, %s27, %s18
    %p29 = scmp.ge.s32.totalorder %s28, 2
    %s30 = scalar_select %p29, 0, %s28
    %s31 = ssub.s32 %s18, %s30
    %s32 = ssub.s32 %s19, %s26
    %s33 = sor.u32 %s31, %s32
    %p34 = scmp.eq.s32.totalorder %s33, 0
    %s36 = sadd.s32 %s35, 1
    %s37 = scalar_select %p34, %s35, %s36
    %p40 = pneg %p34
    %p41 = scmp.eq.s32.totalorder %s11, 1
    %p42 = por %p40, %p41
    %p43 = scmp.ne.s32.totalorder %s35, %s38
    %p44 = scmp.eq.s32.totalorder %s11, 0
    %p45 = por %p43, %p44
    %p46 = scmp.ne.s32.totalorder %s35, %s38
    %p47 = scmp.eq.s32.totalorder %s16, 1
    %p48 = por %p46, %p47
    %p49 = scmp.ne.s32.totalorder %s38, %s39
    %p50 = scmp.eq.s32.totalorder %s16, 0
    %p51 = por %p49, %p50
    %p52 = scmp.ne.s32.totalorder %s38, %s39
    %p53 = scmp.eq.s32.totalorder %s17, 1
    %p54 = por %p52, %p53
    %p56 = scmp.ne.s32.totalorder %s39, %s55
    %p57 = scmp.eq.s32.totalorder %s17, 0
    %p58 = por %p56, %p57
    %s59 = ssub.s32 %s19, %s26
    %p60 = scmp.eq.s32.totalorder %s59, 0
    %s62 = sadd.s32 %s61, 1
    %s63 = scalar_select %p60, %s61, %s62
    %p66 = pneg %p60
    %p67 = scmp.eq.s32.totalorder %s11, 1
    %p68 = por %p66, %p67
    %p69 = scmp.ne.s32.totalorder %s61, %s64
    %p70 = scmp.eq.s32.totalorder %s11, 0
    %p71 = por %p69, %p70
    %p72 = scmp.ne.s32.totalorder %s61, %s64
    %p73 = scmp.eq.s32.totalorder %s16, 1
    %p74 = por %p72, %p73
    %p75 = scmp.ne.s32.totalorder %s64, %s65
    %p76 = scmp.eq.s32.totalorder %s16, 0
    %p77 = por %p75, %p76
    %p78 = scmp.ne.s32.totalorder %s64, %s65
    %p79 = scmp.eq.s32.totalorder %s17, 1
    %p80 = por %p78, %p79
    %p82 = scmp.ne.s32.totalorder %s65, %s81
    %p83 = scmp.eq.s32.totalorder %s17, 0
    %p84 = por %p82, %p83
    %s86 = sadd.s32 %s85, 1
    %p89 = scmp.eq.s32.totalorder %s11, 1
    %p90 = scmp.ne.s32.totalorder %s85, %s87
    %p91 = scmp.eq.s32.totalorder %s11, 0
    %p92 = por %p90, %p91
    %p93 = scmp.ne.s32.totalorder %s85, %s87
    %p94 = scmp.eq.s32.totalorder %s16, 1
    %p95 = por %p93, %p94
    %p96 = scmp.ne.s32.totalorder %s87, %s88
    %p97 = scmp.eq.s32.totalorder %s16, 0
    %p98 = por %p96, %p97
    %p99 = scmp.ne.s32.totalorder %s87, %s88
    %p100 = scmp.eq.s32.totalorder %s17, 1
    %p101 = por %p99, %p100
    %p103 = scmp.ne.s32.totalorder %s88, %s102
    %p104 = scmp.eq.s32.totalorder %s17, 0
    %p105 = por %p103, %p104
    %s106 = ssub.s32 %s18, %s30
    %p107 = scmp.eq.s32.totalorder %s106, 0
    %s109 = sadd.s32 %s108, 1
    %s110 = scalar_select %p107, %s108, %s109
    %p113 = pneg %p107
    %p114 = scmp.eq.s32.totalorder %s11, 1
    %p115 = por %p113, %p114
    %p116 = scmp.ne.s32.totalorder %s108, %s111
    %p117 = scmp.eq.s32.totalorder %s11, 0
    %p118 = por %p116, %p117
    %p119 = scmp.ne.s32.totalorder %s108, %s111
    %p120 = scmp.eq.s32.totalorder %s16, 1
    %p121 = por %p119, %p120
    %p122 = scmp.ne.s32.totalorder %s111, %s112
    %p123 = scmp.eq.s32.totalorder %s16, 0
    %p124 = por %p122, %p123
    %p125 = scmp.ne.s32.totalorder %s111, %s112
    %p126 = scmp.eq.s32.totalorder %s17, 1
    %p127 = por %p125, %p126
    %p129 = scmp.ne.s32.totalorder %s112, %s128
    %p130 = scmp.eq.s32.totalorder %s17, 0
    %p131 = por %p129, %p130
    %s132 = ssub.s32 %s18, %s30
    %p133 = scmp.eq.s32.totalorder %s132, 0
    %s135 = sadd.s32 %s134, 1
    %s136 = scalar_select %p133, %s134, %s135
    %p139 = pneg %p133
    %p140 = scmp.eq.s32.totalorder %s11, 1
    %p141 = por %p139, %p140
    %p142 = scmp.ne.s32.totalorder %s134, %s137
    %p143 = scmp.eq.s32.totalorder %s11, 0
    %p144 = por %p142, %p143
    %p145 = scmp.ne.s32.totalorder %s134, %s137
    %p146 = scmp.eq.s32.totalorder %s16, 1
    %p147 = por %p145, %p146
    %p148 = scmp.ne.s32.totalorder %s137, %s138
    %p149 = scmp.eq.s32.totalorder %s16, 0
    %p150 = por %p148, %p149
    %p151 = scmp.ne.s32.totalorder %s137, %s138
    %p152 = scmp.eq.s32.totalorder %s17, 1
    %p153 = por %p151, %p152
    %p155 = scmp.ne.s32.totalorder %s138, %s154
    %p156 = scmp.eq.s32.totalorder %s17, 0
    %p157 = por %p155, %p156
    %p158 = scmp.le.s32.totalorder 1, %s11
    %p159 = scmp.lt.s32.totalorder %s11, 3
    %p160 = pnand %p158, %p159
    %p161 = pneg %p160
    // Predicated region
    $region9: #{generator_forward.5} parent=5 // pred_check
      _
    $region10: #{generator_forward.5} parent=5 // pred_check_branch
      %163 = sbr.rel (%p160) target = $region12
    $region11: #{generator_forward.5} parent=5 // pred_region
      %s164 = ssub.s32 %s11, 1
      // Predicated region
      $region13: #{generator_forward.5} parent=11 // pred_check
        %p165 = pneg %p77
      $region14: #{generator_forward.5} parent=11 // pred_check_branch
        %167 = sbr.rel (%p165) target = $region16
      $region15: #{generator_forward.5} parent=11 // pred_region
        %s168 = smul.u32 72, %s21
        %p169 = scmp.lt.s32.totalorder %s168, 71
        %s170 = scalar_select %p169, %s168, 71
        %s171 = smul.addr %s170, 4
        %s172 = scalar_lea.vmem %s1, %s171
        %s173 = smul.u32 72, %s21
      $region16: #{generator_forward.5} parent=11 // pred_fallthru
        _
      // Predicated region
      $region17: #{generator_forward.5} parent=11 // pred_check
        %p174 = pneg %p98
      $region18: #{generator_forward.5} parent=11 // pred_check_branch
        %176 = sbr.rel (%p174) target = $region20
      $region19: #{generator_forward.5} parent=11 // pred_region
        _
      $region20: #{generator_forward.5} parent=11 // pred_fallthru
        _
    $region12: #{generator_forward.5} parent=5 // pred_fallthru
      _
    %p177 = scmp.lt.s32.totalorder %s11, 2
    // Predicated region
    $region21: #{generator_forward.5} parent=5 // pred_check
      %p178 = pneg %p177
    $region22: #{generator_forward.5} parent=5 // pred_check_branch
      %180 = sbr.rel (%p178) target = $region24
    $region23: #{generator_forward.5} parent=5 // pred_region
      // Predicated region
      $region25: #{generator_forward.5} parent=23 // pred_check
        %p181 = pneg %p45
      $region26: #{generator_forward.5} parent=23 // pred_check_branch
        %183 = sbr.rel (%p181) target = $region28
      $region27: #{generator_forward.5} parent=23 // pred_region
        %s184 = smul.u32 2, %s18
        %s185 = smul.u32 5, %s19
        %p186 = scmp.lt.s32.totalorder %s184, 3
        %s187 = scalar_select %p186, %s184, 3
        %p188 = scmp.lt.s32.totalorder %s185, 4
        %s189 = scalar_select %p188, %s185, 4
        %s190 = smul.addr %s187, 5
        %s191 = sadd.s32 %s189, %s190
        %s192 = smul.addr %s191, 4
        %s193 = scalar_lea.vmem %s0, %s192
        %s194 = smul.u32 2, %s18
        %s195 = smul.u32 5, %s19
      $region28: #{generator_forward.5} parent=23 // pred_fallthru
        _
    $region24: #{generator_forward.5} parent=5 // pred_fallthru
      _
    %p196 = scmp.le.s32.totalorder 1, %s11
    %p197 = scmp.lt.s32.totalorder %s11, 3
    %p198 = pnand %p196, %p197
    %p199 = pneg %p198
    // Predicated region
    $region29: #{generator_forward.5} parent=5 // pred_check
      _
    $region30: #{generator_forward.5} parent=5 // pred_check_branch
      %201 = sbr.rel (%p198) target = $region32
    $region31: #{generator_forward.5} parent=5 // pred_region
      %s202 = ssub.s32 %s11, 1
      %s203 = smul.u32 2, %s20
      %s204 = smul.u32 5, %s21
      %p205 = scmp.lt.s32.totalorder %s203, 3
      %s206 = scalar_select %p205, %s203, 3
      %p207 = scmp.lt.s32.totalorder %s204, 4
      %s208 = scalar_select %p207, %s204, 4
      %s209 = smul.addr %s206, 5
      %s210 = sadd.s32 %s208, %s209
      %s211 = smul.addr %s210, 4
      %s212 = scalar_lea.vmem %s0, %s211
      %p213 = pneg %p51
      %p214 = pneg %p48
      %s215 = smul.u32 72, %s21
      %p216 = scmp.lt.s32.totalorder %s215, 71
      %s217 = scalar_select %p216, %s215, 71
      %s218 = smul.addr %s217, 4
      %s219 = scalar_lea.vmem %s1, %s218
      %p220 = pneg %p77
      %p221 = pneg %p74
      %p222 = pneg %p98
      %p223 = pneg %p95
      %p224 = pneg %p124
      %p225 = pneg %p121
      %s226 = smul.u32 2, %s20
      %p227 = scmp.lt.s32.totalorder %s226, 3
      %s228 = scalar_select %p227, %s226, 3
      %s229 = smul.addr %s228, 4
      %s230 = scalar_lea.vmem %s3, %s229
      %p231 = pneg %p150
      %p232 = pneg %p147
      %p233 = scmp.lt.s32.totalorder %s20, 1
      %s234 = scalar_select %p233, %s20, 1
      %s235 = smul.addr %s234, 2
      %s236 = scalar_lea.vmem %s4, %s235
      %s237 = smul.u32 2, %s20
      %s238 = smul.u32 5, %s21
      %p239 = scmp.lt.s32.totalorder %s237, 3
      %s240 = scalar_select %p239, %s237, 3
      %p241 = scmp.lt.s32.totalorder %s238, 4
      %s242 = scalar_select %p241, %s238, 4
      %s243 = smul.addr %s240, 5
      %s244 = sadd.s32 %s242, %s243
      %s245 = smul.addr %s244, 4
      %s246 = scalar_lea.vmem %s0, %s245
      %s247 = smul.u32 2, %s20
      %s248 = smul.u32 5, %s21
      %s249 = smul.u32 72, %s21
      %p250 = scmp.lt.s32.totalorder %s249, 71
      %s251 = scalar_select %p250, %s249, 71
      %s252 = smul.addr %s251, 4
      %s253 = scalar_lea.vmem %s1, %s252
      %s254 = smul.u32 72, %s21
      %s255 = smul.u32 2, %s20
      %p256 = scmp.lt.s32.totalorder %s255, 3
      %s257 = scalar_select %p256, %s255, 3
      %s258 = smul.addr %s257, 4
      %s259 = scalar_lea.vmem %s3, %s258
      %s260 = smul.u32 2, %s20
      %p261 = scmp.lt.s32.totalorder %s20, 1
      %s262 = scalar_select %p261, %s20, 1
      %s263 = smul.addr %s262, 2
      %s264 = scalar_lea.vmem %s4, %s263
      %p266 = scmp.eq.s32.totalorder %s21, 0
      // Predicated region
      $region33: #{generator_forward.5} parent=31 // pred_check
        %p267 = pneg %p266
      $region34: #{generator_forward.5} parent=31 // pred_check_branch
        %269 = sbr.rel (%p267) target = $region36
      $region35: #{generator_forward.5} parent=31 // pred_region
        %270 = vst [vmem:[#allocation2] sm:$0xff] 0.0
        %271 = vst [vmem:[#allocation2 + $0x8] sm:$0xff] 0.0
      $region36: #{generator_forward.5} parent=31 // pred_fallthru
        _
      %v272 = vld [vmem:[#allocation2] sm:$0xff]
      %v273 = vld [vmem:[#allocation2 + $0x8] sm:$0xff]
      %v274 = vld [vmem:[%s246] sm:$0xff]
      %v275 = vld [vmem:[%s246 + $0x8] sm:$0xff]
      %v276 = vld [vmem:[%s246 + $0x10] sm:$0xf]
      %v277 = vld [vmem:[%s246 + $0x14] sm:$0xff]
      %v278 = vld [vmem:[%s246 + $0x1c] sm:$0xff]
      %v279 = vld [vmem:[%s246 + $0x24] sm:$0xf]
      %v280 = vld [vmem:[%s253] sm:$0xf]
      %v281 = vld [vmem:[%s253 + $0x4] sm:$0xf]
      %v282 = vld [vmem:[%s253 + $0x8] sm:$0xf]
      %v283 = vld [vmem:[%s253 + $0xc] sm:$0xf]
      %v284 = vld [vmem:[%s253 + $0x10] sm:$0xf]
      %v285 = vld [vmem:[%s253 + $0x14] sm:$0xf]
      %v286 = vld [vmem:[%s253 + $0x18] sm:$0xf]
      %v287 = vld [vmem:[%s253 + $0x1c] sm:$0xf]
      %v288 = vld [vmem:[%s253 + $0x20] sm:$0xf]
      %v289 = vld [vmem:[%s253 + $0x24] sm:$0xf]
      %v290 = vld [vmem:[%s253 + $0x28] sm:$0xf]
      %v291 = vld [vmem:[%s253 + $0x2c] sm:$0xf]
      %v292 = vld [vmem:[%s253 + $0x30] sm:$0xf]
      %v293 = vld [vmem:[%s253 + $0x34] sm:$0xf]
      %v294 = vld [vmem:[%s253 + $0x38] sm:$0xf]
      %v295 = vld [vmem:[%s253 + $0x3c] sm:$0xf]
      %v296 = vld [vmem:[%s253 + $0x40] sm:$0xf]
      %v297 = vld [vmem:[%s253 + $0x44] sm:$0xf]
      %v298 = vld [vmem:[%s253 + $0x48] sm:$0xf]
      %v299 = vld [vmem:[%s253 + $0x4c] sm:$0xf]
      %v300 = vld [vmem:[%s253 + $0x50] sm:$0xf]
      %v301 = vld [vmem:[%s253 + $0x54] sm:$0xf]
      %v302 = vld [vmem:[%s253 + $0x58] sm:$0xf]
      %v303 = vld [vmem:[%s253 + $0x5c] sm:$0xf]
      %v304 = vld [vmem:[%s253 + $0x60] sm:$0xf]
      %v305 = vld [vmem:[%s253 + $0x64] sm:$0xf]
      %v306 = vld [vmem:[%s253 + $0x68] sm:$0xf]
      %v307 = vld [vmem:[%s253 + $0x6c] sm:$0xf]
      %v308 = vld [vmem:[%s253 + $0x70] sm:$0xf]
      %v309 = vld [vmem:[%s253 + $0x74] sm:$0xf]
      %v310 = vld [vmem:[%s253 + $0x78] sm:$0xf]
      %v311 = vld [vmem:[%s253 + $0x7c] sm:$0xf]
      %v312 = vld [vmem:[%s253 + $0x80] sm:$0xf]
      %v313 = vld [vmem:[%s253 + $0x84] sm:$0xf]
      %v314 = vld [vmem:[%s253 + $0x88] sm:$0xf]
      %v315 = vld [vmem:[%s253 + $0x8c] sm:$0xf]
      %v316 = vld [vmem:[%s253 + $0x90] sm:$0xf]
      %v317 = vld [vmem:[%s253 + $0x94] sm:$0xf]
      %v318 = vld [vmem:[%s253 + $0x98] sm:$0xf]
      %v319 = vld [vmem:[%s253 + $0x9c] sm:$0xf]
      %v320 = vld [vmem:[%s253 + $0xa0] sm:$0xf]
      %v321 = vld [vmem:[%s253 + $0xa4] sm:$0xf]
      %v322 = vld [vmem:[%s253 + $0xa8] sm:$0xf]
      %v323 = vld [vmem:[%s253 + $0xac] sm:$0xf]
      %v324 = vld [vmem:[%s253 + $0xb0] sm:$0xf]
      %v325 = vld [vmem:[%s253 + $0xb4] sm:$0xf]
      %v326 = vld [vmem:[%s253 + $0xb8] sm:$0xf]
      %v327 = vld [vmem:[%s253 + $0xbc] sm:$0xf]
      %v328 = vld [vmem:[%s253 + $0xc0] sm:$0xf]
      %v329 = vld [vmem:[%s253 + $0xc4] sm:$0xf]
      %v330 = vld [vmem:[%s253 + $0xc8] sm:$0xf]
      %v331 = vld [vmem:[%s253 + $0xcc] sm:$0xf]
      %v332 = vld [vmem:[%s253 + $0xd0] sm:$0xf]
      %v333 = vld [vmem:[%s253 + $0xd4] sm:$0xf]
      %v334 = vld [vmem:[%s253 + $0xd8] sm:$0xf]
      %v335 = vld [vmem:[%s253 + $0xdc] sm:$0xf]
      %v336 = vld [vmem:[%s253 + $0xe0] sm:$0xf]
      %v337 = vld [vmem:[%s253 + $0xe4] sm:$0xf]
      %v338 = vld [vmem:[%s253 + $0xe8] sm:$0xf]
      %v339 = vld [vmem:[%s253 + $0xec] sm:$0xf]
      %v340 = vld [vmem:[%s253 + $0xf0] sm:$0xf]
      %v341 = vld [vmem:[%s253 + $0xf4] sm:$0xf]
      %v342 = vld [vmem:[%s253 + $0xf8] sm:$0xf]
      %v343 = vld [vmem:[%s253 + $0xfc] sm:$0xf]
      %v344 = vld [vmem:[%s253 + $0x100] sm:$0xf]
      %v345 = vld [vmem:[%s253 + $0x104] sm:$0xf]
      %v346 = vld [vmem:[%s253 + $0x108] sm:$0xf]
      %v347 = vld [vmem:[%s253 + $0x10c] sm:$0xf]
      %v348 = vld [vmem:[%s253 + $0x110] sm:$0xf]
      %v349 = vld [vmem:[%s253 + $0x114] sm:$0xf]
      %v350 = vld [vmem:[%s253 + $0x118] sm:$0xf]
      %v351 = vld [vmem:[%s253 + $0x11c] sm:$0xf]
      %v358 = vunpack.c.l.b16 %v274
      %v359 = vunpack.c.h.b16 %v274
      %v360 = vunpack.c.l.b16 %v275
      %v361 = vunpack.c.h.b16 %v275
      %v362 = vunpack.c.l.b16 %v276
      %v363 = vunpack.c.l.b16 %v277
      %v364 = vunpack.c.h.b16 %v277
      %v365 = vunpack.c.l.b16 %v278
      %v366 = vunpack.c.h.b16 %v278
      %v367 = vunpack.c.l.b16 %v279
      %v368 = vpack.c.b16 %v363, %v358
      %v369 = vpack.c.b16 %v364, %v359
      %v370 = vpack.c.b16 %v365, %v360
      %v371 = vpack.c.b16 %v366, %v361
      %v372 = vpack.c.b16 %v367, %v362
      %v449 = vunpack.c.l.b16 %v280
      %v450 = vunpack.c.l.b16 %v281
      %v451 = vunpack.c.l.b16 %v282
      %v452 = vunpack.c.l.b16 %v283
      %v453 = vunpack.c.l.b16 %v284
      %v454 = vunpack.c.l.b16 %v285
      %v455 = vunpack.c.l.b16 %v286
      %v456 = vunpack.c.l.b16 %v287
      %v457 = vunpack.c.l.b16 %v288
      %v458 = vunpack.c.l.b16 %v289
      %v459 = vunpack.c.l.b16 %v290
      %v460 = vunpack.c.l.b16 %v291
      %v461 = vunpack.c.l.b16 %v292
      %v462 = vunpack.c.l.b16 %v293
      %v463 = vunpack.c.l.b16 %v294
      %v464 = vunpack.c.l.b16 %v295
      %v465 = vunpack.c.l.b16 %v296
      %v466 = vunpack.c.l.b16 %v297
      %v467 = vunpack.c.l.b16 %v298
      %v468 = vunpack.c.l.b16 %v299
      %v469 = vunpack.c.l.b16 %v300
      %v470 = vunpack.c.l.b16 %v301
      %v471 = vunpack.c.l.b16 %v302
      %v472 = vunpack.c.l.b16 %v303
      %v473 = vunpack.c.l.b16 %v304
      %v474 = vunpack.c.l.b16 %v305
      %v475 = vunpack.c.l.b16 %v306
      %v476 = vunpack.c.l.b16 %v307
      %v477 = vunpack.c.l.b16 %v308
      %v478 = vunpack.c.l.b16 %v309
      %v479 = vunpack.c.l.b16 %v310
      %v480 = vunpack.c.l.b16 %v311
      %v481 = vunpack.c.l.b16 %v312
      %v482 = vunpack.c.l.b16 %v313
      %v483 = vunpack.c.l.b16 %v314
      %v484 = vunpack.c.l.b16 %v315
      %v485 = vunpack.c.l.b16 %v316
      %v486 = vunpack.c.l.b16 %v317
      %v487 = vunpack.c.l.b16 %v318
      %v488 = vunpack.c.l.b16 %v319
      %v489 = vunpack.c.l.b16 %v320
      %v490 = vunpack.c.l.b16 %v321
      %v491 = vunpack.c.l.b16 %v322
      %v492 = vunpack.c.l.b16 %v323
      %v493 = vunpack.c.l.b16 %v324
      %v494 = vunpack.c.l.b16 %v325
      %v495 = vunpack.c.l.b16 %v326
      %v496 = vunpack.c.l.b16 %v327
      %v497 = vunpack.c.l.b16 %v328
      %v498 = vunpack.c.l.b16 %v329
      %v499 = vunpack.c.l.b16 %v330
      %v500 = vunpack.c.l.b16 %v331
      %v501 = vunpack.c.l.b16 %v332
      %v502 = vunpack.c.l.b16 %v333
      %v503 = vunpack.c.l.b16 %v334
      %v504 = vunpack.c.l.b16 %v335
      %v505 = vunpack.c.l.b16 %v336
      %v506 = vunpack.c.l.b16 %v337
      %v507 = vunpack.c.l.b16 %v338
      %v508 = vunpack.c.l.b16 %v339
      %v509 = vunpack.c.l.b16 %v340
      %v510 = vunpack.c.l.b16 %v341
      %v511 = vunpack.c.l.b16 %v342
      %v512 = vunpack.c.l.b16 %v343
      %v513 = vunpack.c.l.b16 %v344
      %v514 = vunpack.c.l.b16 %v345
      %v515 = vunpack.c.l.b16 %v346
      %v516 = vunpack.c.l.b16 %v347
      %v517 = vunpack.c.l.b16 %v348
      %v518 = vunpack.c.l.b16 %v349
      %v519 = vunpack.c.l.b16 %v350
      %v520 = vunpack.c.l.b16 %v351
      %v521 = vpack.c.b16 %v450, %v449
      %v522 = vpack.c.b16 %v452, %v451
      %v523 = vpack.c.b16 %v454, %v453
      %v524 = vpack.c.b16 %v456, %v455
      %v525 = vpack.c.b16 %v458, %v457
      %v526 = vpack.c.b16 %v460, %v459
      %v527 = vpack.c.b16 %v462, %v461
      %v528 = vpack.c.b16 %v464, %v463
      %v529 = vpack.c.b16 %v466, %v465
      %v530 = vpack.c.b16 %v468, %v467
      %v531 = vpack.c.b16 %v470, %v469
      %v532 = vpack.c.b16 %v472, %v471
      %v533 = vpack.c.b16 %v474, %v473
      %v534 = vpack.c.b16 %v476, %v475
      %v535 = vpack.c.b16 %v478, %v477
      %v536 = vpack.c.b16 %v480, %v479
      %v537 = vpack.c.b16 %v482, %v481
      %v538 = vpack.c.b16 %v484, %v483
      %v539 = vpack.c.b16 %v486, %v485
      %v540 = vpack.c.b16 %v488, %v487
      %v541 = vpack.c.b16 %v490, %v489
      %v542 = vpack.c.b16 %v492, %v491
      %v543 = vpack.c.b16 %v494, %v493
      %v544 = vpack.c.b16 %v496, %v495
      %v545 = vpack.c.b16 %v498, %v497
      %v546 = vpack.c.b16 %v500, %v499
      %v547 = vpack.c.b16 %v502, %v501
      %v548 = vpack.c.b16 %v504, %v503
      %v549 = vpack.c.b16 %v506, %v505
      %v550 = vpack.c.b16 %v508, %v507
      %v551 = vpack.c.b16 %v510, %v509
      %v552 = vpack.c.b16 %v512, %v511
      %v553 = vpack.c.b16 %v514, %v513
      %v554 = vpack.c.b16 %v516, %v515
      %v555 = vpack.c.b16 %v518, %v517
      %v556 = vpack.c.b16 %v520, %v519
      %vm593 = vcmask 523264
      %v595 = vsel %vm593, %v372, 0
      %597 = vmatprep.subr.bf16.mxu0 0
      %598 = vmatpush1.bf16.msra.mxu0 %v521
      %599 = vmatprep.subr.bf16.mxu0 0
      %600 = vmatpush1.bf16.msra.mxu0 %v522
      %601 = vmatprep.subr.bf16.mxu0 0
      %602 = vmatpush1.bf16.msra.mxu0 %v523
      %603 = vmatprep.subr.bf16.mxu0 0
      %604 = vmatpush1.bf16.msra.mxu0 %v524
      %605 = vmatprep.subr.bf16.mxu0 0
      %606 = vmatpush1.bf16.msra.mxu0 %v525
      %607 = vmatprep.subr.bf16.mxu0 0
      %608 = vmatpush1.bf16.msra.mxu0 %v526
      %609 = vmatprep.subr.bf16.mxu0 0
      %610 = vmatpush1.bf16.msra.mxu0 %v527
      %611 = vmatprep.subr.bf16.mxu0 0
      %612 = vmatpush1.bf16.msra.mxu0 %v528
      %613 = vmatprep.subr.bf16.mxu0 0
      %614 = vmatpush1.bf16.msra.mxu0 %v529
      %615 = vmatprep.subr.bf16.mxu0 0
      %616 = vmatpush1.bf16.msra.mxu0 %v530
      %617 = vmatprep.subr.bf16.mxu0 0
      %618 = vmatpush1.bf16.msra.mxu0 %v531
      %619 = vmatprep.subr.bf16.mxu0 0
      %620 = vmatpush1.bf16.msra.mxu0 %v532
      %621 = vmatprep.subr.bf16.mxu0 0
      %622 = vmatpush1.bf16.msra.mxu0 %v533
      %623 = vmatprep.subr.bf16.mxu0 0
      %624 = vmatpush1.bf16.msra.mxu0 %v534
      %625 = vmatprep.subr.bf16.mxu0 0
      %626 = vmatpush1.bf16.msra.mxu0 %v535
      %627 = vmatprep.subr.bf16.mxu0 0
      %628 = vmatpush1.bf16.msra.mxu0 %v536
      %629 = vmatprep.mubr.bf16.mxu0 %v369
      %630 = vmatmul.mubr.bf16.gmra.mrb[0].mxu0 %v368
      %v631 = vpop.f32.mrb[0].mxu0
      %v632 = vadd.f32 0.0, %v631
      %v633 = vpop.f32.mrb[0].mxu0
      %v634 = vpop.f32.mrb[0].mxu0
      %v635 = vadd.f32 0.0, %v634
      %v636 = vpop.f32.mrb[0].mxu0
      %637 = vdwg.mxu0
      %638 = vmatprep.subr.bf16.mxu0 0
      %639 = vmatpush1.bf16.msra.mxu0 %v537
      %640 = vmatprep.subr.bf16.mxu0 0
      %641 = vmatpush1.bf16.msra.mxu0 %v538
      %642 = vmatprep.subr.bf16.mxu0 0
      %643 = vmatpush1.bf16.msra.mxu0 %v539
      %644 = vmatprep.subr.bf16.mxu0 0
      %645 = vmatpush1.bf16.msra.mxu0 %v540
      %646 = vmatprep.subr.bf16.mxu0 0
      %647 = vmatpush1.bf16.msra.mxu0 %v541
      %648 = vmatprep.subr.bf16.mxu0 0
      %649 = vmatpush1.bf16.msra.mxu0 %v542
      %650 = vmatprep.subr.bf16.mxu0 0
      %651 = vmatpush1.bf16.msra.mxu0 %v543
      %652 = vmatprep.subr.bf16.mxu0 0
      %653 = vmatpush1.bf16.msra.mxu0 %v544
      %654 = vmatprep.subr.bf16.mxu0 0
      %655 = vmatpush1.bf16.msra.mxu0 %v545
      %656 = vmatprep.subr.bf16.mxu0 0
      %657 = vmatpush1.bf16.msra.mxu0 %v546
      %658 = vmatprep.subr.bf16.mxu0 0
      %659 = vmatpush1.bf16.msra.mxu0 %v547
      %660 = vmatprep.subr.bf16.mxu0 0
      %661 = vmatpush1.bf16.msra.mxu0 %v548
      %662 = vmatprep.subr.bf16.mxu0 0
      %663 = vmatpush1.bf16.msra.mxu0 %v549
      %664 = vmatprep.subr.bf16.mxu0 0
      %665 = vmatpush1.bf16.msra.mxu0 %v550
      %666 = vmatprep.subr.bf16.mxu0 0
      %667 = vmatpush1.bf16.msra.mxu0 %v551
      %668 = vmatprep.subr.bf16.mxu0 0
      %669 = vmatpush1.bf16.msra.mxu0 %v552
      %670 = vmatprep.mubr.bf16.mxu0 %v371
      %671 = vmatmul.mubr.bf16.gmra.mrb[0].mxu0 %v370
      %v672 = vpop.f32.mrb[0].mxu0
      %v673 = vadd.f32 %v632, %v672
      %v674 = vpop.f32.mrb[0].mxu0
      %v675 = vpop.f32.mrb[0].mxu0
      %v676 = vadd.f32 %v635, %v675
      %v677 = vpop.f32.mrb[0].mxu0
      %678 = vdwg.mxu0
      %679 = vmatprep.subr.bf16.mxu0 0
      %680 = vmatpush1.bf16.msra.mxu0 %v553
      %681 = vmatprep.subr.bf16.mxu0 0
      %682 = vmatpush1.bf16.msra.mxu0 %v554
      %683 = vmatprep.subr.bf16.mxu0 0
      %684 = vmatpush1.bf16.msra.mxu0 %v555
      %685 = vmatprep.subr.bf16.mxu0 0
      %686 = vmatpush1.bf16.msra.mxu0 %v556
      %687 = vmatprep.subr.bf16.mxu0 0
      %688 = vmatpush1.bf16.msra.mxu0 0
      %689 = vmatprep.subr.bf16.mxu0 0
      %690 = vmatpush1.bf16.msra.mxu0 0
      %691 = vmatprep.subr.bf16.mxu0 0
      %692 = vmatpush1.bf16.msra.mxu0 0
      %693 = vmatprep.subr.bf16.mxu0 0
      %694 = vmatpush1.bf16.msra.mxu0 0
      %695 = vmatprep.subr.bf16.mxu0 0
      %696 = vmatpush1.bf16.msra.mxu0 0
      %697 = vmatprep.subr.bf16.mxu0 0
      %698 = vmatpush1.bf16.msra.mxu0 0
      %699 = vmatprep.subr.bf16.mxu0 0
      %700 = vmatpush1.bf16.msra.mxu0 0
      %701 = vmatprep.subr.bf16.mxu0 0
      %702 = vmatpush1.bf16.msra.mxu0 0
      %703 = vmatprep.subr.bf16.mxu0 0
      %704 = vmatpush1.bf16.msra.mxu0 0
      %705 = vmatprep.subr.bf16.mxu0 0
      %706 = vmatpush1.bf16.msra.mxu0 0
      %707 = vmatprep.subr.bf16.mxu0 0
      %708 = vmatpush1.bf16.msra.mxu0 0
      %709 = vmatprep.subr.bf16.mxu0 0
      %710 = vmatpush1.bf16.msra.mxu0 0
      %711 = vmatprep.mubr.bf16.mxu0 0
      %712 = vmatmul.mubr.bf16.gmra.mrb[0].mxu0 %v595
      %v713 = vpop.f32.mrb[0].mxu0
      %v714 = vadd.f32 %v673, %v713
      %v715 = vpop.f32.mrb[0].mxu0
      %v716 = vpop.f32.mrb[0].mxu0
      %v717 = vadd.f32 %v676, %v716
      %v718 = vpop.f32.mrb[0].mxu0
      %719 = vdwg.mxu0
      %v720 = vadd.f32 %v272, %v714
      %v721 = vadd.f32 %v273, %v717
      %722 = vst [vmem:[#allocation2] sm:$0xff] %v720
      %723 = vst [vmem:[#allocation2 + $0x8] sm:$0xff] %v721
      // Predicated region
      $region37: #{generator_forward.5} parent=31 // pred_check
        %p724 = pneg %p266
      $region38: #{generator_forward.5} parent=31 // pred_check_branch
        %726 = sbr.rel (%p724) target = $region40
      $region39: #{generator_forward.5} parent=31 // pred_region
        %v727 = vld [vmem:[#allocation2] sm:$0xff]
        %v728 = vld [vmem:[#allocation2 + $0x8] sm:$0xff]
        %v729 = vld [vmem:[%s2] sm:$0x1]
        %v731 = vlaneseq
        %v732 = vshrl.u32 %v731, 7
        %v733 = vsub.s32 0, %v732
        %v734 = vrot.slane %v729, %v733
        %v736 = vadd.f32 %v727, %v734
        %v737 = vadd.f32 %v728, %v734
        %v738 = vpack.c.bf16 %v737, %v736
        %v740 = vunpack.c.l.b16 %v738
        %v741 = vunpack.c.h.b16 %v738
        %v742 = vpack.c.b16 %v740, %v740
        %v743 = vpack.c.b16 %v741, %v741
        %746 = vst [vmem:[%s259] sm:$0xf] %v742
        %747 = vst [vmem:[%s259 + $0x4] sm:$0xf] %v743
        %v748 = vadd.f32 %v736, %v737
        %v749 = vrot.slane %v748, 4
        %v750 = vadd.f32 %v748, %v749
        %v751 = vrot.slane %v750, 2
        %v752 = vadd.f32 %v750, %v751
        %v753 = vrot.slane %v752, 1
        %v754 = vadd.f32 %v752, %v753
        %v755 = vmul.f32 %v736, %v736
        %v756 = vmul.f32 %v737, %v737
        %v757 = vadd.f32 %v755, %v756
        %v758 = vrot.slane %v757, 4
        %v759 = vadd.f32 %v757, %v758
        %v760 = vrot.slane %v759, 2
        %v761 = vadd.f32 %v759, %v760
        %v762 = vrot.slane %v761, 1
        %v763 = vadd.f32 %v761, %v762
        %vm764 = vcmask 1040384
        %v765 = vsel %vm764, %v754, %v763
        %766 = vst [vmem:[%s264] sm:$0x3] %v765
      $region40: #{generator_forward.5} parent=31 // pred_fallthru
        _
      %s767 = smul.u32 2, %s20
      %p768 = scmp.lt.s32.totalorder %s767, 3
      %s769 = scalar_select %p768, %s767, 3
      %s770 = smul.addr %s769, 4
      %s771 = scalar_lea.vmem %s3, %s770
      %p772 = scmp.lt.s32.totalorder %s20, 1
      %s773 = scalar_select %p772, %s20, 1
      %s774 = smul.addr %s773, 2
      %s775 = scalar_lea.vmem %s4, %s774
      // Predicated region
      $region41: #{generator_forward.5} parent=31 // pred_check
        %p776 = pneg %p121
      $region42: #{generator_forward.5} parent=31 // pred_check_branch
        %778 = sbr.rel (%p776) target = $region44
      $region43: #{generator_forward.5} parent=31 // pred_region
        %s779 = smul.u32 2, %s20
      $region44: #{generator_forward.5} parent=31 // pred_fallthru
        _
      // Predicated region
      $region45: #{generator_forward.5} parent=31 // pred_check
        %p780 = pneg %p147
      $region46: #{generator_forward.5} parent=31 // pred_check_branch
        %782 = sbr.rel (%p780) target = $region48
      $region47: #{generator_forward.5} parent=31 // pred_region
        _
      $region48: #{generator_forward.5} parent=31 // pred_fallthru
        _
    $region32: #{generator_forward.5} parent=5 // pred_fallthru
      _
    %p783 = scmp.le.s32.totalorder 2, %s11
    // Predicated region
    $region49: #{generator_forward.5} parent=5 // pred_check
      %p784 = pneg %p783
    $region50: #{generator_forward.5} parent=5 // pred_check_branch
      %786 = sbr.rel (%p784) target = $region52
    $region51: #{generator_forward.5} parent=5 // pred_region
      %s787 = ssub.s32 %s11, 2
      // Predicated region
      $region53: #{generator_forward.5} parent=51 // pred_check
        %p788 = pneg %p127
      $region54: #{generator_forward.5} parent=51 // pred_check_branch
        %790 = sbr.rel (%p788) target = $region56
      $region55: #{generator_forward.5} parent=51 // pred_region
        %s791 = smul.u32 2, %s22
        %p792 = scmp.lt.s32.totalorder %s791, 3
        %s793 = scalar_select %p792, %s791, 3
        %s794 = smul.addr %s793, 4
        %s795 = scalar_lea.vmem %s3, %s794
      $region56: #{generator_forward.5} parent=51 // pred_fallthru
        _
      // Predicated region
      $region57: #{generator_forward.5} parent=51 // pred_check
        %p796 = pneg %p153
      $region58: #{generator_forward.5} parent=51 // pred_check_branch
        %798 = sbr.rel (%p796) target = $region60
      $region59: #{generator_forward.5} parent=51 // pred_region
        %p799 = scmp.lt.s32.totalorder %s22, 1
        %s800 = scalar_select %p799, %s22, 1
        %s801 = smul.addr %s800, 2
        %s802 = scalar_lea.vmem %s4, %s801
      $region60: #{generator_forward.5} parent=51 // pred_fallthru
        _
    $region52: #{generator_forward.5} parent=5 // pred_fallthru
      _
  $region6: #{generator_forward.5} parent=0 // loop_footer
    %s15 = sadd.s32 1, %s11
  $region7: #{generator_forward.5} parent=0 // loop_footer_branch
    %10 = sbr.rel target = $region3
  $region8: #{generator_forward.5} parent=0 // loop_exit
    _

// kernel: generator_forward.6
$region0: #{generator_forward.6}
  #allocation0 [shape = 'u32[]', space=smem, size = 0x4, offset = 0x4, fixed_abs, tag = 'smem constant byte address 0x4 - core index']
  #allocation1 [shape = 'u32[144,128]{1,0:T(1,128)}', space=vmem, size = 0x12000, scoped, tag = 'internal scratch']
  #allocation2 [shape = 'f32[64,128]{1,0:T(8,128)}', space=vmem, size = 0x8000, scoped, tag = 'scratch operand']
  %s0 = inlined_call_operand.vmem [shape: bf16[128,288], index: 0, kind: input, shape index: {}]
  %s1 = inlined_call_operand.vmem [shape: bf16[288,128], index: 1, kind: input, shape index: {}]
  %s2 = inlined_call_operand.vmem [shape: f32[1,128], index: 2, kind: input, shape index: {}]
  %s3 = inlined_call_operand.vmem [shape: bf16[128,128], index: 3, kind: output, shape index: {0}]
  %s4 = inlined_call_operand.vmem [shape: f32[2,2,128], index: 4, kind: output, shape index: {1}]
  %5 = xla_tuple %s3, %s4
  %s6 = sld [smem:[#allocation0]]
  $region61: #{generator_forward.6} parent=0
    _
  %s8 = ssub.s32 1, %s6
  %s9 = scalar_select 0, %s8, %s6
  loop: start=0, step=1, limit=4
  $region2: #{generator_forward.6} parent=0 // loop_pre_header
    _
  $region3: #{generator_forward.6} parent=0 // loop_header
    %s11 = sphi 0, %s15
    %p12 = scmp.ge.s32.totalorder %s11, 4
    %s18 = sphi 0, %s30
    %s19 = sphi 0, %s26
    %s20 = sphi 0, %s18
    %s21 = sphi 0, %s19
    %s22 = sphi 0, %s20
    %s23 = sphi 0, %s21
    %s35 = sphi 0, %s37
    %s38 = sphi 0, %s35
    %s39 = sphi 0, %s38
    %s55 = sphi 0, %s39
    %s61 = sphi 0, %s63
    %s64 = sphi 0, %s61
    %s65 = sphi 0, %s64
    %s81 = sphi 0, %s65
    %s85 = sphi 0, %s85
    %s87 = sphi 0, %s85
    %s88 = sphi 0, %s87
    %s102 = sphi 0, %s88
    %s108 = sphi 0, %s110
    %s111 = sphi 0, %s108
    %s112 = sphi 0, %s111
    %s128 = sphi 0, %s112
    %s134 = sphi 0, %s136
    %s137 = sphi 0, %s134
    %s138 = sphi 0, %s137
    %s154 = sphi 0, %s138
  $region4: #{generator_forward.6} parent=0 // loop_header_branch
    %14 = sbr.rel (%p12) target = $region8
  $region5: #{generator_forward.6} parent=0 // loop_body
    %s16 = ssub.s32 %s11, 1
    %s17 = ssub.s32 %s11, 2
    %s24 = sadd.s32 1, %s19
    %p25 = scmp.ge.s32.totalorder %s24, 1
    %s26 = scalar_select %p25, 0, %s24
    %s27 = sadd.s32 1, %s18
    %s28 = scalar_select %p25, %s27, %s18
    %p29 = scmp.ge.s32.totalorder %s28, 2
    %s30 = scalar_select %p29, 0, %s28
    %s31 = ssub.s32 %s18, %s30
    %s32 = ssub.s32 %s19, %s26
    %s33 = sor.u32 %s31, %s32
    %p34 = scmp.eq.s32.totalorder %s33, 0
    %s36 = sadd.s32 %s35, 1
    %s37 = scalar_select %p34, %s35, %s36
    %p40 = pneg %p34
    %p41 = scmp.eq.s32.totalorder %s11, 1
    %p42 = por %p40, %p41
    %p43 = scmp.ne.s32.totalorder %s35, %s38
    %p44 = scmp.eq.s32.totalorder %s11, 0
    %p45 = por %p43, %p44
    %p46 = scmp.ne.s32.totalorder %s35, %s38
    %p47 = scmp.eq.s32.totalorder %s16, 1
    %p48 = por %p46, %p47
    %p49 = scmp.ne.s32.totalorder %s38, %s39
    %p50 = scmp.eq.s32.totalorder %s16, 0
    %p51 = por %p49, %p50
    %p52 = scmp.ne.s32.totalorder %s38, %s39
    %p53 = scmp.eq.s32.totalorder %s17, 1
    %p54 = por %p52, %p53
    %p56 = scmp.ne.s32.totalorder %s39, %s55
    %p57 = scmp.eq.s32.totalorder %s17, 0
    %p58 = por %p56, %p57
    %s59 = ssub.s32 %s19, %s26
    %p60 = scmp.eq.s32.totalorder %s59, 0
    %s62 = sadd.s32 %s61, 1
    %s63 = scalar_select %p60, %s61, %s62
    %p66 = pneg %p60
    %p67 = scmp.eq.s32.totalorder %s11, 1
    %p68 = por %p66, %p67
    %p69 = scmp.ne.s32.totalorder %s61, %s64
    %p70 = scmp.eq.s32.totalorder %s11, 0
    %p71 = por %p69, %p70
    %p72 = scmp.ne.s32.totalorder %s61, %s64
    %p73 = scmp.eq.s32.totalorder %s16, 1
    %p74 = por %p72, %p73
    %p75 = scmp.ne.s32.totalorder %s64, %s65
    %p76 = scmp.eq.s32.totalorder %s16, 0
    %p77 = por %p75, %p76
    %p78 = scmp.ne.s32.totalorder %s64, %s65
    %p79 = scmp.eq.s32.totalorder %s17, 1
    %p80 = por %p78, %p79
    %p82 = scmp.ne.s32.totalorder %s65, %s81
    %p83 = scmp.eq.s32.totalorder %s17, 0
    %p84 = por %p82, %p83
    %s86 = sadd.s32 %s85, 1
    %p89 = scmp.eq.s32.totalorder %s11, 1
    %p90 = scmp.ne.s32.totalorder %s85, %s87
    %p91 = scmp.eq.s32.totalorder %s11, 0
    %p92 = por %p90, %p91
    %p93 = scmp.ne.s32.totalorder %s85, %s87
    %p94 = scmp.eq.s32.totalorder %s16, 1
    %p95 = por %p93, %p94
    %p96 = scmp.ne.s32.totalorder %s87, %s88
    %p97 = scmp.eq.s32.totalorder %s16, 0
    %p98 = por %p96, %p97
    %p99 = scmp.ne.s32.totalorder %s87, %s88
    %p100 = scmp.eq.s32.totalorder %s17, 1
    %p101 = por %p99, %p100
    %p103 = scmp.ne.s32.totalorder %s88, %s102
    %p104 = scmp.eq.s32.totalorder %s17, 0
    %p105 = por %p103, %p104
    %s106 = ssub.s32 %s18, %s30
    %p107 = scmp.eq.s32.totalorder %s106, 0
    %s109 = sadd.s32 %s108, 1
    %s110 = scalar_select %p107, %s108, %s109
    %p113 = pneg %p107
    %p114 = scmp.eq.s32.totalorder %s11, 1
    %p115 = por %p113, %p114
    %p116 = scmp.ne.s32.totalorder %s108, %s111
    %p117 = scmp.eq.s32.totalorder %s11, 0
    %p118 = por %p116, %p117
    %p119 = scmp.ne.s32.totalorder %s108, %s111
    %p120 = scmp.eq.s32.totalorder %s16, 1
    %p121 = por %p119, %p120
    %p122 = scmp.ne.s32.totalorder %s111, %s112
    %p123 = scmp.eq.s32.totalorder %s16, 0
    %p124 = por %p122, %p123
    %p125 = scmp.ne.s32.totalorder %s111, %s112
    %p126 = scmp.eq.s32.totalorder %s17, 1
    %p127 = por %p125, %p126
    %p129 = scmp.ne.s32.totalorder %s112, %s128
    %p130 = scmp.eq.s32.totalorder %s17, 0
    %p131 = por %p129, %p130
    %s132 = ssub.s32 %s18, %s30
    %p133 = scmp.eq.s32.totalorder %s132, 0
    %s135 = sadd.s32 %s134, 1
    %s136 = scalar_select %p133, %s134, %s135
    %p139 = pneg %p133
    %p140 = scmp.eq.s32.totalorder %s11, 1
    %p141 = por %p139, %p140
    %p142 = scmp.ne.s32.totalorder %s134, %s137
    %p143 = scmp.eq.s32.totalorder %s11, 0
    %p144 = por %p142, %p143
    %p145 = scmp.ne.s32.totalorder %s134, %s137
    %p146 = scmp.eq.s32.totalorder %s16, 1
    %p147 = por %p145, %p146
    %p148 = scmp.ne.s32.totalorder %s137, %s138
    %p149 = scmp.eq.s32.totalorder %s16, 0
    %p150 = por %p148, %p149
    %p151 = scmp.ne.s32.totalorder %s137, %s138
    %p152 = scmp.eq.s32.totalorder %s17, 1
    %p153 = por %p151, %p152
    %p155 = scmp.ne.s32.totalorder %s138, %s154
    %p156 = scmp.eq.s32.totalorder %s17, 0
    %p157 = por %p155, %p156
    %p158 = scmp.le.s32.totalorder 1, %s11
    %p159 = scmp.lt.s32.totalorder %s11, 3
    %p160 = pnand %p158, %p159
    %p161 = pneg %p160
    // Predicated region
    $region9: #{generator_forward.6} parent=5 // pred_check
      _
    $region10: #{generator_forward.6} parent=5 // pred_check_branch
      %163 = sbr.rel (%p160) target = $region12
    $region11: #{generator_forward.6} parent=5 // pred_region
      %s164 = ssub.s32 %s11, 1
      // Predicated region
      $region13: #{generator_forward.6} parent=11 // pred_check
        %p165 = pneg %p77
      $region14: #{generator_forward.6} parent=11 // pred_check_branch
        %167 = sbr.rel (%p165) target = $region16
      $region15: #{generator_forward.6} parent=11 // pred_region
        %s168 = smul.u32 36, %s21
        %p169 = scmp.lt.s32.totalorder %s168, 35
        %s170 = scalar_select %p169, %s168, 35
        %s171 = smul.addr %s170, 4
        %s172 = scalar_lea.vmem %s1, %s171
        %s173 = smul.u32 36, %s21
      $region16: #{generator_forward.6} parent=11 // pred_fallthru
        _
      // Predicated region
      $region17: #{generator_forward.6} parent=11 // pred_check
        %p174 = pneg %p98
      $region18: #{generator_forward.6} parent=11 // pred_check_branch
        %176 = sbr.rel (%p174) target = $region20
      $region19: #{generator_forward.6} parent=11 // pred_region
        _
      $region20: #{generator_forward.6} parent=11 // pred_fallthru
        _
    $region12: #{generator_forward.6} parent=5 // pred_fallthru
      _
    %p177 = scmp.lt.s32.totalorder %s11, 2
    // Predicated region
    $region21: #{generator_forward.6} parent=5 // pred_check
      %p178 = pneg %p177
    $region22: #{generator_forward.6} parent=5 // pred_check_branch
      %180 = sbr.rel (%p178) target = $region24
    $region23: #{generator_forward.6} parent=5 // pred_region
      // Predicated region
      $region25: #{generator_forward.6} parent=23 // pred_check
        %p181 = pneg %p45
      $region26: #{generator_forward.6} parent=23 // pred_check_branch
        %183 = sbr.rel (%p181) target = $region28
      $region27: #{generator_forward.6} parent=23 // pred_region
        %s184 = smul.u32 8, %s18
        %s185 = smul.u32 3, %s19
        %p186 = scmp.lt.s32.totalorder %s184, 15
        %s187 = scalar_select %p186, %s184, 15
        %p188 = scmp.lt.s32.totalorder %s185, 2
        %s189 = scalar_select %p188, %s185, 2
        %s190 = smul.addr %s187, 3
        %s191 = sadd.s32 %s189, %s190
        %s192 = smul.addr %s191, 4
        %s193 = scalar_lea.vmem %s0, %s192
        %s194 = smul.u32 8, %s18
        %s195 = smul.u32 3, %s19
      $region28: #{generator_forward.6} parent=23 // pred_fallthru
        _
    $region24: #{generator_forward.6} parent=5 // pred_fallthru
      _
    %p196 = scmp.le.s32.totalorder 1, %s11
    %p197 = scmp.lt.s32.totalorder %s11, 3
    %p198 = pnand %p196, %p197
    %p199 = pneg %p198
    // Predicated region
    $region29: #{generator_forward.6} parent=5 // pred_check
      _
    $region30: #{generator_forward.6} parent=5 // pred_check_branch
      %201 = sbr.rel (%p198) target = $region32
    $region31: #{generator_forward.6} parent=5 // pred_region
      %s202 = ssub.s32 %s11, 1
      %s203 = smul.u32 8, %s20
      %s204 = smul.u32 3, %s21
      %p205 = scmp.lt.s32.totalorder %s203, 15
      %s206 = scalar_select %p205, %s203, 15
      %p207 = scmp.lt.s32.totalorder %s204, 2
      %s208 = scalar_select %p207, %s204, 2
      %s209 = smul.addr %s206, 3
      %s210 = sadd.s32 %s208, %s209
      %s211 = smul.addr %s210, 4
      %s212 = scalar_lea.vmem %s0, %s211
      %p213 = pneg %p51
      %p214 = pneg %p48
      %s215 = smul.u32 36, %s21
      %p216 = scmp.lt.s32.totalorder %s215, 35
      %s217 = scalar_select %p216, %s215, 35
      %s218 = smul.addr %s217, 4
      %s219 = scalar_lea.vmem %s1, %s218
      %p220 = pneg %p77
      %p221 = pneg %p74
      %p222 = pneg %p98
      %p223 = pneg %p95
      %p224 = pneg %p124
      %p225 = pneg %p121
      %s226 = smul.u32 8, %s20
      %p227 = scmp.lt.s32.totalorder %s226, 15
      %s228 = scalar_select %p227, %s226, 15
      %s229 = smul.addr %s228, 4
      %s230 = scalar_lea.vmem %s3, %s229
      %p231 = pneg %p150
      %p232 = pneg %p147
      %p233 = scmp.lt.s32.totalorder %s20, 1
      %s234 = scalar_select %p233, %s20, 1
      %s235 = smul.addr %s234, 2
      %s236 = scalar_lea.vmem %s4, %s235
      %s237 = smul.u32 8, %s20
      %s238 = smul.u32 3, %s21
      %p239 = scmp.lt.s32.totalorder %s237, 15
      %s240 = scalar_select %p239, %s237, 15
      %p241 = scmp.lt.s32.totalorder %s238, 2
      %s242 = scalar_select %p241, %s238, 2
      %s243 = smul.addr %s240, 3
      %s244 = sadd.s32 %s242, %s243
      %s245 = smul.addr %s244, 4
      %s246 = scalar_lea.vmem %s0, %s245
      %s247 = smul.u32 8, %s20
      %s248 = smul.u32 3, %s21
      %s249 = smul.u32 36, %s21
      %p250 = scmp.lt.s32.totalorder %s249, 35
      %s251 = scalar_select %p250, %s249, 35
      %s252 = smul.addr %s251, 4
      %s253 = scalar_lea.vmem %s1, %s252
      %s254 = smul.u32 36, %s21
      %s255 = smul.u32 8, %s20
      %p256 = scmp.lt.s32.totalorder %s255, 15
      %s257 = scalar_select %p256, %s255, 15
      %s258 = smul.addr %s257, 4
      %s259 = scalar_lea.vmem %s3, %s258
      %s260 = smul.u32 8, %s20
      %p261 = scmp.lt.s32.totalorder %s20, 1
      %s262 = scalar_select %p261, %s20, 1
      %s263 = smul.addr %s262, 2
      %s264 = scalar_lea.vmem %s4, %s263
      %p266 = scmp.eq.s32.totalorder %s21, 0
      // Predicated region
      $region33: #{generator_forward.6} parent=31 // pred_check
        %p267 = pneg %p266
      $region34: #{generator_forward.6} parent=31 // pred_check_branch
        %269 = sbr.rel (%p267) target = $region36
      $region35: #{generator_forward.6} parent=31 // pred_region
        %270 = vst [vmem:[#allocation2] sm:$0xff] 0.0
        %271 = vst [vmem:[#allocation2 + $0x8] sm:$0xff] 0.0
        %272 = vst [vmem:[#allocation2 + $0x10] sm:$0xff] 0.0
        %273 = vst [vmem:[#allocation2 + $0x18] sm:$0xff] 0.0
        %274 = vst [vmem:[#allocation2 + $0x20] sm:$0xff] 0.0
        %275 = vst [vmem:[#allocation2 + $0x28] sm:$0xff] 0.0
        %276 = vst [vmem:[#allocation2 + $0x30] sm:$0xff] 0.0
        %277 = vst [vmem:[#allocation2 + $0x38] sm:$0xff] 0.0
      $region36: #{generator_forward.6} parent=31 // pred_fallthru
        _
      %v278 = vld [vmem:[#allocation2] sm:$0xff]
      %v279 = vld [vmem:[#allocation2 + $0x8] sm:$0xff]
      %v280 = vld [vmem:[#allocation2 + $0x10] sm:$0xff]
      %v281 = vld [vmem:[#allocation2 + $0x18] sm:$0xff]
      %v282 = vld [vmem:[#allocation2 + $0x20] sm:$0xff]
      %v283 = vld [vmem:[#allocation2 + $0x28] sm:$0xff]
      %v284 = vld [vmem:[#allocation2 + $0x30] sm:$0xff]
      %v285 = vld [vmem:[#allocation2 + $0x38] sm:$0xff]
      %v286 = vld [vmem:[%s246] sm:$0xff]
      %v287 = vld [vmem:[%s246 + $0x8] sm:$0xf]
      %v288 = vld [vmem:[%s246 + $0xc] sm:$0xff]
      %v289 = vld [vmem:[%s246 + $0x14] sm:$0xf]
      %v290 = vld [vmem:[%s246 + $0x18] sm:$0xff]
      %v291 = vld [vmem:[%s246 + $0x20] sm:$0xf]
      %v292 = vld [vmem:[%s246 + $0x24] sm:$0xff]
      %v293 = vld [vmem:[%s246 + $0x2c] sm:$0xf]
      %v294 = vld [vmem:[%s246 + $0x30] sm:$0xff]
      %v295 = vld [vmem:[%s246 + $0x38] sm:$0xf]
      %v296 = vld [vmem:[%s246 + $0x3c] sm:$0xff]
      %v297 = vld [vmem:[%s246 + $0x44] sm:$0xf]
      %v298 = vld [vmem:[%s246 + $0x48] sm:$0xff]
      %v299 = vld [vmem:[%s246 + $0x50] sm:$0xf]
      %v300 = vld [vmem:[%s246 + $0x54] sm:$0xff]
      %v301 = vld [vmem:[%s246 + $0x5c] sm:$0xf]
      %v302 = vld [vmem:[%s253] sm:$0xf]
      %v303 = vld [vmem:[%s253 + $0x4] sm:$0xf]
      %v304 = vld [vmem:[%s253 + $0x8] sm:$0xf]
      %v305 = vld [vmem:[%s253 + $0xc] sm:$0xf]
      %v306 = vld [vmem:[%s253 + $0x10] sm:$0xf]
      %v307 = vld [vmem:[%s253 + $0x14] sm:$0xf]
      %v308 = vld [vmem:[%s253 + $0x18] sm:$0xf]
      %v309 = vld [vmem:[%s253 + $0x1c] sm:$0xf]
      %v310 = vld [vmem:[%s253 + $0x20] sm:$0xf]
      %v311 = vld [vmem:[%s253 + $0x24] sm:$0xf]
      %v312 = vld [vmem:[%s253 + $0x28] sm:$0xf]
      %v313 = vld [vmem:[%s253 + $0x2c] sm:$0xf]
      %v314 = vld [vmem:[%s253 + $0x30] sm:$0xf]
      %v315 = vld [vmem:[%s253 + $0x34] sm:$0xf]
      %v316 = vld [vmem:[%s253 + $0x38] sm:$0xf]
      %v317 = vld [vmem:[%s253 + $0x3c] sm:$0xf]
      %v318 = vld [vmem:[%s253 + $0x40] sm:$0xf]
      %v319 = vld [vmem:[%s253 + $0x44] sm:$0xf]
      %v320 = vld [vmem:[%s253 + $0x48] sm:$0xf]
      %v321 = vld [vmem:[%s253 + $0x4c] sm:$0xf]
      %v322 = vld [vmem:[%s253 + $0x50] sm:$0xf]
      %v323 = vld [vmem:[%s253 + $0x54] sm:$0xf]
      %v324 = vld [vmem:[%s253 + $0x58] sm:$0xf]
      %v325 = vld [vmem:[%s253 + $0x5c] sm:$0xf]
      %v326 = vld [vmem:[%s253 + $0x60] sm:$0xf]
      %v327 = vld [vmem:[%s253 + $0x64] sm:$0xf]
      %v328 = vld [vmem:[%s253 + $0x68] sm:$0xf]
      %v329 = vld [vmem:[%s253 + $0x6c] sm:$0xf]
      %v330 = vld [vmem:[%s253 + $0x70] sm:$0xf]
      %v331 = vld [vmem:[%s253 + $0x74] sm:$0xf]
      %v332 = vld [vmem:[%s253 + $0x78] sm:$0xf]
      %v333 = vld [vmem:[%s253 + $0x7c] sm:$0xf]
      %v334 = vld [vmem:[%s253 + $0x80] sm:$0xf]
      %v335 = vld [vmem:[%s253 + $0x84] sm:$0xf]
      %v336 = vld [vmem:[%s253 + $0x88] sm:$0xf]
      %v337 = vld [vmem:[%s253 + $0x8c] sm:$0xf]
      %v354 = vunpack.c.l.b16 %v286
      %v355 = vunpack.c.h.b16 %v286
      %v356 = vunpack.c.l.b16 %v287
      %v357 = vunpack.c.l.b16 %v288
      %v358 = vunpack.c.h.b16 %v288
      %v359 = vunpack.c.l.b16 %v289
      %v360 = vunpack.c.l.b16 %v290
      %v361 = vunpack.c.h.b16 %v290
      %v362 = vunpack.c.l.b16 %v291
      %v363 = vunpack.c.l.b16 %v292
      %v364 = vunpack.c.h.b16 %v292
      %v365 = vunpack.c.l.b16 %v293
      %v366 = vunpack.c.l.b16 %v294
      %v367 = vunpack.c.h.b16 %v294
      %v368 = vunpack.c.l.b16 %v295
      %v369 = vunpack.c.l.b16 %v296
      %v370 = vunpack.c.h.b16 %v296
      %v371 = vunpack.c.l.b16 %v297
      %v372 = vunpack.c.l.b16 %v298
      %v373 = vunpack.c.h.b16 %v298
      %v374 = vunpack.c.l.b16 %v299
      %v375 = vunpack.c.l.b16 %v300
      %v376 = vunpack.c.h.b16 %v300
      %v377 = vunpack.c.l.b16 %v301
      %v378 = vpack.c.b16 %v357, %v354
      %v379 = vpack.c.b16 %v358, %v355
      %v380 = vpack.c.b16 %v359, %v356
      %v381 = vpack.c.b16 %v363, %v360
      %v382 = vpack.c.b16 %v364, %v361
      %v383 = vpack.c.b16 %v365, %v362
      %v384 = vpack.c.b16 %v369, %v366
      %v385 = vpack.c.b16 %v370, %v367
      %v386 = vpack.c.b16 %v371, %v368
      %v387 = vpack.c.b16 %v375, %v372
      %v388 = vpack.c.b16 %v376, %v373
      %v389 = vpack.c.b16 %v377, %v374
      %v434 = vunpack.c.l.b16 %v302
      %v435 = vunpack.c.l.b16 %v303
      %v436 = vunpack.c.l.b16 %v304
      %v437 = vunpack.c.l.b16 %v305
      %v438 = vunpack.c.l.b16 %v306
      %v439 = vunpack.c.l.b16 %v307
      %v440 = vunpack.c.l.b16 %v308
      %v441 = vunpack.c.l.b16 %v309
      %v442 = vunpack.c.l.b16 %v310
      %v443 = vunpack.c.l.b16 %v311
      %v444 = vunpack.c.l.b16 %v312
      %v445 = vunpack.c.l.b16 %v313
      %v446 = vunpack.c.l.b16 %v314
      %v447 = vunpack.c.l.b16 %v315
      %v448 = vunpack.c.l.b16 %v316
      %v449 = vunpack.c.l.b16 %v317
      %v450 = vunpack.c.l.b16 %v318
      %v451 = vunpack.c.l.b16 %v319
      %v452 = vunpack.c.l.b16 %v320
      %v453 = vunpack.c.l.b16 %v321
      %v454 = vunpack.c.l.b16 %v322
      %v455 = vunpack.c.l.b16 %v323
      %v456 = vunpack.c.l.b16 %v324
      %v457 = vunpack.c.l.b16 %v325
      %v458 = vunpack.c.l.b16 %v326
      %v459 = vunpack.c.l.b16 %v327
      %v460 = vunpack.c.l.b16 %v328
      %v461 = vunpack.c.l.b16 %v329
      %v462 = vunpack.c.l.b16 %v330
      %v463 = vunpack.c.l.b16 %v331
      %v464 = vunpack.c.l.b16 %v332
      %v465 = vunpack.c.l.b16 %v333
      %v466 = vunpack.c.l.b16 %v334
      %v467 = vunpack.c.l.b16 %v335
      %v468 = vunpack.c.l.b16 %v336
      %v469 = vunpack.c.l.b16 %v337
      %v470 = vpack.c.b16 %v435, %v434
      %v471 = vpack.c.b16 %v437, %v436
      %v472 = vpack.c.b16 %v439, %v438
      %v473 = vpack.c.b16 %v441, %v440
      %v474 = vpack.c.b16 %v443, %v442
      %v475 = vpack.c.b16 %v445, %v444
      %v476 = vpack.c.b16 %v447, %v446
      %v477 = vpack.c.b16 %v449, %v448
      %v478 = vpack.c.b16 %v451, %v450
      %v479 = vpack.c.b16 %v453, %v452
      %v480 = vpack.c.b16 %v455, %v454
      %v481 = vpack.c.b16 %v457, %v456
      %v482 = vpack.c.b16 %v459, %v458
      %v483 = vpack.c.b16 %v461, %v460
      %v484 = vpack.c.b16 %v463, %v462
      %v485 = vpack.c.b16 %v465, %v464
      %v486 = vpack.c.b16 %v467, %v466
      %v487 = vpack.c.b16 %v469, %v468
      %vm506 = vcmask 261120
      %v508 = vsel %vm506, %v380, 0
      %v511 = vsel %vm506, %v383, 0
      %v514 = vsel %vm506, %v386, 0
      %v517 = vsel %vm506, %v389, 0
      %519 = vmatprep.subr.bf16.mxu0 0
      %520 = vmatpush1.bf16.msra.mxu0 %v470
      %521 = vmatprep.subr.bf16.mxu0 0
      %522 = vmatpush1.bf16.msra.mxu0 %v471
      %523 = vmatprep.subr.bf16.mxu0 0
      %524 = vmatpush1.bf16.msra.mxu0 %v472
      %525 = vmatprep.subr.bf16.mxu0 0
      %526 = vmatpush1.bf16.msra.mxu0 %v473
      %527 = vmatprep.subr.bf16.mxu0 0
      %528 = vmatpush1.bf16.msra.mxu0 %v474
      %529 = vmatprep.subr.bf16.mxu0 0
      %530 = vmatpush1.bf16.msra.mxu0 %v475
      %531 = vmatprep.subr.bf16.mxu0 0
      %532 = vmatpush1.bf16.msra.mxu0 %v476
      %533 = vmatprep.subr.bf16.mxu0 0
      %534 = vmatpush1.bf16.msra.mxu0 %v477
      %535 = vmatprep.subr.bf16.mxu0 0
      %536 = vmatpush1.bf16.msra.mxu0 %v478
      %537 = vmatprep.subr.bf16.mxu0 0
      %538 = vmatpush1.bf16.msra.mxu0 %v479
      %539 = vmatprep.subr.bf16.mxu0 0
      %540 = vmatpush1.bf16.msra.mxu0 %v480
      %541 = vmatprep.subr.bf16.mxu0 0
      %542 = vmatpush1.bf16.msra.mxu0 %v481
      %543 = vmatprep.subr.bf16.mxu0 0
      %544 = vmatpush1.bf16.msra.mxu0 %v482
      %545 = vmatprep.subr.bf16.mxu0 0
      %546 = vmatpush1.bf16.msra.mxu0 %v483
      %547 = vmatprep.subr.bf16.mxu0 0
      %548 = vmatpush1.bf16.msra.mxu0 %v484
      %549 = vmatprep.subr.bf16.mxu0 0
      %550 = vmatpush1.bf16.msra.mxu0 %v485
      %551 = vmatprep.mubr.bf16.mxu0 %v379
      %552 = vmatmul.mubr.bf16.gmra.mrb[0].mxu0 %v378
      %v553 = vpop.f32.mrb[0].mxu0
      %v554 = vadd.f32 0.0, %v553
      %v555 = vpop.f32.mrb[0].mxu0
      %v556 = vpop.f32.mrb[0].mxu0
      %v557 = vadd.f32 0.0, %v556
      %v558 = vpop.f32.mrb[0].mxu0
      %559 = vmatprep.mubr.bf16.mxu0 %v382
      %560 = vmatmul.mubr.bf16.gmra.mrb[0].mxu0 %v381
      %v561 = vpop.f32.mrb[0].mxu0
      %v562 = vadd.f32 0.0, %v561
      %v563 = vpop.f32.mrb[0].mxu0
      %v564 = vpop.f32.mrb[0].mxu0
      %v565 = vadd.f32 0.0, %v564
      %v566 = vpop.f32.mrb[0].mxu0
      %567 = vmatprep.mubr.bf16.mxu0 %v385
      %568 = vmatmul.mubr.bf16.gmra.mrb[0].mxu0 %v384
      %v569 = vpop.f32.mrb[0].mxu0
      %v570 = vadd.f32 0.0, %v569
      %v571 = vpop.f32.mrb[0].mxu0
      %v572 = vpop.f32.mrb[0].mxu0
      %v573 = vadd.f32 0.0, %v572
      %v574 = vpop.f32.mrb[0].mxu0
      %575 = vmatprep.mubr.bf16.mxu0 %v388
      %576 = vmatmul.mubr.bf16.gmra.mrb[0].mxu0 %v387
      %v577 = vpop.f32.mrb[0].mxu0
      %v578 = vadd.f32 0.0, %v577
      %v579 = vpop.f32.mrb[0].mxu0
      %v580 = vpop.f32.mrb[0].mxu0
      %v581 = vadd.f32 0.0, %v580
      %v582 = vpop.f32.mrb[0].mxu0
      %583 = vdwg.mxu0
      %584 = vmatprep.subr.bf16.mxu0 0
      %585 = vmatpush1.bf16.msra.mxu0 %v486
      %586 = vmatprep.subr.bf16.mxu0 0
      %587 = vmatpush1.bf16.msra.mxu0 %v487
      %588 = vmatprep.subr.bf16.mxu0 0
      %589 = vmatpush1.bf16.msra.mxu0 0
      %590 = vmatprep.subr.bf16.mxu0 0
      %591 = vmatpush1.bf16.msra.mxu0 0
      %592 = vmatprep.subr.bf16.mxu0 0
      %593 = vmatpush1.bf16.msra.mxu0 0
      %594 = vmatprep.subr.bf16.mxu0 0
      %595 = vmatpush1.bf16.msra.mxu0 0
      %596 = vmatprep.subr.bf16.mxu0 0
      %597 = vmatpush1.bf16.msra.mxu0 0
      %598 = vmatprep.subr.bf16.mxu0 0
      %599 = vmatpush1.bf16.msra.mxu0 0
      %600 = vmatprep.subr.bf16.mxu0 0
      %601 = vmatpush1.bf16.msra.mxu0 0
      %602 = vmatprep.subr.bf16.mxu0 0
      %603 = vmatpush1.bf16.msra.mxu0 0
      %604 = vmatprep.subr.bf16.mxu0 0
      %605 = vmatpush1.bf16.msra.mxu0 0
      %606 = vmatprep.subr.bf16.mxu0 0
      %607 = vmatpush1.bf16.msra.mxu0 0
      %608 = vmatprep.subr.bf16.mxu0 0
      %609 = vmatpush1.bf16.msra.mxu0 0
      %610 = vmatprep.subr.bf16.mxu0 0
      %611 = vmatpush1.bf16.msra.mxu0 0
      %612 = vmatprep.subr.bf16.mxu0 0
      %613 = vmatpush1.bf16.msra.mxu0 0
      %614 = vmatprep.subr.bf16.mxu0 0
      %615 = vmatpush1.bf16.msra.mxu0 0
      %616 = vmatprep.mubr.bf16.mxu0 0
      %617 = vmatmul.mubr.bf16.gmra.mrb[0].mxu0 %v508
      %v618 = vpop.f32.mrb[0].mxu0
      %v619 = vadd.f32 %v554, %v618
      %v620 = vpop.f32.mrb[0].mxu0
      %v621 = vpop.f32.mrb[0].mxu0
      %v622 = vadd.f32 %v557, %v621
      %v623 = vpop.f32.mrb[0].mxu0
      %624 = vmatprep.mubr.bf16.mxu0 0
      %625 = vmatmul.mubr.bf16.gmra.mrb[0].mxu0 %v511
      %v626 = vpop.f32.mrb[0].mxu0
      %v627 = vadd.f32 %v562, %v626
      %v628 = vpop.f32.mrb[0].mxu0
      %v629 = vpop.f32.mrb[0].mxu0
      %v630 = vadd.f32 %v565, %v629
      %v631 = vpop.f32.mrb[0].mxu0
      %632 = vmatprep.mubr.bf16.mxu0 0
      %633 = vmatmul.mubr.bf16.gmra.mrb[0].mxu0 %v514
      %v634 = vpop.f32.mrb[0].mxu0
      %v635 = vadd.f32 %v570, %v634
      %v636 = vpop.f32.mrb[0].mxu0
      %v637 = vpop.f32.mrb[0].mxu0
      %v638 = vadd.f32 %v573, %v637
      %v639 = vpop.f32.mrb[0].mxu0
      %640 = vmatprep.mubr.bf16.mxu0 0
      %641 = vmatmul.mubr.bf16.gmra.mrb[0].mxu0 %v517
      %v642 = vpop.f32.mrb[0].mxu0
      %v643 = vadd.f32 %v578, %v642
      %v644 = vpop.f32.mrb[0].mxu0
      %v645 = vpop.f32.mrb[0].mxu0
      %v646 = vadd.f32 %v581, %v645
      %v647 = vpop.f32.mrb[0].mxu0
      %648 = vdwg.mxu0
      %v649 = vadd.f32 %v278, %v619
      %v650 = vadd.f32 %v279, %v622
      %v651 = vadd.f32 %v280, %v627
      %v652 = vadd.f32 %v281, %v630
      %v653 = vadd.f32 %v282, %v635
      %v654 = vadd.f32 %v283, %v638
      %v655 = vadd.f32 %v284, %v643
      %v656 = vadd.f32 %v285, %v646
      %657 = vst [vmem:[#allocation2] sm:$0xff] %v649
      %658 = vst [vmem:[#allocation2 + $0x8] sm:$0xff] %v650
      %659 = vst [vmem:[#allocation2 + $0x10] sm:$0xff] %v651
      %660 = vst [vmem:[#allocation2 + $0x18] sm:$0xff] %v652
      %661 = vst [vmem:[#allocation2 + $0x20] sm:$0xff] %v653
      %662 = vst [vmem:[#allocation2 + $0x28] sm:$0xff] %v654
      %663 = vst [vmem:[#allocation2 + $0x30] sm:$0xff] %v655
      %664 = vst [vmem:[#allocation2 + $0x38] sm:$0xff] %v656
      // Predicated region
      $region37: #{generator_forward.6} parent=31 // pred_check
        %p665 = pneg %p266
      $region38: #{generator_forward.6} parent=31 // pred_check_branch
        %667 = sbr.rel (%p665) target = $region40
      $region39: #{generator_forward.6} parent=31 // pred_region
        %v668 = vld [vmem:[#allocation2] sm:$0xff]
        %v669 = vld [vmem:[#allocation2 + $0x8] sm:$0xff]
        %v670 = vld [vmem:[#allocation2 + $0x10] sm:$0xff]
        %v671 = vld [vmem:[#allocation2 + $0x18] sm:$0xff]
        %v672 = vld [vmem:[#allocation2 + $0x20] sm:$0xff]
        %v673 = vld [vmem:[#allocation2 + $0x28] sm:$0xff]
        %v674 = vld [vmem:[#allocation2 + $0x30] sm:$0xff]
        %v675 = vld [vmem:[#allocation2 + $0x38] sm:$0xff]
        %v676 = vld [vmem:[%s2] sm:$0x1]
        %v678 = vlaneseq
        %v679 = vshrl.u32 %v678, 7
        %v680 = vsub.s32 0, %v679
        %v681 = vrot.slane %v676, %v680
        %v683 = vadd.f32 %v668, %v681
        %v684 = vadd.f32 %v669, %v681
        %v685 = vadd.f32 %v670, %v681
        %v686 = vadd.f32 %v671, %v681
        %v687 = vadd.f32 %v672, %v681
        %v688 = vadd.f32 %v673, %v681
        %v689 = vadd.f32 %v674, %v681
        %v690 = vadd.f32 %v675, %v681
        %v691 = vpack.c.bf16 %v684, %v683
        %v692 = vpack.c.bf16 %v686, %v685
        %v693 = vpack.c.bf16 %v688, %v687
        %v694 = vpack.c.bf16 %v690, %v689
        %v699 = vunpack.c.l.b16 %v691
        %v700 = vunpack.c.h.b16 %v691
        %v701 = vunpack.c.l.b16 %v692
        %v702 = vunpack.c.h.b16 %v692
        %v703 = vunpack.c.l.b16 %v693
        %v704 = vunpack.c.h.b16 %v693
        %v705 = vunpack.c.l.b16 %v694
        %v706 = vunpack.c.h.b16 %v694
        %v707 = vpack.c.b16 %v699, %v699
        %v708 = vpack.c.b16 %v700, %v700
        %v709 = vpack.c.b16 %v701, %v701
        %v710 = vpack.c.b16 %v702, %v702
        %v711 = vpack.c.b16 %v703, %v703
        %v712 = vpack.c.b16 %v704, %v704
        %v713 = vpack.c.b16 %v705, %v705
        %v714 = vpack.c.b16 %v706, %v706
        %723 = vst [vmem:[%s259] sm:$0xf] %v707
        %724 = vst [vmem:[%s259 + $0x4] sm:$0xf] %v708
        %725 = vst [vmem:[%s259 + $0x8] sm:$0xf] %v709
        %726 = vst [vmem:[%s259 + $0xc] sm:$0xf] %v710
        %727 = vst [vmem:[%s259 + $0x10] sm:$0xf] %v711
        %728 = vst [vmem:[%s259 + $0x14] sm:$0xf] %v712
        %729 = vst [vmem:[%s259 + $0x18] sm:$0xf] %v713
        %730 = vst [vmem:[%s259 + $0x1c] sm:$0xf] %v714
        %v731 = vadd.f32 %v683, %v684
        %v732 = vadd.f32 %v731, %v685
        %v733 = vadd.f32 %v732, %v686
        %v734 = vadd.f32 %v733, %v687
        %v735 = vadd.f32 %v734, %v688
        %v736 = vadd.f32 %v735, %v689
        %v737 = vadd.f32 %v736, %v690
        %v738 = vrot.slane %v737, 4
        %v739 = vadd.f32 %v737, %v738
        %v740 = vrot.slane %v739, 2
        %v741 = vadd.f32 %v739, %v740
        %v742 = vrot.slane %v741, 1
        %v743 = vadd.f32 %v741, %v742
        %v744 = vmul.f32 %v683, %v683
        %v745 = vmul.f32 %v684, %v684
        %v746 = vmul.f32 %v685, %v685
        %v747 = vmul.f32 %v686, %v686
        %v748 = vmul.f32 %v687, %v687
        %v749 = vmul.f32 %v688, %v688
        %v750 = vmul.f32 %v689, %v689
        %v751 = vmul.f32 %v690, %v690
        %v752 = vadd.f32 %v744, %v745
        %v753 = vadd.f32 %v752, %v746
        %v754 = vadd.f32 %v753, %v747
        %v755 = vadd.f32 %v754, %v748
        %v756 = vadd.f32 %v755, %v749
        %v757 = vadd.f32 %v756, %v750
        %v758 = vadd.f32 %v757, %v751
        %v759 = vrot.slane %v758, 4
        %v760 = vadd.f32 %v758, %v759
        %v761 = vrot.slane %v760, 2
        %v762 = vadd.f32 %v760, %v761
        %v763 = vrot.slane %v762, 1
        %v764 = vadd.f32 %v762, %v763
        %vm765 = vcmask 1040384
        %v766 = vsel %vm765, %v743, %v764
        %767 = vst [vmem:[%s264] sm:$0x3] %v766
      $region40: #{generator_forward.6} parent=31 // pred_fallthru
        _
      %s768 = smul.u32 8, %s20
      %p769 = scmp.lt.s32.totalorder %s768, 15
      %s770 = scalar_select %p769, %s768, 15
      %s771 = smul.addr %s770, 4
      %s772 = scalar_lea.vmem %s3, %s771
      %p773 = scmp.lt.s32.totalorder %s20, 1
      %s774 = scalar_select %p773, %s20, 1
      %s775 = smul.addr %s774, 2
      %s776 = scalar_lea.vmem %s4, %s775
      // Predicated region
      $region41: #{generator_forward.6} parent=31 // pred_check
        %p777 = pneg %p121
      $region42: #{generator_forward.6} parent=31 // pred_check_branch
        %779 = sbr.rel (%p777) target = $region44
      $region43: #{generator_forward.6} parent=31 // pred_region
        %s780 = smul.u32 8, %s20
      $region44: #{generator_forward.6} parent=31 // pred_fallthru
        _
      // Predicated region
      $region45: #{generator_forward.6} parent=31 // pred_check
        %p781 = pneg %p147
      $region46: #{generator_forward.6} parent=31 // pred_check_branch
        %783 = sbr.rel (%p781) target = $region48
      $region47: #{generator_forward.6} parent=31 // pred_region
        _
      $region48: #{generator_forward.6} parent=31 // pred_fallthru
        _
    $region32: #{generator_forward.6} parent=5 // pred_fallthru
      _
    %p784 = scmp.le.s32.totalorder 2, %s11
    // Predicated region
    $region49: #{generator_forward.6} parent=5 // pred_check
      %p785 = pneg %p784
    $region50: #{generator_forward.6} parent=5 // pred_check_branch
      %787 = sbr.rel (%p785) target = $region52
    $region51: #{generator_forward.6} parent=5 // pred_region
      %s788 = ssub.s32 %s11, 2
      // Predicated region
      $region53: #{generator_forward.6} parent=51 // pred_check
        %p789 = pneg %p127
      $region54: #{generator_forward.6} parent=51 // pred_check_branch
        %791 = sbr.rel (%p789) target = $region56
      $region55: #{generator_forward.6} parent=51 // pred_region
        %s792 = smul.u32 8, %s22
        %p793 = scmp.lt.s32.totalorder %s792, 15
        %s794 = scalar_select %p793, %s792, 15
        %s795 = smul.addr %s794, 4
        %s796 = scalar_lea.vmem %s3, %s795
      $region56: #{generator_forward.6} parent=51 // pred_fallthru
        _
      // Predicated region
      $region57: #{generator_forward.6} parent=51 // pred_check
        %p797 = pneg %p153
      $region58: #{generator_forward.6} parent=51 // pred_check_branch
        %799 = sbr.rel (%p797) target = $region60
      $region59: #{generator_forward.6} parent=51 // pred_region
        %p800 = scmp.lt.s32.totalorder %s22, 1
        %s801 = scalar_select %p800, %s22, 1
        %s802 = smul.addr %s801, 2
        %s803 = scalar_lea.vmem %s4, %s802
      $region60: #{generator_forward.6} parent=51 // pred_fallthru
        _
    $region52: #{generator_forward.6} parent=5 // pred_fallthru
      _
  $region6: #{generator_forward.6} parent=0 // loop_footer
    %s15 = sadd.s32 1, %s11
  $region7: #{generator_forward.6} parent=0 // loop_footer_branch
    %10 = sbr.rel target = $region3
  $region8: #{generator_forward.6} parent=0 // loop_exit
    _

// kernel: generator_forward.7
$region0: #{generator_forward.7}
  #allocation0 [shape = 'u32[]', space=smem, size = 0x4, offset = 0x4, fixed_abs, tag = 'smem constant byte address 0x4 - core index']
  #allocation1 [shape = 'u32[144,128]{1,0:T(1,128)}', space=vmem, size = 0x12000, scoped, tag = 'internal scratch']
  #allocation2 [shape = 'f32[256,128]{1,0:T(8,128)}', space=vmem, size = 0x20000, scoped, tag = 'scratch operand']
  %s0 = inlined_call_operand.vmem [shape: bf16[512,144], index: 0, kind: input, shape index: {}]
  %s1 = inlined_call_operand.vmem [shape: bf16[144,128], index: 1, kind: input, shape index: {}]
  %s2 = inlined_call_operand.vmem [shape: f32[1,128], index: 2, kind: input, shape index: {}]
  %s3 = inlined_call_operand.vmem [shape: f32[512,128], index: 3, kind: output, shape index: {}]
  %s4 = sld [smem:[#allocation0]]
  $region53: #{generator_forward.7} parent=0
    _
  %s6 = ssub.s32 1, %s4
  %s7 = scalar_select 0, %s6, %s4
  loop: start=0, step=1, limit=4
  $region2: #{generator_forward.7} parent=0 // loop_pre_header
    _
  $region3: #{generator_forward.7} parent=0 // loop_header
    %s9 = sphi 0, %s13
    %p10 = scmp.ge.s32.totalorder %s9, 4
    %s16 = sphi 0, %s28
    %s17 = sphi 0, %s24
    %s18 = sphi 0, %s16
    %s19 = sphi 0, %s17
    %s20 = sphi 0, %s18
    %s21 = sphi 0, %s19
    %s33 = sphi 0, %s35
    %s36 = sphi 0, %s33
    %s37 = sphi 0, %s36
    %s53 = sphi 0, %s37
    %s59 = sphi 0, %s61
    %s62 = sphi 0, %s59
    %s63 = sphi 0, %s62
    %s79 = sphi 0, %s63
    %s83 = sphi 0, %s83
    %s85 = sphi 0, %s83
    %s86 = sphi 0, %s85
    %s100 = sphi 0, %s86
    %s106 = sphi 0, %s108
    %s109 = sphi 0, %s106
    %s110 = sphi 0, %s109
    %s126 = sphi 0, %s110
  $region4: #{generator_forward.7} parent=0 // loop_header_branch
    %12 = sbr.rel (%p10) target = $region8
  $region5: #{generator_forward.7} parent=0 // loop_body
    %s14 = ssub.s32 %s9, 1
    %s15 = ssub.s32 %s9, 2
    %s22 = sadd.s32 1, %s17
    %p23 = scmp.ge.s32.totalorder %s22, 1
    %s24 = scalar_select %p23, 0, %s22
    %s25 = sadd.s32 1, %s16
    %s26 = scalar_select %p23, %s25, %s16
    %p27 = scmp.ge.s32.totalorder %s26, 2
    %s28 = scalar_select %p27, 0, %s26
    %s29 = ssub.s32 %s16, %s28
    %s30 = ssub.s32 %s17, %s24
    %s31 = sor.u32 %s29, %s30
    %p32 = scmp.eq.s32.totalorder %s31, 0
    %s34 = sadd.s32 %s33, 1
    %s35 = scalar_select %p32, %s33, %s34
    %p38 = pneg %p32
    %p39 = scmp.eq.s32.totalorder %s9, 1
    %p40 = por %p38, %p39
    %p41 = scmp.ne.s32.totalorder %s33, %s36
    %p42 = scmp.eq.s32.totalorder %s9, 0
    %p43 = por %p41, %p42
    %p44 = scmp.ne.s32.totalorder %s33, %s36
    %p45 = scmp.eq.s32.totalorder %s14, 1
    %p46 = por %p44, %p45
    %p47 = scmp.ne.s32.totalorder %s36, %s37
    %p48 = scmp.eq.s32.totalorder %s14, 0
    %p49 = por %p47, %p48
    %p50 = scmp.ne.s32.totalorder %s36, %s37
    %p51 = scmp.eq.s32.totalorder %s15, 1
    %p52 = por %p50, %p51
    %p54 = scmp.ne.s32.totalorder %s37, %s53
    %p55 = scmp.eq.s32.totalorder %s15, 0
    %p56 = por %p54, %p55
    %s57 = ssub.s32 %s17, %s24
    %p58 = scmp.eq.s32.totalorder %s57, 0
    %s60 = sadd.s32 %s59, 1
    %s61 = scalar_select %p58, %s59, %s60
    %p64 = pneg %p58
    %p65 = scmp.eq.s32.totalorder %s9, 1
    %p66 = por %p64, %p65
    %p67 = scmp.ne.s32.totalorder %s59, %s62
    %p68 = scmp.eq.s32.totalorder %s9, 0
    %p69 = por %p67, %p68
    %p70 = scmp.ne.s32.totalorder %s59, %s62
    %p71 = scmp.eq.s32.totalorder %s14, 1
    %p72 = por %p70, %p71
    %p73 = scmp.ne.s32.totalorder %s62, %s63
    %p74 = scmp.eq.s32.totalorder %s14, 0
    %p75 = por %p73, %p74
    %p76 = scmp.ne.s32.totalorder %s62, %s63
    %p77 = scmp.eq.s32.totalorder %s15, 1
    %p78 = por %p76, %p77
    %p80 = scmp.ne.s32.totalorder %s63, %s79
    %p81 = scmp.eq.s32.totalorder %s15, 0
    %p82 = por %p80, %p81
    %s84 = sadd.s32 %s83, 1
    %p87 = scmp.eq.s32.totalorder %s9, 1
    %p88 = scmp.ne.s32.totalorder %s83, %s85
    %p89 = scmp.eq.s32.totalorder %s9, 0
    %p90 = por %p88, %p89
    %p91 = scmp.ne.s32.totalorder %s83, %s85
    %p92 = scmp.eq.s32.totalorder %s14, 1
    %p93 = por %p91, %p92
    %p94 = scmp.ne.s32.totalorder %s85, %s86
    %p95 = scmp.eq.s32.totalorder %s14, 0
    %p96 = por %p94, %p95
    %p97 = scmp.ne.s32.totalorder %s85, %s86
    %p98 = scmp.eq.s32.totalorder %s15, 1
    %p99 = por %p97, %p98
    %p101 = scmp.ne.s32.totalorder %s86, %s100
    %p102 = scmp.eq.s32.totalorder %s15, 0
    %p103 = por %p101, %p102
    %s104 = ssub.s32 %s16, %s28
    %p105 = scmp.eq.s32.totalorder %s104, 0
    %s107 = sadd.s32 %s106, 1
    %s108 = scalar_select %p105, %s106, %s107
    %p111 = pneg %p105
    %p112 = scmp.eq.s32.totalorder %s9, 1
    %p113 = por %p111, %p112
    %p114 = scmp.ne.s32.totalorder %s106, %s109
    %p115 = scmp.eq.s32.totalorder %s9, 0
    %p116 = por %p114, %p115
    %p117 = scmp.ne.s32.totalorder %s106, %s109
    %p118 = scmp.eq.s32.totalorder %s14, 1
    %p119 = por %p117, %p118
    %p120 = scmp.ne.s32.totalorder %s109, %s110
    %p121 = scmp.eq.s32.totalorder %s14, 0
    %p122 = por %p120, %p121
    %p123 = scmp.ne.s32.totalorder %s109, %s110
    %p124 = scmp.eq.s32.totalorder %s15, 1
    %p125 = por %p123, %p124
    %p127 = scmp.ne.s32.totalorder %s110, %s126
    %p128 = scmp.eq.s32.totalorder %s15, 0
    %p129 = por %p127, %p128
    %p130 = scmp.le.s32.totalorder 1, %s9
    %p131 = scmp.lt.s32.totalorder %s9, 3
    %p132 = pnand %p130, %p131
    %p133 = pneg %p132
    // Predicated region
    $region9: #{generator_forward.7} parent=5 // pred_check
      _
    $region10: #{generator_forward.7} parent=5 // pred_check_branch
      %135 = sbr.rel (%p132) target = $region12
    $region11: #{generator_forward.7} parent=5 // pred_region
      %s136 = ssub.s32 %s9, 1
      // Predicated region
      $region13: #{generator_forward.7} parent=11 // pred_check
        %p137 = pneg %p75
      $region14: #{generator_forward.7} parent=11 // pred_check_branch
        %139 = sbr.rel (%p137) target = $region16
      $region15: #{generator_forward.7} parent=11 // pred_region
        %s140 = smul.u32 18, %s19
        %p141 = scmp.lt.s32.totalorder %s140, 17
        %s142 = scalar_select %p141, %s140, 17
        %s143 = smul.addr %s142, 4
        %s144 = scalar_lea.vmem %s1, %s143
        %s145 = smul.u32 18, %s19
      $region16: #{generator_forward.7} parent=11 // pred_fallthru
        _
      // Predicated region
      $region17: #{generator_forward.7} parent=11 // pred_check
        %p146 = pneg %p96
      $region18: #{generator_forward.7} parent=11 // pred_check_branch
        %148 = sbr.rel (%p146) target = $region20
      $region19: #{generator_forward.7} parent=11 // pred_region
        _
      $region20: #{generator_forward.7} parent=11 // pred_fallthru
        _
    $region12: #{generator_forward.7} parent=5 // pred_fallthru
      _
    %p149 = scmp.lt.s32.totalorder %s9, 2
    // Predicated region
    $region21: #{generator_forward.7} parent=5 // pred_check
      %p150 = pneg %p149
    $region22: #{generator_forward.7} parent=5 // pred_check_branch
      %152 = sbr.rel (%p150) target = $region24
    $region23: #{generator_forward.7} parent=5 // pred_region
      // Predicated region
      $region25: #{generator_forward.7} parent=23 // pred_check
        %p153 = pneg %p43
      $region26: #{generator_forward.7} parent=23 // pred_check_branch
        %155 = sbr.rel (%p153) target = $region28
      $region27: #{generator_forward.7} parent=23 // pred_region
        %s156 = smul.u32 32, %s16
        %s157 = smul.u32 2, %s17
        %p158 = scmp.lt.s32.totalorder %s156, 63
        %s159 = scalar_select %p158, %s156, 63
        %p160 = scmp.lt.s32.totalorder %s157, 1
        %s161 = scalar_select %p160, %s157, 1
        %s162 = smul.addr %s159, 2
        %s163 = sadd.s32 %s161, %s162
        %s164 = smul.addr %s163, 4
        %s165 = scalar_lea.vmem %s0, %s164
        %s166 = smul.u32 32, %s16
        %s167 = smul.u32 2, %s17
      $region28: #{generator_forward.7} parent=23 // pred_fallthru
        _
    $region24: #{generator_forward.7} parent=5 // pred_fallthru
      _
    %p168 = scmp.le.s32.totalorder 1, %s9
    %p169 = scmp.lt.s32.totalorder %s9, 3
    %p170 = pnand %p168, %p169
    %p171 = pneg %p170
    // Predicated region
    $region29: #{generator_forward.7} parent=5 // pred_check
      _
    $region30: #{generator_forward.7} parent=5 // pred_check_branch
      %173 = sbr.rel (%p170) target = $region32
    $region31: #{generator_forward.7} parent=5 // pred_region
      %s174 = ssub.s32 %s9, 1
      %s175 = smul.u32 32, %s18
      %s176 = smul.u32 2, %s19
      %p177 = scmp.lt.s32.totalorder %s175, 63
      %s178 = scalar_select %p177, %s175, 63
      %p179 = scmp.lt.s32.totalorder %s176, 1
      %s180 = scalar_select %p179, %s176, 1
      %s181 = smul.addr %s178, 2
      %s182 = sadd.s32 %s180, %s181
      %s183 = smul.addr %s182, 4
      %s184 = scalar_lea.vmem %s0, %s183
      %p185 = pneg %p49
      %p186 = pneg %p46
      %s187 = smul.u32 18, %s19
      %p188 = scmp.lt.s32.totalorder %s187, 17
      %s189 = scalar_select %p188, %s187, 17
      %s190 = smul.addr %s189, 4
      %s191 = scalar_lea.vmem %s1, %s190
      %p192 = pneg %p75
      %p193 = pneg %p72
      %p194 = pneg %p96
      %p195 = pneg %p93
      %p196 = pneg %p122
      %p197 = pneg %p119
      %s198 = smul.u32 32, %s18
      %p199 = scmp.lt.s32.totalorder %s198, 63
      %s200 = scalar_select %p199, %s198, 63
      %s201 = smul.addr %s200, 8
      %s202 = scalar_lea.vmem %s3, %s201
      %s203 = smul.u32 32, %s18
      %s204 = smul.u32 2, %s19
      %p205 = scmp.lt.s32.totalorder %s203, 63
      %s206 = scalar_select %p205, %s203, 63
      %p207 = scmp.lt.s32.totalorder %s204, 1
      %s208 = scalar_select %p207, %s204, 1
      %s209 = smul.addr %s206, 2
      %s210 = sadd.s32 %s208, %s209
      %s211 = smul.addr %s210, 4
      %s212 = scalar_lea.vmem %s0, %s211
      %s213 = smul.u32 32, %s18
      %s214 = smul.u32 2, %s19
      %s215 = smul.u32 18, %s19
      %p216 = scmp.lt.s32.totalorder %s215, 17
      %s217 = scalar_select %p216, %s215, 17
      %s218 = smul.addr %s217, 4
      %s219 = scalar_lea.vmem %s1, %s218
      %s220 = smul.u32 18, %s19
      %s221 = smul.u32 32, %s18
      %p222 = scmp.lt.s32.totalorder %s221, 63
      %s223 = scalar_select %p222, %s221, 63
      %s224 = smul.addr %s223, 8
      %s225 = scalar_lea.vmem %s3, %s224
      %s226 = smul.u32 32, %s18
      %p228 = scmp.eq.s32.totalorder %s19, 0
      // Predicated region
      $region33: #{generator_forward.7} parent=31 // pred_check
        %p229 = pneg %p228
      $region34: #{generator_forward.7} parent=31 // pred_check_branch
        %231 = sbr.rel (%p229) target = $region36
      $region35: #{generator_forward.7} parent=31 // pred_region
        %232 = vst [vmem:[#allocation2] sm:$0xff] 0.0
        %233 = vst [vmem:[#allocation2 + $0x8] sm:$0xff] 0.0
        %234 = vst [vmem:[#allocation2 + $0x10] sm:$0xff] 0.0
        %235 = vst [vmem:[#allocation2 + $0x18] sm:$0xff] 0.0
        %236 = vst [vmem:[#allocation2 + $0x20] sm:$0xff] 0.0
        %237 = vst [vmem:[#allocation2 + $0x28] sm:$0xff] 0.0
        %238 = vst [vmem:[#allocation2 + $0x30] sm:$0xff] 0.0
        %239 = vst [vmem:[#allocation2 + $0x38] sm:$0xff] 0.0
        %240 = vst [vmem:[#allocation2 + $0x40] sm:$0xff] 0.0
        %241 = vst [vmem:[#allocation2 + $0x48] sm:$0xff] 0.0
        %242 = vst [vmem:[#allocation2 + $0x50] sm:$0xff] 0.0
        %243 = vst [vmem:[#allocation2 + $0x58] sm:$0xff] 0.0
        %244 = vst [vmem:[#allocation2 + $0x60] sm:$0xff] 0.0
        %245 = vst [vmem:[#allocation2 + $0x68] sm:$0xff] 0.0
        %246 = vst [vmem:[#allocation2 + $0x70] sm:$0xff] 0.0
        %247 = vst [vmem:[#allocation2 + $0x78] sm:$0xff] 0.0
        %248 = vst [vmem:[#allocation2 + $0x80] sm:$0xff] 0.0
        %249 = vst [vmem:[#allocation2 + $0x88] sm:$0xff] 0.0
        %250 = vst [vmem:[#allocation2 + $0x90] sm:$0xff] 0.0
        %251 = vst [vmem:[#allocation2 + $0x98] sm:$0xff] 0.0
        %252 = vst [vmem:[#allocation2 + $0xa0] sm:$0xff] 0.0
        %253 = vst [vmem:[#allocation2 + $0xa8] sm:$0xff] 0.0
        %254 = vst [vmem:[#allocation2 + $0xb0] sm:$0xff] 0.0
        %255 = vst [vmem:[#allocation2 + $0xb8] sm:$0xff] 0.0
        %256 = vst [vmem:[#allocation2 + $0xc0] sm:$0xff] 0.0
        %257 = vst [vmem:[#allocation2 + $0xc8] sm:$0xff] 0.0
        %258 = vst [vmem:[#allocation2 + $0xd0] sm:$0xff] 0.0
        %259 = vst [vmem:[#allocation2 + $0xd8] sm:$0xff] 0.0
        %260 = vst [vmem:[#allocation2 + $0xe0] sm:$0xff] 0.0
        %261 = vst [vmem:[#allocation2 + $0xe8] sm:$0xff] 0.0
        %262 = vst [vmem:[#allocation2 + $0xf0] sm:$0xff] 0.0
        %263 = vst [vmem:[#allocation2 + $0xf8] sm:$0xff] 0.0
      $region36: #{generator_forward.7} parent=31 // pred_fallthru
        _
      %v264 = vld [vmem:[#allocation2] sm:$0xff]
      %v265 = vld [vmem:[#allocation2 + $0x8] sm:$0xff]
      %v266 = vld [vmem:[#allocation2 + $0x10] sm:$0xff]
      %v267 = vld [vmem:[#allocation2 + $0x18] sm:$0xff]
      %v268 = vld [vmem:[#allocation2 + $0x20] sm:$0xff]
      %v269 = vld [vmem:[#allocation2 + $0x28] sm:$0xff]
      %v270 = vld [vmem:[#allocation2 + $0x30] sm:$0xff]
      %v271 = vld [vmem:[#allocation2 + $0x38] sm:$0xff]
      %v272 = vld [vmem:[#allocation2 + $0x40] sm:$0xff]
      %v273 = vld [vmem:[#allocation2 + $0x48] sm:$0xff]
      %v274 = vld [vmem:[#allocation2 + $0x50] sm:$0xff]
      %v275 = vld [vmem:[#allocation2 + $0x58] sm:$0xff]
      %v276 = vld [vmem:[#allocation2 + $0x60] sm:$0xff]
      %v277 = vld [vmem:[#allocation2 + $0x68] sm:$0xff]
      %v278 = vld [vmem:[#allocation2 + $0x70] sm:$0xff]
      %v279 = vld [vmem:[#allocation2 + $0x78] sm:$0xff]
      %v280 = vld [vmem:[#allocation2 + $0x80] sm:$0xff]
      %v281 = vld [vmem:[#allocation2 + $0x88] sm:$0xff]
      %v282 = vld [vmem:[#allocation2 + $0x90] sm:$0xff]
      %v283 = vld [vmem:[#allocation2 + $0x98] sm:$0xff]
      %v284 = vld [vmem:[#allocation2 + $0xa0] sm:$0xff]
      %v285 = vld [vmem:[#allocation2 + $0xa8] sm:$0xff]
      %v286 = vld [vmem:[#allocation2 + $0xb0] sm:$0xff]
      %v287 = vld [vmem:[#allocation2 + $0xb8] sm:$0xff]
      %v288 = vld [vmem:[#allocation2 + $0xc0] sm:$0xff]
      %v289 = vld [vmem:[#allocation2 + $0xc8] sm:$0xff]
      %v290 = vld [vmem:[#allocation2 + $0xd0] sm:$0xff]
      %v291 = vld [vmem:[#allocation2 + $0xd8] sm:$0xff]
      %v292 = vld [vmem:[#allocation2 + $0xe0] sm:$0xff]
      %v293 = vld [vmem:[#allocation2 + $0xe8] sm:$0xff]
      %v294 = vld [vmem:[#allocation2 + $0xf0] sm:$0xff]
      %v295 = vld [vmem:[#allocation2 + $0xf8] sm:$0xff]
      %v296 = vld [vmem:[%s212] sm:$0xff]
      %v297 = vld [vmem:[%s212 + $0x8] sm:$0xff]
      %v298 = vld [vmem:[%s212 + $0x10] sm:$0xff]
      %v299 = vld [vmem:[%s212 + $0x18] sm:$0xff]
      %v300 = vld [vmem:[%s212 + $0x20] sm:$0xff]
      %v301 = vld [vmem:[%s212 + $0x28] sm:$0xff]
      %v302 = vld [vmem:[%s212 + $0x30] sm:$0xff]
      %v303 = vld [vmem:[%s212 + $0x38] sm:$0xff]
      %v304 = vld [vmem:[%s212 + $0x40] sm:$0xff]
      %v305 = vld [vmem:[%s212 + $0x48] sm:$0xff]
      %v306 = vld [vmem:[%s212 + $0x50] sm:$0xff]
      %v307 = vld [vmem:[%s212 + $0x58] sm:$0xff]
      %v308 = vld [vmem:[%s212 + $0x60] sm:$0xff]
      %v309 = vld [vmem:[%s212 + $0x68] sm:$0xff]
      %v310 = vld [vmem:[%s212 + $0x70] sm:$0xff]
      %v311 = vld [vmem:[%s212 + $0x78] sm:$0xff]
      %v312 = vld [vmem:[%s212 + $0x80] sm:$0xff]
      %v313 = vld [vmem:[%s212 + $0x88] sm:$0xff]
      %v314 = vld [vmem:[%s212 + $0x90] sm:$0xff]
      %v315 = vld [vmem:[%s212 + $0x98] sm:$0xff]
      %v316 = vld [vmem:[%s212 + $0xa0] sm:$0xff]
      %v317 = vld [vmem:[%s212 + $0xa8] sm:$0xff]
      %v318 = vld [vmem:[%s212 + $0xb0] sm:$0xff]
      %v319 = vld [vmem:[%s212 + $0xb8] sm:$0xff]
      %v320 = vld [vmem:[%s212 + $0xc0] sm:$0xff]
      %v321 = vld [vmem:[%s212 + $0xc8] sm:$0xff]
      %v322 = vld [vmem:[%s212 + $0xd0] sm:$0xff]
      %v323 = vld [vmem:[%s212 + $0xd8] sm:$0xff]
      %v324 = vld [vmem:[%s212 + $0xe0] sm:$0xff]
      %v325 = vld [vmem:[%s212 + $0xe8] sm:$0xff]
      %v326 = vld [vmem:[%s212 + $0xf0] sm:$0xff]
      %v327 = vld [vmem:[%s212 + $0xf8] sm:$0xff]
      %v328 = vld [vmem:[%s219] sm:$0xf]
      %v329 = vld [vmem:[%s219 + $0x4] sm:$0xf]
      %v330 = vld [vmem:[%s219 + $0x8] sm:$0xf]
      %v331 = vld [vmem:[%s219 + $0xc] sm:$0xf]
      %v332 = vld [vmem:[%s219 + $0x10] sm:$0xf]
      %v333 = vld [vmem:[%s219 + $0x14] sm:$0xf]
      %v334 = vld [vmem:[%s219 + $0x18] sm:$0xf]
      %v335 = vld [vmem:[%s219 + $0x1c] sm:$0xf]
      %v336 = vld [vmem:[%s219 + $0x20] sm:$0xf]
      %v337 = vld [vmem:[%s219 + $0x24] sm:$0xf]
      %v338 = vld [vmem:[%s219 + $0x28] sm:$0xf]
      %v339 = vld [vmem:[%s219 + $0x2c] sm:$0xf]
      %v340 = vld [vmem:[%s219 + $0x30] sm:$0xf]
      %v341 = vld [vmem:[%s219 + $0x34] sm:$0xf]
      %v342 = vld [vmem:[%s219 + $0x38] sm:$0xf]
      %v343 = vld [vmem:[%s219 + $0x3c] sm:$0xf]
      %v344 = vld [vmem:[%s219 + $0x40] sm:$0xf]
      %v345 = vld [vmem:[%s219 + $0x44] sm:$0xf]
      %v378 = vunpack.c.l.b16 %v296
      %v379 = vunpack.c.h.b16 %v296
      %v380 = vunpack.c.l.b16 %v297
      %v381 = vunpack.c.h.b16 %v297
      %v382 = vunpack.c.l.b16 %v298
      %v383 = vunpack.c.h.b16 %v298
      %v384 = vunpack.c.l.b16 %v299
      %v385 = vunpack.c.h.b16 %v299
      %v386 = vunpack.c.l.b16 %v300
      %v387 = vunpack.c.h.b16 %v300
      %v388 = vunpack.c.l.b16 %v301
      %v389 = vunpack.c.h.b16 %v301
      %v390 = vunpack.c.l.b16 %v302
      %v391 = vunpack.c.h.b16 %v302
      %v392 = vunpack.c.l.b16 %v303
      %v393 = vunpack.c.h.b16 %v303
      %v394 = vunpack.c.l.b16 %v304
      %v395 = vunpack.c.h.b16 %v304
      %v396 = vunpack.c.l.b16 %v305
      %v397 = vunpack.c.h.b16 %v305
      %v398 = vunpack.c.l.b16 %v306
      %v399 = vunpack.c.h.b16 %v306
      %v400 = vunpack.c.l.b16 %v307
      %v401 = vunpack.c.h.b16 %v307
      %v402 = vunpack.c.l.b16 %v308
      %v403 = vunpack.c.h.b16 %v308
      %v404 = vunpack.c.l.b16 %v309
      %v405 = vunpack.c.h.b16 %v309
      %v406 = vunpack.c.l.b16 %v310
      %v407 = vunpack.c.h.b16 %v310
      %v408 = vunpack.c.l.b16 %v311
      %v409 = vunpack.c.h.b16 %v311
      %v410 = vunpack.c.l.b16 %v312
      %v411 = vunpack.c.h.b16 %v312
      %v412 = vunpack.c.l.b16 %v313
      %v413 = vunpack.c.h.b16 %v313
      %v414 = vunpack.c.l.b16 %v314
      %v415 = vunpack.c.h.b16 %v314
      %v416 = vunpack.c.l.b16 %v315
      %v417 = vunpack.c.h.b16 %v315
      %v418 = vunpack.c.l.b16 %v316
      %v419 = vunpack.c.h.b16 %v316
      %v420 = vunpack.c.l.b16 %v317
      %v421 = vunpack.c.h.b16 %v317
      %v422 = vunpack.c.l.b16 %v318
      %v423 = vunpack.c.h.b16 %v318
      %v424 = vunpack.c.l.b16 %v319
      %v425 = vunpack.c.h.b16 %v319
      %v426 = vunpack.c.l.b16 %v320
      %v427 = vunpack.c.h.b16 %v320
      %v428 = vunpack.c.l.b16 %v321
      %v429 = vunpack.c.h.b16 %v321
      %v430 = vunpack.c.l.b16 %v322
      %v431 = vunpack.c.h.b16 %v322
      %v432 = vunpack.c.l.b16 %v323
      %v433 = vunpack.c.h.b16 %v323
      %v434 = vunpack.c.l.b16 %v324
      %v435 = vunpack.c.h.b16 %v324
      %v436 = vunpack.c.l.b16 %v325
      %v437 = vunpack.c.h.b16 %v325
      %v438 = vunpack.c.l.b16 %v326
      %v439 = vunpack.c.h.b16 %v326
      %v440 = vunpack.c.l.b16 %v327
      %v441 = vunpack.c.h.b16 %v327
      %v442 = vpack.c.b16 %v380, %v378
      %v443 = vpack.c.b16 %v381, %v379
      %v444 = vpack.c.b16 %v384, %v382
      %v445 = vpack.c.b16 %v385, %v383
      %v446 = vpack.c.b16 %v388, %v386
      %v447 = vpack.c.b16 %v389, %v387
      %v448 = vpack.c.b16 %v392, %v390
      %v449 = vpack.c.b16 %v393, %v391
      %v450 = vpack.c.b16 %v396, %v394
      %v451 = vpack.c.b16 %v397, %v395
      %v452 = vpack.c.b16 %v400, %v398
      %v453 = vpack.c.b16 %v401, %v399
      %v454 = vpack.c.b16 %v404, %v402
      %v455 = vpack.c.b16 %v405, %v403
      %v456 = vpack.c.b16 %v408, %v406
      %v457 = vpack.c.b16 %v409, %v407
      %v458 = vpack.c.b16 %v412, %v410
      %v459 = vpack.c.b16 %v413, %v411
      %v460 = vpack.c.b16 %v416, %v414
      %v461 = vpack.c.b16 %v417, %v415
      %v462 = vpack.c.b16 %v420, %v418
      %v463 = vpack.c.b16 %v421, %v419
      %v464 = vpack.c.b16 %v424, %v422
      %v465 = vpack.c.b16 %v425, %v423
      %v466 = vpack.c.b16 %v428, %v426
      %v467 = vpack.c.b16 %v429, %v427
      %v468 = vpack.c.b16 %v432, %v430
      %v469 = vpack.c.b16 %v433, %v431
      %v470 = vpack.c.b16 %v436, %v434
      %v471 = vpack.c.b16 %v437, %v435
      %v472 = vpack.c.b16 %v440, %v438
      %v473 = vpack.c.b16 %v441, %v439
      %v508 = vunpack.c.l.b16 %v328
      %v509 = vunpack.c.l.b16 %v329
      %v510 = vunpack.c.l.b16 %v330
      %v511 = vunpack.c.l.b16 %v331
      %v512 = vunpack.c.l.b16 %v332
      %v513 = vunpack.c.l.b16 %v333
      %v514 = vunpack.c.l.b16 %v334
      %v515 = vunpack.c.l.b16 %v335
      %v516 = vunpack.c.l.b16 %v336
      %v517 = vunpack.c.l.b16 %v337
      %v518 = vunpack.c.l.b16 %v338
      %v519 = vunpack.c.l.b16 %v339
      %v520 = vunpack.c.l.b16 %v340
      %v521 = vunpack.c.l.b16 %v341
      %v522 = vunpack.c.l.b16 %v342
      %v523 = vunpack.c.l.b16 %v343
      %v524 = vunpack.c.l.b16 %v344
      %v525 = vunpack.c.l.b16 %v345
      %v526 = vpack.c.b16 %v509, %v508
      %v527 = vpack.c.b16 %v511, %v510
      %v528 = vpack.c.b16 %v513, %v512
      %v529 = vpack.c.b16 %v515, %v514
      %v530 = vpack.c.b16 %v517, %v516
      %v531 = vpack.c.b16 %v519, %v518
      %v532 = vpack.c.b16 %v521, %v520
      %v533 = vpack.c.b16 %v523, %v522
      %v534 = vpack.c.b16 %v525, %v524
      %vm544 = vcmask 130048
      %v546 = vsel %vm544, %v443, 0
      %v549 = vsel %vm544, %v445, 0
      %v552 = vsel %vm544, %v447, 0
      %v555 = vsel %vm544, %v449, 0
      %v558 = vsel %vm544, %v451, 0
      %v561 = vsel %vm544, %v453, 0
      %v564 = vsel %vm544, %v455, 0
      %v567 = vsel %vm544, %v457, 0
      %v570 = vsel %vm544, %v459, 0
      %v573 = vsel %vm544, %v461, 0
      %v576 = vsel %vm544, %v463, 0
      %v579 = vsel %vm544, %v465, 0
      %v582 = vsel %vm544, %v467, 0
      %v585 = vsel %vm544, %v469, 0
      %v588 = vsel %vm544, %v471, 0
      %v591 = vsel %vm544, %v473, 0
      %593 = vmatprep.subr.bf16.mxu0 0
      %594 = vmatpush1.bf16.msra.mxu0 %v526
      %595 = vmatprep.subr.bf16.mxu0 0
      %596 = vmatpush1.bf16.msra.mxu0 %v527
      %597 = vmatprep.subr.bf16.mxu0 0
      %598 = vmatpush1.bf16.msra.mxu0 %v528
      %599 = vmatprep.subr.bf16.mxu0 0
      %600 = vmatpush1.bf16.msra.mxu0 %v529
      %601 = vmatprep.subr.bf16.mxu0 0
      %602 = vmatpush1.bf16.msra.mxu0 %v530
      %603 = vmatprep.subr.bf16.mxu0 0
      %604 = vmatpush1.bf16.msra.mxu0 %v531
      %605 = vmatprep.subr.bf16.mxu0 0
      %606 = vmatpush1.bf16.msra.mxu0 %v532
      %607 = vmatprep.subr.bf16.mxu0 0
      %608 = vmatpush1.bf16.msra.mxu0 %v533
      %609 = vmatprep.subr.bf16.mxu0 0
      %610 = vmatpush1.bf16.msra.mxu0 %v534
      %611 = vmatprep.subr.bf16.mxu0 0
      %612 = vmatpush1.bf16.msra.mxu0 0
      %613 = vmatprep.subr.bf16.mxu0 0
      %614 = vmatpush1.bf16.msra.mxu0 0
      %615 = vmatprep.subr.bf16.mxu0 0
      %616 = vmatpush1.bf16.msra.mxu0 0
      %617 = vmatprep.subr.bf16.mxu0 0
      %618 = vmatpush1.bf16.msra.mxu0 0
      %619 = vmatprep.subr.bf16.mxu0 0
      %620 = vmatpush1.bf16.msra.mxu0 0
      %621 = vmatprep.subr.bf16.mxu0 0
      %622 = vmatpush1.bf16.msra.mxu0 0
      %623 = vmatprep.subr.bf16.mxu0 0
      %624 = vmatpush1.bf16.msra.mxu0 0
      %625 = vmatprep.mubr.bf16.mxu0 %v546
      %626 = vmatmul.mubr.bf16.gmra.mrb[0].mxu0 %v442
      %v627 = vpop.f32.mrb[0].mxu0
      %v628 = vadd.f32 0.0, %v627
      %v629 = vpop.f32.mrb[0].mxu0
      %v630 = vpop.f32.mrb[0].mxu0
      %v631 = vadd.f32 0.0, %v630
      %v632 = vpop.f32.mrb[0].mxu0
      %633 = vmatprep.mubr.bf16.mxu0 %v549
      %634 = vmatmul.mubr.bf16.gmra.mrb[0].mxu0 %v444
      %v635 = vpop.f32.mrb[0].mxu0
      %v636 = vadd.f32 0.0, %v635
      %v637 = vpop.f32.mrb[0].mxu0
      %v638 = vpop.f32.mrb[0].mxu0
      %v639 = vadd.f32 0.0, %v638
      %v640 = vpop.f32.mrb[0].mxu0
      %641 = vmatprep.mubr.bf16.mxu0 %v552
      %642 = vmatmul.mubr.bf16.gmra.mrb[0].mxu0 %v446
      %v643 = vpop.f32.mrb[0].mxu0
      %v644 = vadd.f32 0.0, %v643
      %v645 = vpop.f32.mrb[0].mxu0
      %v646 = vpop.f32.mrb[0].mxu0
      %v647 = vadd.f32 0.0, %v646
      %v648 = vpop.f32.mrb[0].mxu0
      %649 = vmatprep.mubr.bf16.mxu0 %v555
      %650 = vmatmul.mubr.bf16.gmra.mrb[0].mxu0 %v448
      %v651 = vpop.f32.mrb[0].mxu0
      %v652 = vadd.f32 0.0, %v651
      %v653 = vpop.f32.mrb[0].mxu0
      %v654 = vpop.f32.mrb[0].mxu0
      %v655 = vadd.f32 0.0, %v654
      %v656 = vpop.f32.mrb[0].mxu0
      %657 = vmatprep.mubr.bf16.mxu0 %v558
      %658 = vmatmul.mubr.bf16.gmra.mrb[0].mxu0 %v450
      %v659 = vpop.f32.mrb[0].mxu0
      %v660 = vadd.f32 0.0, %v659
      %v661 = vpop.f32.mrb[0].mxu0
      %v662 = vpop.f32.mrb[0].mxu0
      %v663 = vadd.f32 0.0, %v662
      %v664 = vpop.f32.mrb[0].mxu0
      %665 = vmatprep.mubr.bf16.mxu0 %v561
      %666 = vmatmul.mubr.bf16.gmra.mrb[0].mxu0 %v452
      %v667 = vpop.f32.mrb[0].mxu0
      %v668 = vadd.f32 0.0, %v667
      %v669 = vpop.f32.mrb[0].mxu0
      %v670 = vpop.f32.mrb[0].mxu0
      %v671 = vadd.f32 0.0, %v670
      %v672 = vpop.f32.mrb[0].mxu0
      %673 = vmatprep.mubr.bf16.mxu0 %v564
      %674 = vmatmul.mubr.bf16.gmra.mrb[0].mxu0 %v454
      %v675 = vpop.f32.mrb[0].mxu0
      %v676 = vadd.f32 0.0, %v675
      %v677 = vpop.f32.mrb[0].mxu0
      %v678 = vpop.f32.mrb[0].mxu0
      %v679 = vadd.f32 0.0, %v678
      %v680 = vpop.f32.mrb[0].mxu0
      %681 = vmatprep.mubr.bf16.mxu0 %v567
      %682 = vmatmul.mubr.bf16.gmra.mrb[0].mxu0 %v456
      %v683 = vpop.f32.mrb[0].mxu0
      %v684 = vadd.f32 0.0, %v683
      %v685 = vpop.f32.mrb[0].mxu0
      %v686 = vpop.f32.mrb[0].mxu0
      %v687 = vadd.f32 0.0, %v686
      %v688 = vpop.f32.mrb[0].mxu0
      %689 = vmatprep.mubr.bf16.mxu0 %v570
      %690 = vmatmul.mubr.bf16.gmra.mrb[0].mxu0 %v458
      %v691 = vpop.f32.mrb[0].mxu0
      %v692 = vadd.f32 0.0, %v691
      %v693 = vpop.f32.mrb[0].mxu0
      %v694 = vpop.f32.mrb[0].mxu0
      %v695 = vadd.f32 0.0, %v694
      %v696 = vpop.f32.mrb[0].mxu0
      %697 = vmatprep.mubr.bf16.mxu0 %v573
      %698 = vmatmul.mubr.bf16.gmra.mrb[0].mxu0 %v460
      %v699 = vpop.f32.mrb[0].mxu0
      %v700 = vadd.f32 0.0, %v699
      %v701 = vpop.f32.mrb[0].mxu0
      %v702 = vpop.f32.mrb[0].mxu0
      %v703 = vadd.f32 0.0, %v702
      %v704 = vpop.f32.mrb[0].mxu0
      %705 = vmatprep.mubr.bf16.mxu0 %v576
      %706 = vmatmul.mubr.bf16.gmra.mrb[0].mxu0 %v462
      %v707 = vpop.f32.mrb[0].mxu0
      %v708 = vadd.f32 0.0, %v707
      %v709 = vpop.f32.mrb[0].mxu0
      %v710 = vpop.f32.mrb[0].mxu0
      %v711 = vadd.f32 0.0, %v710
      %v712 = vpop.f32.mrb[0].mxu0
      %713 = vmatprep.mubr.bf16.mxu0 %v579
      %714 = vmatmul.mubr.bf16.gmra.mrb[0].mxu0 %v464
      %v715 = vpop.f32.mrb[0].mxu0
      %v716 = vadd.f32 0.0, %v715
      %v717 = vpop.f32.mrb[0].mxu0
      %v718 = vpop.f32.mrb[0].mxu0
      %v719 = vadd.f32 0.0, %v718
      %v720 = vpop.f32.mrb[0].mxu0
      %721 = vmatprep.mubr.bf16.mxu0 %v582
      %722 = vmatmul.mubr.bf16.gmra.mrb[0].mxu0 %v466
      %v723 = vpop.f32.mrb[0].mxu0
      %v724 = vadd.f32 0.0, %v723
      %v725 = vpop.f32.mrb[0].mxu0
      %v726 = vpop.f32.mrb[0].mxu0
      %v727 = vadd.f32 0.0, %v726
      %v728 = vpop.f32.mrb[0].mxu0
      %729 = vmatprep.mubr.bf16.mxu0 %v585
      %730 = vmatmul.mubr.bf16.gmra.mrb[0].mxu0 %v468
      %v731 = vpop.f32.mrb[0].mxu0
      %v732 = vadd.f32 0.0, %v731
      %v733 = vpop.f32.mrb[0].mxu0
      %v734 = vpop.f32.mrb[0].mxu0
      %v735 = vadd.f32 0.0, %v734
      %v736 = vpop.f32.mrb[0].mxu0
      %737 = vmatprep.mubr.bf16.mxu0 %v588
      %738 = vmatmul.mubr.bf16.gmra.mrb[0].mxu0 %v470
      %v739 = vpop.f32.mrb[0].mxu0
      %v740 = vadd.f32 0.0, %v739
      %v741 = vpop.f32.mrb[0].mxu0
      %v742 = vpop.f32.mrb[0].mxu0
      %v743 = vadd.f32 0.0, %v742
      %v744 = vpop.f32.mrb[0].mxu0
      %745 = vmatprep.mubr.bf16.mxu0 %v591
      %746 = vmatmul.mubr.bf16.gmra.mrb[0].mxu0 %v472
      %v747 = vpop.f32.mrb[0].mxu0
      %v748 = vadd.f32 0.0, %v747
      %v749 = vpop.f32.mrb[0].mxu0
      %v750 = vpop.f32.mrb[0].mxu0
      %v751 = vadd.f32 0.0, %v750
      %v752 = vpop.f32.mrb[0].mxu0
      %753 = vdwg.mxu0
      %v754 = vadd.f32 %v264, %v628
      %v755 = vadd.f32 %v265, %v631
      %v756 = vadd.f32 %v266, %v636
      %v757 = vadd.f32 %v267, %v639
      %v758 = vadd.f32 %v268, %v644
      %v759 = vadd.f32 %v269, %v647
      %v760 = vadd.f32 %v270, %v652
      %v761 = vadd.f32 %v271, %v655
      %v762 = vadd.f32 %v272, %v660
      %v763 = vadd.f32 %v273, %v663
      %v764 = vadd.f32 %v274, %v668
      %v765 = vadd.f32 %v275, %v671
      %v766 = vadd.f32 %v276, %v676
      %v767 = vadd.f32 %v277, %v679
      %v768 = vadd.f32 %v278, %v684
      %v769 = vadd.f32 %v279, %v687
      %v770 = vadd.f32 %v280, %v692
      %v771 = vadd.f32 %v281, %v695
      %v772 = vadd.f32 %v282, %v700
      %v773 = vadd.f32 %v283, %v703
      %v774 = vadd.f32 %v284, %v708
      %v775 = vadd.f32 %v285, %v711
      %v776 = vadd.f32 %v286, %v716
      %v777 = vadd.f32 %v287, %v719
      %v778 = vadd.f32 %v288, %v724
      %v779 = vadd.f32 %v289, %v727
      %v780 = vadd.f32 %v290, %v732
      %v781 = vadd.f32 %v291, %v735
      %v782 = vadd.f32 %v292, %v740
      %v783 = vadd.f32 %v293, %v743
      %v784 = vadd.f32 %v294, %v748
      %v785 = vadd.f32 %v295, %v751
      %786 = vst [vmem:[#allocation2] sm:$0xff] %v754
      %787 = vst [vmem:[#allocation2 + $0x8] sm:$0xff] %v755
      %788 = vst [vmem:[#allocation2 + $0x10] sm:$0xff] %v756
      %789 = vst [vmem:[#allocation2 + $0x18] sm:$0xff] %v757
      %790 = vst [vmem:[#allocation2 + $0x20] sm:$0xff] %v758
      %791 = vst [vmem:[#allocation2 + $0x28] sm:$0xff] %v759
      %792 = vst [vmem:[#allocation2 + $0x30] sm:$0xff] %v760
      %793 = vst [vmem:[#allocation2 + $0x38] sm:$0xff] %v761
      %794 = vst [vmem:[#allocation2 + $0x40] sm:$0xff] %v762
      %795 = vst [vmem:[#allocation2 + $0x48] sm:$0xff] %v763
      %796 = vst [vmem:[#allocation2 + $0x50] sm:$0xff] %v764
      %797 = vst [vmem:[#allocation2 + $0x58] sm:$0xff] %v765
      %798 = vst [vmem:[#allocation2 + $0x60] sm:$0xff] %v766
      %799 = vst [vmem:[#allocation2 + $0x68] sm:$0xff] %v767
      %800 = vst [vmem:[#allocation2 + $0x70] sm:$0xff] %v768
      %801 = vst [vmem:[#allocation2 + $0x78] sm:$0xff] %v769
      %802 = vst [vmem:[#allocation2 + $0x80] sm:$0xff] %v770
      %803 = vst [vmem:[#allocation2 + $0x88] sm:$0xff] %v771
      %804 = vst [vmem:[#allocation2 + $0x90] sm:$0xff] %v772
      %805 = vst [vmem:[#allocation2 + $0x98] sm:$0xff] %v773
      %806 = vst [vmem:[#allocation2 + $0xa0] sm:$0xff] %v774
      %807 = vst [vmem:[#allocation2 + $0xa8] sm:$0xff] %v775
      %808 = vst [vmem:[#allocation2 + $0xb0] sm:$0xff] %v776
      %809 = vst [vmem:[#allocation2 + $0xb8] sm:$0xff] %v777
      %810 = vst [vmem:[#allocation2 + $0xc0] sm:$0xff] %v778
      %811 = vst [vmem:[#allocation2 + $0xc8] sm:$0xff] %v779
      %812 = vst [vmem:[#allocation2 + $0xd0] sm:$0xff] %v780
      %813 = vst [vmem:[#allocation2 + $0xd8] sm:$0xff] %v781
      %814 = vst [vmem:[#allocation2 + $0xe0] sm:$0xff] %v782
      %815 = vst [vmem:[#allocation2 + $0xe8] sm:$0xff] %v783
      %816 = vst [vmem:[#allocation2 + $0xf0] sm:$0xff] %v784
      %817 = vst [vmem:[#allocation2 + $0xf8] sm:$0xff] %v785
      // Predicated region
      $region37: #{generator_forward.7} parent=31 // pred_check
        %p818 = pneg %p228
      $region38: #{generator_forward.7} parent=31 // pred_check_branch
        %820 = sbr.rel (%p818) target = $region40
      $region39: #{generator_forward.7} parent=31 // pred_region
        %v821 = vld [vmem:[#allocation2] sm:$0xff]
        %v822 = vld [vmem:[#allocation2 + $0x8] sm:$0xff]
        %v823 = vld [vmem:[#allocation2 + $0x10] sm:$0xff]
        %v824 = vld [vmem:[#allocation2 + $0x18] sm:$0xff]
        %v825 = vld [vmem:[#allocation2 + $0x20] sm:$0xff]
        %v826 = vld [vmem:[#allocation2 + $0x28] sm:$0xff]
        %v827 = vld [vmem:[#allocation2 + $0x30] sm:$0xff]
        %v828 = vld [vmem:[#allocation2 + $0x38] sm:$0xff]
        %v829 = vld [vmem:[#allocation2 + $0x40] sm:$0xff]
        %v830 = vld [vmem:[#allocation2 + $0x48] sm:$0xff]
        %v831 = vld [vmem:[#allocation2 + $0x50] sm:$0xff]
        %v832 = vld [vmem:[#allocation2 + $0x58] sm:$0xff]
        %v833 = vld [vmem:[#allocation2 + $0x60] sm:$0xff]
        %v834 = vld [vmem:[#allocation2 + $0x68] sm:$0xff]
        %v835 = vld [vmem:[#allocation2 + $0x70] sm:$0xff]
        %v836 = vld [vmem:[#allocation2 + $0x78] sm:$0xff]
        %v837 = vld [vmem:[#allocation2 + $0x80] sm:$0xff]
        %v838 = vld [vmem:[#allocation2 + $0x88] sm:$0xff]
        %v839 = vld [vmem:[#allocation2 + $0x90] sm:$0xff]
        %v840 = vld [vmem:[#allocation2 + $0x98] sm:$0xff]
        %v841 = vld [vmem:[#allocation2 + $0xa0] sm:$0xff]
        %v842 = vld [vmem:[#allocation2 + $0xa8] sm:$0xff]
        %v843 = vld [vmem:[#allocation2 + $0xb0] sm:$0xff]
        %v844 = vld [vmem:[#allocation2 + $0xb8] sm:$0xff]
        %v845 = vld [vmem:[#allocation2 + $0xc0] sm:$0xff]
        %v846 = vld [vmem:[#allocation2 + $0xc8] sm:$0xff]
        %v847 = vld [vmem:[#allocation2 + $0xd0] sm:$0xff]
        %v848 = vld [vmem:[#allocation2 + $0xd8] sm:$0xff]
        %v849 = vld [vmem:[#allocation2 + $0xe0] sm:$0xff]
        %v850 = vld [vmem:[#allocation2 + $0xe8] sm:$0xff]
        %v851 = vld [vmem:[#allocation2 + $0xf0] sm:$0xff]
        %v852 = vld [vmem:[#allocation2 + $0xf8] sm:$0xff]
        %v853 = vld [vmem:[%s2] sm:$0x1]
        %v855 = vlaneseq
        %v856 = vshrl.u32 %v855, 7
        %v857 = vsub.s32 0, %v856
        %v858 = vrot.slane %v853, %v857
        %v860 = vadd.f32 %v821, %v858
        %v861 = vadd.f32 %v822, %v858
        %v862 = vadd.f32 %v823, %v858
        %v863 = vadd.f32 %v824, %v858
        %v864 = vadd.f32 %v825, %v858
        %v865 = vadd.f32 %v826, %v858
        %v866 = vadd.f32 %v827, %v858
        %v867 = vadd.f32 %v828, %v858
        %v868 = vadd.f32 %v829, %v858
        %v869 = vadd.f32 %v830, %v858
        %v870 = vadd.f32 %v831, %v858
        %v871 = vadd.f32 %v832, %v858
        %v872 = vadd.f32 %v833, %v858
        %v873 = vadd.f32 %v834, %v858
        %v874 = vadd.f32 %v835, %v858
        %v875 = vadd.f32 %v836, %v858
        %v876 = vadd.f32 %v837, %v858
        %v877 = vadd.f32 %v838, %v858
        %v878 = vadd.f32 %v839, %v858
        %v879 = vadd.f32 %v840, %v858
        %v880 = vadd.f32 %v841, %v858
        %v881 = vadd.f32 %v842, %v858
        %v882 = vadd.f32 %v843, %v858
        %v883 = vadd.f32 %v844, %v858
        %v884 = vadd.f32 %v845, %v858
        %v885 = vadd.f32 %v846, %v858
        %v886 = vadd.f32 %v847, %v858
        %v887 = vadd.f32 %v848, %v858
        %v888 = vadd.f32 %v849, %v858
        %v889 = vadd.f32 %v850, %v858
        %v890 = vadd.f32 %v851, %v858
        %v891 = vadd.f32 %v852, %v858
        %v892 = vtanh.pop %v860
        %v893 = vtanh.pop %v861
        %v894 = vtanh.pop %v862
        %v895 = vtanh.pop %v863
        %v896 = vtanh.pop %v864
        %v897 = vtanh.pop %v865
        %v898 = vtanh.pop %v866
        %v899 = vtanh.pop %v867
        %v900 = vtanh.pop %v868
        %v901 = vtanh.pop %v869
        %v902 = vtanh.pop %v870
        %v903 = vtanh.pop %v871
        %v904 = vtanh.pop %v872
        %v905 = vtanh.pop %v873
        %v906 = vtanh.pop %v874
        %v907 = vtanh.pop %v875
        %v908 = vtanh.pop %v876
        %v909 = vtanh.pop %v877
        %v910 = vtanh.pop %v878
        %v911 = vtanh.pop %v879
        %v912 = vtanh.pop %v880
        %v913 = vtanh.pop %v881
        %v914 = vtanh.pop %v882
        %v915 = vtanh.pop %v883
        %v916 = vtanh.pop %v884
        %v917 = vtanh.pop %v885
        %v918 = vtanh.pop %v886
        %v919 = vtanh.pop %v887
        %v920 = vtanh.pop %v888
        %v921 = vtanh.pop %v889
        %v922 = vtanh.pop %v890
        %v923 = vtanh.pop %v891
        %924 = vst [vmem:[%s225] sm:$0xff] %v892
        %925 = vst [vmem:[%s225 + $0x8] sm:$0xff] %v893
        %926 = vst [vmem:[%s225 + $0x10] sm:$0xff] %v894
        %927 = vst [vmem:[%s225 + $0x18] sm:$0xff] %v895
        %928 = vst [vmem:[%s225 + $0x20] sm:$0xff] %v896
        %929 = vst [vmem:[%s225 + $0x28] sm:$0xff] %v897
        %930 = vst [vmem:[%s225 + $0x30] sm:$0xff] %v898
        %931 = vst [vmem:[%s225 + $0x38] sm:$0xff] %v899
        %932 = vst [vmem:[%s225 + $0x40] sm:$0xff] %v900
        %933 = vst [vmem:[%s225 + $0x48] sm:$0xff] %v901
        %934 = vst [vmem:[%s225 + $0x50] sm:$0xff] %v902
        %935 = vst [vmem:[%s225 + $0x58] sm:$0xff] %v903
        %936 = vst [vmem:[%s225 + $0x60] sm:$0xff] %v904
        %937 = vst [vmem:[%s225 + $0x68] sm:$0xff] %v905
        %938 = vst [vmem:[%s225 + $0x70] sm:$0xff] %v906
        %939 = vst [vmem:[%s225 + $0x78] sm:$0xff] %v907
        %940 = vst [vmem:[%s225 + $0x80] sm:$0xff] %v908
        %941 = vst [vmem:[%s225 + $0x88] sm:$0xff] %v909
        %942 = vst [vmem:[%s225 + $0x90] sm:$0xff] %v910
        %943 = vst [vmem:[%s225 + $0x98] sm:$0xff] %v911
        %944 = vst [vmem:[%s225 + $0xa0] sm:$0xff] %v912
        %945 = vst [vmem:[%s225 + $0xa8] sm:$0xff] %v913
        %946 = vst [vmem:[%s225 + $0xb0] sm:$0xff] %v914
        %947 = vst [vmem:[%s225 + $0xb8] sm:$0xff] %v915
        %948 = vst [vmem:[%s225 + $0xc0] sm:$0xff] %v916
        %949 = vst [vmem:[%s225 + $0xc8] sm:$0xff] %v917
        %950 = vst [vmem:[%s225 + $0xd0] sm:$0xff] %v918
        %951 = vst [vmem:[%s225 + $0xd8] sm:$0xff] %v919
        %952 = vst [vmem:[%s225 + $0xe0] sm:$0xff] %v920
        %953 = vst [vmem:[%s225 + $0xe8] sm:$0xff] %v921
        %954 = vst [vmem:[%s225 + $0xf0] sm:$0xff] %v922
        %955 = vst [vmem:[%s225 + $0xf8] sm:$0xff] %v923
      $region40: #{generator_forward.7} parent=31 // pred_fallthru
        _
      %s956 = smul.u32 32, %s18
      %p957 = scmp.lt.s32.totalorder %s956, 63
      %s958 = scalar_select %p957, %s956, 63
      %s959 = smul.addr %s958, 8
      %s960 = scalar_lea.vmem %s3, %s959
      // Predicated region
      $region41: #{generator_forward.7} parent=31 // pred_check
        %p961 = pneg %p119
      $region42: #{generator_forward.7} parent=31 // pred_check_branch
        %963 = sbr.rel (%p961) target = $region44
      $region43: #{generator_forward.7} parent=31 // pred_region
        %s964 = smul.u32 32, %s18
      $region44: #{generator_forward.7} parent=31 // pred_fallthru
        _
    $region32: #{generator_forward.7} parent=5 // pred_fallthru
      _
    %p965 = scmp.le.s32.totalorder 2, %s9
    // Predicated region
    $region45: #{generator_forward.7} parent=5 // pred_check
      %p966 = pneg %p965
    $region46: #{generator_forward.7} parent=5 // pred_check_branch
      %968 = sbr.rel (%p966) target = $region48
    $region47: #{generator_forward.7} parent=5 // pred_region
      %s969 = ssub.s32 %s9, 2
      // Predicated region
      $region49: #{generator_forward.7} parent=47 // pred_check
        %p970 = pneg %p125
      $region50: #{generator_forward.7} parent=47 // pred_check_branch
        %972 = sbr.rel (%p970) target = $region52
      $region51: #{generator_forward.7} parent=47 // pred_region
        %s973 = smul.u32 32, %s20
        %p974 = scmp.lt.s32.totalorder %s973, 63
        %s975 = scalar_select %p974, %s973, 63
        %s976 = smul.addr %s975, 8
        %s977 = scalar_lea.vmem %s3, %s976
      $region52: #{generator_forward.7} parent=47 // pred_fallthru
        _
    $region48: #{generator_forward.7} parent=5 // pred_fallthru
      _
  $region6: #{generator_forward.7} parent=0 // loop_footer
    %s13 = sadd.s32 1, %s9
  $region7: #{generator_forward.7} parent=0 // loop_footer_branch
    %8 = sbr.rel target = $region3
  $region8: #{generator_forward.7} parent=0 // loop_exit
    _

</llo_original>
